<compile_context>
chip_gen: v7x
topology: tpu7x:2x2x1
jax: 0.10.0
libtpu: 0.0.40
codegen_flags: <defaults>
</compile_context>

<pallas_src>
import functools

import jax
import jax.numpy as jnp
import numpy as np
from jax.experimental import pallas as pl
from jax.experimental.pallas import tpu as pltpu

VMEM_LIMIT = 32 * 1024 * 1024   # conservative: fits v7x's smaller VMEM too
MAX_ROW_TILE = 512              # conv output rows per grid step (large images)
MAX_MM_TILE = 512               # matmul rows per grid step


def _cdiv(a, b):
    return -(-a // b)


def _cparams(*sems):
    return pltpu.CompilerParams(dimension_semantics=sems,
                                vmem_limit_bytes=VMEM_LIMIT)


# ----------------------------- Pallas kernels ------------------------------ #

def _conv_tap_kernel(x_ref, w_ref, b_ref, o_ref, *,
                     tap_offsets, tile_rows, n_row_tiles, neg_slope):
    """Direct stride-1 conv: accumulate kh*kw taps (K=Cin dots) into f32 acc.

    x_ref: (1, R, Cin)  bf16   flattened spatially-padded image
    w_ref: (T, Cin, Cout) bf16 per-tap weights
    b_ref: (1, Cout) f32
    o_ref: (1, tile_rows, Cout)
    """
    if n_row_tiles > 1:
        r0 = pl.program_id(1) * tile_rows        # dynamic row-tile start
    else:
        r0 = 0                                   # fully static slicing
    cout = o_ref.shape[-1]
    acc = jnp.zeros((tile_rows, cout), jnp.float32)
    for t, off in enumerate(tap_offsets):        # static unrolled tap loop
        patch = x_ref[0, pl.ds(r0 + off, tile_rows), :]
        acc = acc + jnp.dot(patch, w_ref[t], preferred_element_type=jnp.float32)
    acc = acc + b_ref[...]
    if neg_slope is not None:
        acc = jnp.where(acc > 0, acc, neg_slope * acc)
    o_ref[0] = acc.astype(o_ref.dtype)


def _shortcut_combine_kernel(p00_ref, p01_ref, p10_ref, p11_ref,
                             w_ref, b_ref, r_ref, g_ref, o_ref):
    """Fused DownBlock tail (fin != fout): (avg-pool) @ W1x1 + b + gamma*res."""
    pooled = 0.25 * (p00_ref[...].astype(jnp.float32)
                     + p01_ref[...].astype(jnp.float32)
                     + p10_ref[...].astype(jnp.float32)
                     + p11_ref[...].astype(jnp.float32))
    acc = jnp.dot(pooled.astype(jnp.bfloat16), w_ref[...],
                  preferred_element_type=jnp.float32)
    acc = acc + b_ref[...]
    acc = acc + g_ref[0, 0] * r_ref[...].astype(jnp.float32)
    o_ref[...] = acc.astype(o_ref.dtype)


def _pool_combine_kernel(p00_ref, p01_ref, p10_ref, p11_ref, r_ref, g_ref, o_ref):
    """Fused DownBlock tail (fin == fout): avg-pool + gamma*res (lane-dense)."""
    pooled = 0.25 * (p00_ref[...].astype(jnp.float32)
                     + p01_ref[...].astype(jnp.float32)
                     + p10_ref[...].astype(jnp.float32)
                     + p11_ref[...].astype(jnp.float32))
    o_ref[...] = (pooled + g_ref[0, 0] * r_ref[...].astype(jnp.float32)
                  ).astype(o_ref.dtype)


def _rowdot_kernel(x_ref, w_ref, o_ref):
    """Final 4x4 conv, Cout=1: per-row dot product (VPU mul + XLU reduce)."""
    o_ref[...] = jnp.sum(x_ref[...].astype(jnp.float32) * w_ref[...],
                         axis=-1, keepdims=True)


# ------------------------------ conv wrapper -------------------------------- #

def conv2d(x, w, b=None, *, stride=1, pad=0, neg_slope=None,
           out_dtype=jnp.bfloat16):
    """x: (B,H,W,Cin) NHWC, w: (kh,kw,Cin,Cout) HWIO.

    Stride-1 convs use the tap-accumulating direct kernel; stride-2 convs are
    converted to stride-1 convs on a space-to-depth packed input.
    """
    kh, kw, cin, cout = w.shape
    B, H, W, C = x.shape
    assert C == cin, (C, cin)

    if stride == 2:
        # kxk/s2 conv  ==  (k/2)x(k/2)/s1 conv on the 2x2-phase-packed input.
        assert kh % 2 == 0 and kw % 2 == 0
        xp = jnp.pad(x, ((0, 0), (pad, pad), (pad, pad), (0, 0)))
        Hp, Wp = H + 2 * pad, W + 2 * pad
        assert Hp % 2 == 0 and Wp % 2 == 0
        xs = xp.reshape(B, Hp // 2, 2, Wp // 2, 2, C)
        xs = xs.transpose(0, 1, 3, 2, 4, 5).reshape(B, Hp // 2, Wp // 2, 4 * C)
        ws = w.reshape(kh // 2, 2, kw // 2, 2, C, cout)
        ws = ws.transpose(0, 2, 1, 3, 4, 5).reshape(kh // 2, kw // 2, 4 * C, cout)
        return conv2d(xs, ws, b, stride=1, pad=0, neg_slope=neg_slope,
                      out_dtype=out_dtype)

    assert stride == 1
    Ho = H + 2 * pad - kh + 1
    Wo = W + 2 * pad - kw + 1
    Wp = W + 2 * pad
    # Output rows are indexed r = i*Wp + j (j up to Wp, the last kw-1 columns
    # are junk and sliced off): every tap then becomes ONE contiguous slice of
    # the flattened padded image -> no in-kernel reshapes, no im2col in HBM.
    m_img = Ho * Wp
    if m_img <= MAX_ROW_TILE:
        tr, nr = m_img, 1
    else:
        tr = MAX_ROW_TILE
        nr = _cdiv(m_img, tr)
    rows_needed = nr * tr + (kh - 1) * Wp + (kw - 1)   # keep all tap reads in-bounds
    hp_tot = _cdiv(rows_needed, Wp)
    xpad = jnp.pad(x, ((0, 0), (pad, hp_tot - H - pad), (pad, pad), (0, 0)))
    x_flat = xpad.astype(jnp.bfloat16).reshape(B, hp_tot * Wp, cin)
    w_taps = w.reshape(kh * kw, cin, cout).astype(jnp.bfloat16)
    bias = jnp.zeros((cout,), jnp.float32) if b is None else b.astype(jnp.float32)
    bias = bias.reshape(1, cout)
    tap_offsets = tuple(di * Wp + dj for di in range(kh) for dj in range(kw))
    R = hp_tot * Wp

    out = pl.pallas_call(
        functools.partial(_conv_tap_kernel, tap_offsets=tap_offsets,
                          tile_rows=tr, n_row_tiles=nr, neg_slope=neg_slope),
        out_shape=jax.ShapeDtypeStruct((B, nr * tr, cout), out_dtype),
        grid=(B, nr),
        in_specs=[
            pl.BlockSpec((1, R, cin), lambda bb, r: (bb, 0, 0)),
            pl.BlockSpec((kh * kw, cin, cout), lambda bb, r: (0, 0, 0)),
            pl.BlockSpec((1, cout), lambda bb, r: (0, 0)),
        ],
        out_specs=pl.BlockSpec((1, tr, cout), lambda bb, r: (bb, r, 0)),
        compiler_params=_cparams("parallel", "parallel"),
    )(x_flat, w_taps, bias)

    out = out[:, :m_img, :].reshape(B, Ho, Wp, cout)[:, :, :Wo, :]
    return out


# --------------------------- DownBlock tail fusions ------------------------- #

def downblock_shortcut_combine(x, w_s, b_s, r, gamma):
    """fin != fout: avg_pool2(x) -> 1x1 conv -> + gamma*res, all in one kernel.

    (1x1 conv commutes with 2x2 average pooling, so pooling first is exact and
    does 4x less matmul work than the original conv-then-pool order.)
    """
    B, H, W, fin = x.shape
    H2, W2 = H // 2, W // 2
    fout = w_s.shape[-1]
    M = B * H2 * W2
    x = x.astype(jnp.bfloat16)
    p00 = x[:, 0::2, 0::2, :].reshape(M, fin)
    p01 = x[:, 0::2, 1::2, :].reshape(M, fin)
    p10 = x[:, 1::2, 0::2, :].reshape(M, fin)
    p11 = x[:, 1::2, 1::2, :].reshape(M, fin)
    rf = r.astype(jnp.bfloat16).reshape(M, fout)
    wm = w_s.reshape(fin, fout).astype(jnp.bfloat16)
    bm = b_s.reshape(1, fout).astype(jnp.float32)
    g = jnp.asarray(gamma, jnp.float32).reshape(1, 1)

    tm = M if M <= MAX_MM_TILE else MAX_MM_TILE
    nm = _cdiv(M, tm)
    row_in = pl.BlockSpec((tm, fin), lambda i: (i, 0))
    out = pl.pallas_call(
        _shortcut_combine_kernel,
        out_shape=jax.ShapeDtypeStruct((nm * tm, fout), jnp.bfloat16),
        grid=(nm,),
        in_specs=[row_in, row_in, row_in, row_in,
                  pl.BlockSpec((fin, fout), lambda i: (0, 0)),
                  pl.BlockSpec((1, fout), lambda i: (0, 0)),
                  pl.BlockSpec((tm, fout), lambda i: (i, 0)),
                  pl.BlockSpec((1, 1), lambda i: (0, 0),
                               memory_space=pltpu.MemorySpace.SMEM)],
        out_specs=pl.BlockSpec((tm, fout), lambda i: (i, 0)),
        compiler_params=_cparams("parallel"),
    )(p00, p01, p10, p11, wm, bm, rf, g)
    return out[:M].reshape(B, H2, W2, fout)


def downblock_identity_combine(x, r, gamma):
    """fin == fout: avg_pool2(x) + gamma*res as one lane-dense elementwise kernel."""
    B, H, W, C = x.shape
    H2, W2 = H // 2, W // 2
    total = B * H2 * W2 * C
    # Elementwise op -> lane mapping is free: flatten to the widest lane-dense
    # layout that divides the element count (falls back to C lanes otherwise).
    lane = next((l for l in (2048, 1024, 512, 256, 128) if total % l == 0), C)
    rows = total // lane
    x = x.astype(jnp.bfloat16)

    def flat(a):
        return a.reshape(rows, lane)

    p00 = flat(x[:, 0::2, 0::2, :])
    p01 = flat(x[:, 0::2, 1::2, :])
    p10 = flat(x[:, 1::2, 0::2, :])
    p11 = flat(x[:, 1::2, 1::2, :])
    rf = flat(r.astype(jnp.bfloat16))
    g = jnp.asarray(gamma, jnp.float32).reshape(1, 1)

    tr = rows if rows <= 256 else 256
    nr = _cdiv(rows, tr)
    row_spec = pl.BlockSpec((tr, lane), lambda i: (i, 0))
    out = pl.pallas_call(
        _pool_combine_kernel,
        out_shape=jax.ShapeDtypeStruct((nr * tr, lane), jnp.bfloat16),
        grid=(nr,),
        in_specs=[row_spec] * 5 + [pl.BlockSpec((1, 1), lambda i: (0, 0),
                                                memory_space=pltpu.MemorySpace.SMEM)],
        out_specs=row_spec,
        compiler_params=_cparams("parallel"),
    )(p00, p01, p10, p11, rf, g)
    return out[:rows].reshape(B, H2, W2, C)


def final_projection(x, w):
    """conv_rep2: 4x4 valid conv with Cout=1 on a 4x4 map == per-image dot."""
    B, H, W, C = x.shape
    kh, kw, cin, cout = w.shape
    assert (H, W, C) == (kh, kw, cin) and cout == 1
    xf = x.astype(jnp.bfloat16).reshape(B, H * W * C)
    wf = w.astype(jnp.float32).reshape(1, kh * kw * cin)
    out = pl.pallas_call(
        _rowdot_kernel,
        out_shape=jax.ShapeDtypeStruct((B, 1), jnp.float32),
        in_specs=[pl.BlockSpec(memory_space=pltpu.MemorySpace.VMEM)] * 2,
        out_specs=pl.BlockSpec(memory_space=pltpu.MemorySpace.VMEM),
        compiler_params=pltpu.CompilerParams(vmem_limit_bytes=VMEM_LIMIT),
    )(xf, wf)
    return out.reshape(B, 1, 1, 1)


# --------------------------- model / parameters ----------------------------- #

def _winit(key, shape):
    fan_in = int(np.prod(shape[:-1]))
    return (jax.random.normal(key, shape, jnp.float32) / np.sqrt(fan_in)
            ).astype(jnp.float32)


def init_params(key, n_c, scales, text_dim):
    keys = jax.random.split(key, 32)
    ki = iter(keys)
    p = {"conv1_w": _winit(next(ki), (3, 3, 3, n_c)),
         "conv1_b": 0.1 * jax.random.normal(next(ki), (n_c,), jnp.float32)}
    blocks = []
    for i in range(len(scales) - 3):
        fin, fout = n_c * scales[i], n_c * scales[i + 1]
        blk = {
            "w_r1": _winit(next(ki), (4, 4, fin, fout)),
            "w_r2": _winit(next(ki), (3, 3, fout, fout)),
            # DF-GAN initializes gamma to 0; nonzero here so the residual
            # branch actually contributes in this synthetic test.
            "gamma": jnp.float32(0.3),
        }
        if fin != fout:
            blk["w_s"] = _winit(next(ki), (1, 1, fin, fout))
            blk["b_s"] = 0.1 * jax.random.normal(next(ki), (fout,), jnp.float32)
        else:
            blk["w_s"] = None
            blk["b_s"] = None
        blocks.append(blk)
    p["downblocks"] = blocks
    # Fixed: derive conv_rep1's input channels from the ACTUAL channel count
    # leaving the downblock stack (the torch code uses scales[-4], which only
    # works when scales[-4] == scales[-3], as in the default configuration).
    last_out = n_c * scales[len(scales) - 3]
    n_rep1, n_rep2 = scales[-2], scales[-1]
    p["rep1_w"] = _winit(next(ki), (3, 3, last_out + text_dim, n_c * n_rep1))
    p["rep2_w"] = _winit(next(ki), (4, 4, n_c * n_rep1, n_rep2))
    return p


def downblock_forward(p, x):
    # residual branch
    r = conv2d(x, p["w_r1"], None, stride=2, pad=1, neg_slope=0.2)
    r = conv2d(r, p["w_r2"], None, stride=1, pad=1, neg_slope=0.2)
    # fused shortcut (+pool) + gamma*residual
    if p["w_s"] is not None:
        return downblock_shortcut_combine(x, p["w_s"], p["b_s"], r, p["gamma"])
    return downblock_identity_combine(x, r, p["gamma"])


def discriminator_forward(params, x_nchw, s):
    x = jnp.transpose(x_nchw, (0, 2, 3, 1)).astype(jnp.bfloat16)   # NCHW -> NHWC
    x = conv2d(x, params["conv1_w"], params["conv1_b"], stride=1, pad=1)
    for blk in params["downblocks"]:
        x = downblock_forward(blk, x)
    B, Hh, Ww, _ = x.shape
    s_map = jnp.broadcast_to(s.astype(x.dtype)[:, None, None, :],
                             (B, Hh, Ww, s.shape[-1]))
    x = jnp.concatenate([x, s_map], axis=-1)            # torch.cat((x, s), dim=-3)
    x = conv2d(x, params["rep1_w"], None, stride=1, pad=1, neg_slope=0.2)
    x = final_projection(x, params["rep2_w"])           # (B,1,1,1) f32
    return jnp.transpose(x, (0, 3, 1, 2))               # NHWC -> NCHW logits


# ------------------------------ pure-JAX ref -------------------------------- #

def _conv_ref(x, w, b, stride, pad):
    y = jax.lax.conv_general_dilated(
        x, w, (stride, stride), [(pad, pad), (pad, pad)],
        dimension_numbers=("NHWC", "HWIO", "NHWC"))
    if b is not None:
        y = y + b.reshape(1, 1, 1, -1)
    return y


def _lrelu(x):
    return jnp.where(x > 0, x, 0.2 * x)


def _avgpool2(x):
    B, H, W, C = x.shape
    return x.reshape(B, H // 2, 2, W // 2, 2, C).mean(axis=(2, 4))


def forward_ref(params, x_nchw, s):
    x = jnp.transpose(x_nchw, (0, 2, 3, 1))
    x = _conv_ref(x, params["conv1_w"], params["conv1_b"], 1, 1)
    for p in params["downblocks"]:
        r = _lrelu(_conv_ref(x, p["w_r1"], None, 2, 1))
        r = _lrelu(_conv_ref(r, p["w_r2"], None, 1, 1))
        sc = _conv_ref(x, p["w_s"], p["b_s"], 1, 0) if p["w_s"] is not None else x
        x = _avgpool2(sc) + p["gamma"] * r
    B, Hh, Ww, _ = x.shape
    s_map = jnp.broadcast_to(s[:, None, None, :], (B, Hh, Ww, s.shape[-1]))
    x = jnp.concatenate([x, s_map], axis=-1)
    x = _lrelu(_conv_ref(x, params["rep1_w"], None, 1, 1))
    x = _conv_ref(x, params["rep2_w"], None, 1, 0)
    return jnp.transpose(x, (0, 3, 1, 2))


# ----------------------------------- main ----------------------------------- #

if __name__ == "__main__":
    key = jax.random.PRNGKey(0)
    kp, kx, ks = jax.random.split(key, 3)

    n_c, text_dim = 8, 32
    # shortened downblock_scales -> 2 downblocks, so 16x16 images end at 4x4,
    # matching the 4x4 text tiling in the forward pass.
    scales = (1, 2, 2, 2, 1)
    B, H, W = 2, 16, 16

    params = init_params(kp, n_c=n_c, scales=scales, text_dim=text_dim)
    x = jax.random.normal(kx, (B, 3, H, W), jnp.float32)    # NCHW, like PyTorch
    s = jax.random.normal(ks, (B, text_dim), jnp.float32)

    out = discriminator_forward(params, x, s)
    out = jax.block_until_ready(out)

    ref = forward_ref(params, x, s)
    assert out.shape == (B, 1, 1, 1), out.shape
    # bf16 MXU operands + bf16 intermediate activations -> ~1% error per layer
    # vs. the f32 reference; 5e-2 still catches any structural mistake.
    assert np.allclose(np.asarray(out, np.float32), np.asarray(ref),
                       atol=5e-2, rtol=5e-2)
    print("KERNEL_OK")
</pallas_src>

<mosaic_0001>
module attributes {stable_mosaic.version = 11 : i64} {
  func.func @_conv_tap_kernel(%arg0: i32, %arg1: i32, %arg2: memref<1x342x3xbf16, #tpu.memory_space<vmem>>, %arg3: memref<9x3x8xbf16, #tpu.memory_space<vmem>>, %arg4: memref<1x8xf32, #tpu.memory_space<vmem>>, %arg5: memref<1x288x8xbf16, #tpu.memory_space<vmem>>) attributes {dimension_semantics = [#tpu.dimension_semantics<parallel>, #tpu.dimension_semantics<parallel>], iteration_bounds = array<i64: 2, 1>, scalar_prefetch = 0 : i64, scratch_operands = 0 : i64, tpu.core_type = #tpu.core_type<tc>, window_params = [{transform_indices = @transform_0, window_bounds = array<i64: 1, 342, 3>}, {pipeline_mode = #tpu.pipeline_mode<synchronous>, transform_indices = @transform_1, window_bounds = array<i64: 9, 3, 8>}, {pipeline_mode = #tpu.pipeline_mode<synchronous>, transform_indices = @transform_2, window_bounds = array<i64: 1, 8>}, {transform_indices = @transform_3, window_bounds = array<i64: 1, 288, 8>}]} {
    %cst = arith.constant 0.000000e+00 : f32
    %0 = vector.broadcast %cst : f32 to vector<288x8xf32>
    %c0 = arith.constant 0 : index
    %c0_0 = arith.constant 0 : index
    %c0_1 = arith.constant 0 : index
    %1 = vector.load %arg2[%c0, %c0_0, %c0_1] : memref<1x342x3xbf16, #tpu.memory_space<vmem>>, vector<1x288x3xbf16>
    %2 = vector.shape_cast %1 : vector<1x288x3xbf16> to vector<288x3xbf16>
    %c0_2 = arith.constant 0 : index
    %c0_3 = arith.constant 0 : index
    %c0_4 = arith.constant 0 : index
    %3 = vector.load %arg3[%c0_2, %c0_3, %c0_4] : memref<9x3x8xbf16, #tpu.memory_space<vmem>>, vector<1x3x8xbf16>
    %4 = vector.shape_cast %3 : vector<1x3x8xbf16> to vector<3x8xbf16>
    %cst_5 = arith.constant dense<0.000000e+00> : vector<288x8xf32>
    %5 = tpu.matmul %2, %4, %cst_5 {dimension_numbers = #tpu.dot_dimension_numbers<[1], [0], [0], [1], [0, 0, 1, 1], [], []>} : vector<288x3xbf16>, vector<3x8xbf16>, vector<288x8xf32> -> vector<288x8xf32>
    %6 = arith.addf %0, %5 : vector<288x8xf32>
    %c0_6 = arith.constant 0 : index
    %c1 = arith.constant 1 : index
    %c0_7 = arith.constant 0 : index
    %7 = vector.load %arg2[%c0_6, %c1, %c0_7] : memref<1x342x3xbf16, #tpu.memory_space<vmem>>, vector<1x288x3xbf16>
    %8 = vector.shape_cast %7 : vector<1x288x3xbf16> to vector<288x3xbf16>
    %c1_8 = arith.constant 1 : index
    %c0_9 = arith.constant 0 : index
    %c0_10 = arith.constant 0 : index
    %9 = vector.load %arg3[%c1_8, %c0_9, %c0_10] : memref<9x3x8xbf16, #tpu.memory_space<vmem>>, vector<1x3x8xbf16>
    %10 = vector.shape_cast %9 : vector<1x3x8xbf16> to vector<3x8xbf16>
    %cst_11 = arith.constant dense<0.000000e+00> : vector<288x8xf32>
    %11 = tpu.matmul %8, %10, %cst_11 {dimension_numbers = #tpu.dot_dimension_numbers<[1], [0], [0], [1], [0, 0, 1, 1], [], []>} : vector<288x3xbf16>, vector<3x8xbf16>, vector<288x8xf32> -> vector<288x8xf32>
    %12 = arith.addf %6, %11 : vector<288x8xf32>
    %c0_12 = arith.constant 0 : index
    %c2 = arith.constant 2 : index
    %c0_13 = arith.constant 0 : index
    %13 = vector.load %arg2[%c0_12, %c2, %c0_13] : memref<1x342x3xbf16, #tpu.memory_space<vmem>>, vector<1x288x3xbf16>
    %14 = vector.shape_cast %13 : vector<1x288x3xbf16> to vector<288x3xbf16>
    %c2_14 = arith.constant 2 : index
    %c0_15 = arith.constant 0 : index
    %c0_16 = arith.constant 0 : index
    %15 = vector.load %arg3[%c2_14, %c0_15, %c0_16] : memref<9x3x8xbf16, #tpu.memory_space<vmem>>, vector<1x3x8xbf16>
    %16 = vector.shape_cast %15 : vector<1x3x8xbf16> to vector<3x8xbf16>
    %cst_17 = arith.constant dense<0.000000e+00> : vector<288x8xf32>
    %17 = tpu.matmul %14, %16, %cst_17 {dimension_numbers = #tpu.dot_dimension_numbers<[1], [0], [0], [1], [0, 0, 1, 1], [], []>} : vector<288x3xbf16>, vector<3x8xbf16>, vector<288x8xf32> -> vector<288x8xf32>
    %18 = arith.addf %12, %17 : vector<288x8xf32>
    %c0_18 = arith.constant 0 : index
    %c18 = arith.constant 18 : index
    %c0_19 = arith.constant 0 : index
    %19 = vector.load %arg2[%c0_18, %c18, %c0_19] : memref<1x342x3xbf16, #tpu.memory_space<vmem>>, vector<1x288x3xbf16>
    %20 = vector.shape_cast %19 : vector<1x288x3xbf16> to vector<288x3xbf16>
    %c3 = arith.constant 3 : index
    %c0_20 = arith.constant 0 : index
    %c0_21 = arith.constant 0 : index
    %21 = vector.load %arg3[%c3, %c0_20, %c0_21] : memref<9x3x8xbf16, #tpu.memory_space<vmem>>, vector<1x3x8xbf16>
    %22 = vector.shape_cast %21 : vector<1x3x8xbf16> to vector<3x8xbf16>
    %cst_22 = arith.constant dense<0.000000e+00> : vector<288x8xf32>
    %23 = tpu.matmul %20, %22, %cst_22 {dimension_numbers = #tpu.dot_dimension_numbers<[1], [0], [0], [1], [0, 0, 1, 1], [], []>} : vector<288x3xbf16>, vector<3x8xbf16>, vector<288x8xf32> -> vector<288x8xf32>
    %24 = arith.addf %18, %23 : vector<288x8xf32>
    %c0_23 = arith.constant 0 : index
    %c19 = arith.constant 19 : index
    %c0_24 = arith.constant 0 : index
    %25 = vector.load %arg2[%c0_23, %c19, %c0_24] : memref<1x342x3xbf16, #tpu.memory_space<vmem>>, vector<1x288x3xbf16>
    %26 = vector.shape_cast %25 : vector<1x288x3xbf16> to vector<288x3xbf16>
    %c4 = arith.constant 4 : index
    %c0_25 = arith.constant 0 : index
    %c0_26 = arith.constant 0 : index
    %27 = vector.load %arg3[%c4, %c0_25, %c0_26] : memref<9x3x8xbf16, #tpu.memory_space<vmem>>, vector<1x3x8xbf16>
    %28 = vector.shape_cast %27 : vector<1x3x8xbf16> to vector<3x8xbf16>
    %cst_27 = arith.constant dense<0.000000e+00> : vector<288x8xf32>
    %29 = tpu.matmul %26, %28, %cst_27 {dimension_numbers = #tpu.dot_dimension_numbers<[1], [0], [0], [1], [0, 0, 1, 1], [], []>} : vector<288x3xbf16>, vector<3x8xbf16>, vector<288x8xf32> -> vector<288x8xf32>
    %30 = arith.addf %24, %29 : vector<288x8xf32>
    %c0_28 = arith.constant 0 : index
    %c20 = arith.constant 20 : index
    %c0_29 = arith.constant 0 : index
    %31 = vector.load %arg2[%c0_28, %c20, %c0_29] : memref<1x342x3xbf16, #tpu.memory_space<vmem>>, vector<1x288x3xbf16>
    %32 = vector.shape_cast %31 : vector<1x288x3xbf16> to vector<288x3xbf16>
    %c5 = arith.constant 5 : index
    %c0_30 = arith.constant 0 : index
    %c0_31 = arith.constant 0 : index
    %33 = vector.load %arg3[%c5, %c0_30, %c0_31] : memref<9x3x8xbf16, #tpu.memory_space<vmem>>, vector<1x3x8xbf16>
    %34 = vector.shape_cast %33 : vector<1x3x8xbf16> to vector<3x8xbf16>
    %cst_32 = arith.constant dense<0.000000e+00> : vector<288x8xf32>
    %35 = tpu.matmul %32, %34, %cst_32 {dimension_numbers = #tpu.dot_dimension_numbers<[1], [0], [0], [1], [0, 0, 1, 1], [], []>} : vector<288x3xbf16>, vector<3x8xbf16>, vector<288x8xf32> -> vector<288x8xf32>
    %36 = arith.addf %30, %35 : vector<288x8xf32>
    %c0_33 = arith.constant 0 : index
    %c36 = arith.constant 36 : index
    %c0_34 = arith.constant 0 : index
    %37 = vector.load %arg2[%c0_33, %c36, %c0_34] : memref<1x342x3xbf16, #tpu.memory_space<vmem>>, vector<1x288x3xbf16>
    %38 = vector.shape_cast %37 : vector<1x288x3xbf16> to vector<288x3xbf16>
    %c6 = arith.constant 6 : index
    %c0_35 = arith.constant 0 : index
    %c0_36 = arith.constant 0 : index
    %39 = vector.load %arg3[%c6, %c0_35, %c0_36] : memref<9x3x8xbf16, #tpu.memory_space<vmem>>, vector<1x3x8xbf16>
    %40 = vector.shape_cast %39 : vector<1x3x8xbf16> to vector<3x8xbf16>
    %cst_37 = arith.constant dense<0.000000e+00> : vector<288x8xf32>
    %41 = tpu.matmul %38, %40, %cst_37 {dimension_numbers = #tpu.dot_dimension_numbers<[1], [0], [0], [1], [0, 0, 1, 1], [], []>} : vector<288x3xbf16>, vector<3x8xbf16>, vector<288x8xf32> -> vector<288x8xf32>
    %42 = arith.addf %36, %41 : vector<288x8xf32>
    %c0_38 = arith.constant 0 : index
    %c37 = arith.constant 37 : index
    %c0_39 = arith.constant 0 : index
    %43 = vector.load %arg2[%c0_38, %c37, %c0_39] : memref<1x342x3xbf16, #tpu.memory_space<vmem>>, vector<1x288x3xbf16>
    %44 = vector.shape_cast %43 : vector<1x288x3xbf16> to vector<288x3xbf16>
    %c7 = arith.constant 7 : index
    %c0_40 = arith.constant 0 : index
    %c0_41 = arith.constant 0 : index
    %45 = vector.load %arg3[%c7, %c0_40, %c0_41] : memref<9x3x8xbf16, #tpu.memory_space<vmem>>, vector<1x3x8xbf16>
    %46 = vector.shape_cast %45 : vector<1x3x8xbf16> to vector<3x8xbf16>
    %cst_42 = arith.constant dense<0.000000e+00> : vector<288x8xf32>
    %47 = tpu.matmul %44, %46, %cst_42 {dimension_numbers = #tpu.dot_dimension_numbers<[1], [0], [0], [1], [0, 0, 1, 1], [], []>} : vector<288x3xbf16>, vector<3x8xbf16>, vector<288x8xf32> -> vector<288x8xf32>
    %48 = arith.addf %42, %47 : vector<288x8xf32>
    %c0_43 = arith.constant 0 : index
    %c38 = arith.constant 38 : index
    %c0_44 = arith.constant 0 : index
    %49 = vector.load %arg2[%c0_43, %c38, %c0_44] : memref<1x342x3xbf16, #tpu.memory_space<vmem>>, vector<1x288x3xbf16>
    %50 = vector.shape_cast %49 : vector<1x288x3xbf16> to vector<288x3xbf16>
    %c8 = arith.constant 8 : index
    %c0_45 = arith.constant 0 : index
    %c0_46 = arith.constant 0 : index
    %51 = vector.load %arg3[%c8, %c0_45, %c0_46] : memref<9x3x8xbf16, #tpu.memory_space<vmem>>, vector<1x3x8xbf16>
    %52 = vector.shape_cast %51 : vector<1x3x8xbf16> to vector<3x8xbf16>
    %cst_47 = arith.constant dense<0.000000e+00> : vector<288x8xf32>
    %53 = tpu.matmul %50, %52, %cst_47 {dimension_numbers = #tpu.dot_dimension_numbers<[1], [0], [0], [1], [0, 0, 1, 1], [], []>} : vector<288x3xbf16>, vector<3x8xbf16>, vector<288x8xf32> -> vector<288x8xf32>
    %54 = arith.addf %48, %53 : vector<288x8xf32>
    %c0_48 = arith.constant 0 : index
    %c0_49 = arith.constant 0 : index
    %55 = vector.load %arg4[%c0_48, %c0_49] : memref<1x8xf32, #tpu.memory_space<vmem>>, vector<1x8xf32>
    %56 = vector.broadcast %55 : vector<1x8xf32> to vector<288x8xf32>
    %57 = arith.addf %54, %56 : vector<288x8xf32>
    %58 = arith.truncf %57 : vector<288x8xf32> to vector<288x8xbf16>
    %c0_50 = arith.constant 0 : index
    %c0_51 = arith.constant 0 : index
    %c0_52 = arith.constant 0 : index
    %59 = vector.load %arg5[%c0_50, %c0_51, %c0_52] : memref<1x288x8xbf16, #tpu.memory_space<vmem>>, vector<1x288x8xbf16>
    %60 = vector.shape_cast %59 : vector<1x288x8xbf16> to vector<288x8xbf16>
    %61 = vector.shape_cast %58 : vector<288x8xbf16> to vector<1x288x8xbf16>
    tpu.vector_store %arg5[%c0_50, %c0_51, %c0_52], %61 {strides = array<i32>} : memref<1x288x8xbf16, #tpu.memory_space<vmem>>, vector<1x288x8xbf16>,
    return
  }
  func.func @transform_0(%arg0: i32, %arg1: i32) -> (i32, i32, i32) {
    %c0_i32 = arith.constant 0 : i32
    %c0_i32_0 = arith.constant 0 : i32
    %c0_i32_1 = arith.constant 0 : i32
    return %arg0, %c0_i32, %c0_i32_0 : i32, i32, i32
  }
  func.func @transform_1(%arg0: i32, %arg1: i32) -> (i32, i32, i32) {
    %c0_i32 = arith.constant 0 : i32
    %c0_i32_0 = arith.constant 0 : i32
    %c0_i32_1 = arith.constant 0 : i32
    %c0_i32_2 = arith.constant 0 : i32
    return %c0_i32, %c0_i32_0, %c0_i32_1 : i32, i32, i32
  }
  func.func @transform_2(%arg0: i32, %arg1: i32) -> (i32, i32) {
    %c0_i32 = arith.constant 0 : i32
    %c0_i32_0 = arith.constant 0 : i32
    %c0_i32_1 = arith.constant 0 : i32
    return %c0_i32, %c0_i32_0 : i32, i32
  }
  func.func @transform_3(%arg0: i32, %arg1: i32) -> (i32, i32, i32) {
    %c0_i32 = arith.constant 0 : i32
    %c0_i32_0 = arith.constant 0 : i32
    return %arg0, %arg1, %c0_i32 : i32, i32, i32
  }
}

</mosaic_0001>

<llo_original>
// kernel: tpu_custom_call.1
$region0: #{tpu_custom_call.1}
  #allocation0 [shape = 'u32[]', space=smem, size = 0x4, offset = 0x4, fixed_abs, tag = 'smem constant byte address 0x4 - core index']
  #allocation1 [shape = 'u32[144,128]{1,0:T(1,128)}', space=vmem, size = 0x12000, scoped, tag = 'internal scratch']
  %s0 = inlined_call_operand.vmem [shape: bf16[2,342,3], index: 0, kind: input, shape index: {}]
  %s1 = inlined_call_operand.vmem [shape: bf16[9,3,8], index: 1, kind: input, shape index: {}]
  %s2 = inlined_call_operand.vmem [shape: f32[1,8], index: 2, kind: input, shape index: {}]
  %s3 = inlined_call_operand.vmem [shape: bf16[2,288,8], index: 3, kind: output, shape index: {}]
  %s4 = sld [smem:[#allocation0]]
  $region45: #{tpu_custom_call.1} parent=0
    _
  %s6 = ssub.s32 1, %s4
  %s7 = scalar_select 0, %s6, %s4
  loop: start=0, step=1, limit=4
  $region2: #{tpu_custom_call.1} parent=0 // loop_pre_header
    _
  $region3: #{tpu_custom_call.1} parent=0 // loop_header
    %s9 = sphi 0, %s13
    %p10 = scmp.ge.s32.totalorder %s9, 4
    %s16 = sphi 0, %s28
    %s17 = sphi 0, %s24
    %s18 = sphi 0, %s16
    %s19 = sphi 0, %s17
    %s20 = sphi 0, %s18
    %s21 = sphi 0, %s19
    %s31 = sphi 0, %s33
    %s34 = sphi 0, %s31
    %s35 = sphi 0, %s34
    %s51 = sphi 0, %s35
    %s55 = sphi 0, %s55
    %s57 = sphi 0, %s55
    %s58 = sphi 0, %s57
    %s72 = sphi 0, %s58
    %s76 = sphi 0, %s76
    %s78 = sphi 0, %s76
    %s79 = sphi 0, %s78
    %s93 = sphi 0, %s79
    %s101 = sphi 0, %s103
    %s104 = sphi 0, %s101
    %s105 = sphi 0, %s104
    %s121 = sphi 0, %s105
  $region4: #{tpu_custom_call.1} parent=0 // loop_header_branch
    %12 = sbr.rel (%p10) target = $region8
  $region5: #{tpu_custom_call.1} parent=0 // loop_body
    %s14 = ssub.s32 %s9, 1
    %s15 = ssub.s32 %s9, 2
    %s22 = sadd.s32 1, %s17
    %p23 = scmp.ge.s32.totalorder %s22, 1
    %s24 = scalar_select %p23, 0, %s22
    %s25 = sadd.s32 1, %s16
    %s26 = scalar_select %p23, %s25, %s16
    %p27 = scmp.ge.s32.totalorder %s26, 2
    %s28 = scalar_select %p27, 0, %s26
    %s29 = ssub.s32 %s16, %s28
    %p30 = scmp.eq.s32.totalorder %s29, 0
    %s32 = sadd.s32 %s31, 1
    %s33 = scalar_select %p30, %s31, %s32
    %p36 = pneg %p30
    %p37 = scmp.eq.s32.totalorder %s9, 1
    %p38 = por %p36, %p37
    %p39 = scmp.ne.s32.totalorder %s31, %s34
    %p40 = scmp.eq.s32.totalorder %s9, 0
    %p41 = por %p39, %p40
    %p42 = scmp.ne.s32.totalorder %s31, %s34
    %p43 = scmp.eq.s32.totalorder %s14, 1
    %p44 = por %p42, %p43
    %p45 = scmp.ne.s32.totalorder %s34, %s35
    %p46 = scmp.eq.s32.totalorder %s14, 0
    %p47 = por %p45, %p46
    %p48 = scmp.ne.s32.totalorder %s34, %s35
    %p49 = scmp.eq.s32.totalorder %s15, 1
    %p50 = por %p48, %p49
    %p52 = scmp.ne.s32.totalorder %s35, %s51
    %p53 = scmp.eq.s32.totalorder %s15, 0
    %p54 = por %p52, %p53
    %s56 = sadd.s32 %s55, 1
    %p59 = scmp.eq.s32.totalorder %s9, 1
    %p60 = scmp.ne.s32.totalorder %s55, %s57
    %p61 = scmp.eq.s32.totalorder %s9, 0
    %p62 = por %p60, %p61
    %p63 = scmp.ne.s32.totalorder %s55, %s57
    %p64 = scmp.eq.s32.totalorder %s14, 1
    %p65 = por %p63, %p64
    %p66 = scmp.ne.s32.totalorder %s57, %s58
    %p67 = scmp.eq.s32.totalorder %s14, 0
    %p68 = por %p66, %p67
    %p69 = scmp.ne.s32.totalorder %s57, %s58
    %p70 = scmp.eq.s32.totalorder %s15, 1
    %p71 = por %p69, %p70
    %p73 = scmp.ne.s32.totalorder %s58, %s72
    %p74 = scmp.eq.s32.totalorder %s15, 0
    %p75 = por %p73, %p74
    %s77 = sadd.s32 %s76, 1
    %p80 = scmp.eq.s32.totalorder %s9, 1
    %p81 = scmp.ne.s32.totalorder %s76, %s78
    %p82 = scmp.eq.s32.totalorder %s9, 0
    %p83 = por %p81, %p82
    %p84 = scmp.ne.s32.totalorder %s76, %s78
    %p85 = scmp.eq.s32.totalorder %s14, 1
    %p86 = por %p84, %p85
    %p87 = scmp.ne.s32.totalorder %s78, %s79
    %p88 = scmp.eq.s32.totalorder %s14, 0
    %p89 = por %p87, %p88
    %p90 = scmp.ne.s32.totalorder %s78, %s79
    %p91 = scmp.eq.s32.totalorder %s15, 1
    %p92 = por %p90, %p91
    %p94 = scmp.ne.s32.totalorder %s79, %s93
    %p95 = scmp.eq.s32.totalorder %s15, 0
    %p96 = por %p94, %p95
    %s97 = ssub.s32 %s16, %s28
    %s98 = ssub.s32 %s17, %s24
    %s99 = sor.u32 %s97, %s98
    %p100 = scmp.eq.s32.totalorder %s99, 0
    %s102 = sadd.s32 %s101, 1
    %s103 = scalar_select %p100, %s101, %s102
    %p106 = pneg %p100
    %p107 = scmp.eq.s32.totalorder %s9, 1
    %p108 = por %p106, %p107
    %p109 = scmp.ne.s32.totalorder %s101, %s104
    %p110 = scmp.eq.s32.totalorder %s9, 0
    %p111 = por %p109, %p110
    %p112 = scmp.ne.s32.totalorder %s101, %s104
    %p113 = scmp.eq.s32.totalorder %s14, 1
    %p114 = por %p112, %p113
    %p115 = scmp.ne.s32.totalorder %s104, %s105
    %p116 = scmp.eq.s32.totalorder %s14, 0
    %p117 = por %p115, %p116
    %p118 = scmp.ne.s32.totalorder %s104, %s105
    %p119 = scmp.eq.s32.totalorder %s15, 1
    %p120 = por %p118, %p119
    %p122 = scmp.ne.s32.totalorder %s105, %s121
    %p123 = scmp.eq.s32.totalorder %s15, 0
    %p124 = por %p122, %p123
    %p125 = scmp.le.s32.totalorder 1, %s9
    %p126 = scmp.lt.s32.totalorder %s9, 3
    %p127 = pnand %p125, %p126
    %p128 = pneg %p127
    // Predicated region
    $region9: #{tpu_custom_call.1} parent=5 // pred_check
      _
    $region10: #{tpu_custom_call.1} parent=5 // pred_check_branch
      %130 = sbr.rel (%p127) target = $region12
    $region11: #{tpu_custom_call.1} parent=5 // pred_region
      %s131 = ssub.s32 %s9, 1
      // Predicated region
      $region13: #{tpu_custom_call.1} parent=11 // pred_check
        %p132 = pneg %p68
      $region14: #{tpu_custom_call.1} parent=11 // pred_check_branch
        %134 = sbr.rel (%p132) target = $region16
      $region15: #{tpu_custom_call.1} parent=11 // pred_region
        _
      $region16: #{tpu_custom_call.1} parent=11 // pred_fallthru
        _
      // Predicated region
      $region17: #{tpu_custom_call.1} parent=11 // pred_check
        %p135 = pneg %p89
      $region18: #{tpu_custom_call.1} parent=11 // pred_check_branch
        %137 = sbr.rel (%p135) target = $region20
      $region19: #{tpu_custom_call.1} parent=11 // pred_region
        _
      $region20: #{tpu_custom_call.1} parent=11 // pred_fallthru
        _
    $region12: #{tpu_custom_call.1} parent=5 // pred_fallthru
      _
    %p138 = scmp.lt.s32.totalorder %s9, 2
    // Predicated region
    $region21: #{tpu_custom_call.1} parent=5 // pred_check
      %p139 = pneg %p138
    $region22: #{tpu_custom_call.1} parent=5 // pred_check_branch
      %141 = sbr.rel (%p139) target = $region24
    $region23: #{tpu_custom_call.1} parent=5 // pred_region
      // Predicated region
      $region25: #{tpu_custom_call.1} parent=23 // pred_check
        %p142 = pneg %p41
      $region26: #{tpu_custom_call.1} parent=23 // pred_check_branch
        %144 = sbr.rel (%p142) target = $region28
      $region27: #{tpu_custom_call.1} parent=23 // pred_region
        %p145 = scmp.lt.s32.totalorder %s16, 1
        %s146 = scalar_select %p145, %s16, 1
        %s147 = smul.addr %s146, 43
        %s148 = smul.addr %s147, 4
        %s149 = scalar_lea.vmem %s0, %s148
      $region28: #{tpu_custom_call.1} parent=23 // pred_fallthru
        _
    $region24: #{tpu_custom_call.1} parent=5 // pred_fallthru
      _
    %p150 = scmp.le.s32.totalorder 1, %s9
    %p151 = scmp.lt.s32.totalorder %s9, 3
    %p152 = pnand %p150, %p151
    %p153 = pneg %p152
    // Predicated region
    $region29: #{tpu_custom_call.1} parent=5 // pred_check
      _
    $region30: #{tpu_custom_call.1} parent=5 // pred_check_branch
      %155 = sbr.rel (%p152) target = $region32
    $region31: #{tpu_custom_call.1} parent=5 // pred_region
      %s156 = ssub.s32 %s9, 1
      %p157 = scmp.lt.s32.totalorder %s18, 1
      %s158 = scalar_select %p157, %s18, 1
      %s159 = smul.addr %s158, 43
      %s160 = smul.addr %s159, 4
      %s161 = scalar_lea.vmem %s0, %s160
      %p162 = pneg %p47
      %p163 = pneg %p44
      %p164 = pneg %p68
      %p165 = pneg %p65
      %p166 = pneg %p89
      %p167 = pneg %p86
      %p168 = pneg %p117
      %p169 = pneg %p114
      %s170 = smul.u32 36, %s19
      %p171 = scmp.lt.s32.totalorder %s18, 1
      %s172 = scalar_select %p171, %s18, 1
      %p173 = scmp.lt.s32.totalorder %s170, 35
      %s174 = scalar_select %p173, %s170, 35
      %s175 = smul.addr %s172, 36
      %s176 = sadd.s32 %s174, %s175
      %s177 = smul.addr %s176, 4
      %s178 = scalar_lea.vmem %s3, %s177
      %p179 = scmp.lt.s32.totalorder %s18, 1
      %s180 = scalar_select %p179, %s18, 1
      %s181 = smul.addr %s180, 43
      %s182 = smul.addr %s181, 4
      %s183 = scalar_lea.vmem %s0, %s182
      %s184 = smul.u32 36, %s19
      %p185 = scmp.lt.s32.totalorder %s18, 1
      %s186 = scalar_select %p185, %s18, 1
      %p187 = scmp.lt.s32.totalorder %s184, 35
      %s188 = scalar_select %p187, %s184, 35
      %s189 = smul.addr %s186, 36
      %s190 = sadd.s32 %s188, %s189
      %s191 = smul.addr %s190, 4
      %s192 = scalar_lea.vmem %s3, %s191
      %s193 = smul.u32 36, %s19
      %v195 = vld [vmem:[%s183] sm:$0xf]
      %v196 = vld [vmem:[%s183 + $0x4] sm:$0xf]
      %v197 = vld [vmem:[%s183 + $0x8] sm:$0xf]
      %v198 = vld [vmem:[%s183 + $0xc] sm:$0xf]
      %v199 = vld [vmem:[%s183 + $0x10] sm:$0xf]
      %v200 = vld [vmem:[%s183 + $0x14] sm:$0xf]
      %v201 = vld [vmem:[%s183 + $0x18] sm:$0xf]
      %v202 = vld [vmem:[%s183 + $0x1c] sm:$0xf]
      %v203 = vld [vmem:[%s183 + $0x20] sm:$0xf]
      %v204 = vld [vmem:[%s183 + $0x24] sm:$0xf]
      %v205 = vld [vmem:[%s183 + $0x28] sm:$0xf]
      %v206 = vld [vmem:[%s183 + $0x2c] sm:$0xf]
      %v207 = vld [vmem:[%s183 + $0x30] sm:$0xf]
      %v208 = vld [vmem:[%s183 + $0x34] sm:$0xf]
      %v209 = vld [vmem:[%s183 + $0x38] sm:$0xf]
      %v210 = vld [vmem:[%s183 + $0x3c] sm:$0xf]
      %v211 = vld [vmem:[%s183 + $0x40] sm:$0xf]
      %v212 = vld [vmem:[%s183 + $0x44] sm:$0xf]
      %v213 = vld [vmem:[%s183 + $0x48] sm:$0xf]
      %v214 = vld [vmem:[%s183 + $0x4c] sm:$0xf]
      %v215 = vld [vmem:[%s183 + $0x50] sm:$0xf]
      %v216 = vld [vmem:[%s183 + $0x54] sm:$0xf]
      %v217 = vld [vmem:[%s183 + $0x58] sm:$0xf]
      %v218 = vld [vmem:[%s183 + $0x5c] sm:$0xf]
      %v219 = vld [vmem:[%s183 + $0x60] sm:$0xf]
      %v220 = vld [vmem:[%s183 + $0x64] sm:$0xf]
      %v221 = vld [vmem:[%s183 + $0x68] sm:$0xf]
      %v222 = vld [vmem:[%s183 + $0x6c] sm:$0xf]
      %v223 = vld [vmem:[%s183 + $0x70] sm:$0xf]
      %v224 = vld [vmem:[%s183 + $0x74] sm:$0xf]
      %v225 = vld [vmem:[%s183 + $0x78] sm:$0xf]
      %v226 = vld [vmem:[%s183 + $0x7c] sm:$0xf]
      %v227 = vld [vmem:[%s183 + $0x80] sm:$0xf]
      %v228 = vld [vmem:[%s183 + $0x84] sm:$0xf]
      %v229 = vld [vmem:[%s183 + $0x88] sm:$0xf]
      %v230 = vld [vmem:[%s183 + $0x8c] sm:$0xf]
      %v231 = vld [vmem:[%s1] sm:$0x3]
      %v232 = vld [vmem:[%s183 + $0x90] sm:$0x1]
      %s233 = scalar_lea.vmem %s1, 2
      %v234 = vld [vmem:[%s233] sm:$0x3]
      %v272 = vunpack.c.l.b16 %v195
      %v273 = vunpack.c.l.b16 %v196
      %v274 = vunpack.c.l.b16 %v197
      %v275 = vunpack.c.l.b16 %v198
      %v276 = vunpack.c.l.b16 %v199
      %v277 = vunpack.c.l.b16 %v200
      %v278 = vunpack.c.l.b16 %v201
      %v279 = vunpack.c.l.b16 %v202
      %v280 = vunpack.c.l.b16 %v203
      %v281 = vunpack.c.l.b16 %v204
      %v282 = vunpack.c.l.b16 %v205
      %v283 = vunpack.c.l.b16 %v206
      %v284 = vunpack.c.l.b16 %v207
      %v285 = vunpack.c.l.b16 %v208
      %v286 = vunpack.c.l.b16 %v209
      %v287 = vunpack.c.l.b16 %v210
      %v288 = vunpack.c.l.b16 %v211
      %v289 = vunpack.c.l.b16 %v212
      %v290 = vunpack.c.l.b16 %v213
      %v291 = vunpack.c.l.b16 %v214
      %v292 = vunpack.c.l.b16 %v215
      %v293 = vunpack.c.l.b16 %v216
      %v294 = vunpack.c.l.b16 %v217
      %v295 = vunpack.c.l.b16 %v218
      %v296 = vunpack.c.l.b16 %v219
      %v297 = vunpack.c.l.b16 %v220
      %v298 = vunpack.c.l.b16 %v221
      %v299 = vunpack.c.l.b16 %v222
      %v300 = vunpack.c.l.b16 %v223
      %v301 = vunpack.c.l.b16 %v224
      %v302 = vunpack.c.l.b16 %v225
      %v303 = vunpack.c.l.b16 %v226
      %v304 = vunpack.c.l.b16 %v227
      %v305 = vunpack.c.l.b16 %v228
      %v306 = vunpack.c.l.b16 %v229
      %v307 = vunpack.c.l.b16 %v230
      %v308 = vunpack.c.l.b16 %v232
      %v309 = vpack.c.b16 %v273, %v272
      %v310 = vpack.c.b16 %v275, %v274
      %v311 = vpack.c.b16 %v277, %v276
      %v312 = vpack.c.b16 %v279, %v278
      %v313 = vpack.c.b16 %v281, %v280
      %v314 = vpack.c.b16 %v283, %v282
      %v315 = vpack.c.b16 %v285, %v284
      %v316 = vpack.c.b16 %v287, %v286
      %v317 = vpack.c.b16 %v289, %v288
      %v318 = vpack.c.b16 %v291, %v290
      %v319 = vpack.c.b16 %v293, %v292
      %v320 = vpack.c.b16 %v295, %v294
      %v321 = vpack.c.b16 %v297, %v296
      %v322 = vpack.c.b16 %v299, %v298
      %v323 = vpack.c.b16 %v301, %v300
      %v324 = vpack.c.b16 %v303, %v302
      %v325 = vpack.c.b16 %v305, %v304
      %v326 = vpack.c.b16 %v307, %v306
      %v327 = vpack.c.b16 %v308, %v308
      %vm328 = vsmask.f32 7424
      %v330 = vshrl.u32 %v309, 16
      %v332 = vshll.u32 %v309, 16
      %v334 = vrot.slane %v332, 1
      %v335 = vor.u32 %v330, %v334
      %v337 = vshll.u32 %v310, 16
      %v339 = vrot.slane %v337, 1
      %v340 = vsel %vm328, %v335, %v339
      %v341 = vshrl.u32 %v310, 16
      %v343 = vor.u32 %v341, %v339
      %v345 = vshll.u32 %v311, 16
      %v347 = vrot.slane %v345, 1
      %v348 = vsel %vm328, %v343, %v347
      %v349 = vshrl.u32 %v311, 16
      %v351 = vor.u32 %v349, %v347
      %v353 = vshll.u32 %v312, 16
      %v355 = vrot.slane %v353, 1
      %v356 = vsel %vm328, %v351, %v355
      %v357 = vshrl.u32 %v312, 16
      %v359 = vor.u32 %v357, %v355
      %v361 = vshll.u32 %v313, 16
      %v363 = vrot.slane %v361, 1
      %v364 = vsel %vm328, %v359, %v363
      %v365 = vshrl.u32 %v313, 16
      %v367 = vor.u32 %v365, %v363
      %v369 = vshll.u32 %v314, 16
      %v371 = vrot.slane %v369, 1
      %v372 = vsel %vm328, %v367, %v371
      %v373 = vshrl.u32 %v314, 16
      %v375 = vor.u32 %v373, %v371
      %v377 = vshll.u32 %v315, 16
      %v379 = vrot.slane %v377, 1
      %v380 = vsel %vm328, %v375, %v379
      %v381 = vshrl.u32 %v315, 16
      %v383 = vor.u32 %v381, %v379
      %v385 = vshll.u32 %v316, 16
      %v387 = vrot.slane %v385, 1
      %v388 = vsel %vm328, %v383, %v387
      %v389 = vshrl.u32 %v316, 16
      %v391 = vor.u32 %v389, %v387
      %v393 = vshll.u32 %v317, 16
      %v395 = vrot.slane %v393, 1
      %v396 = vsel %vm328, %v391, %v395
      %v397 = vshrl.u32 %v317, 16
      %v399 = vor.u32 %v397, %v395
      %v401 = vshll.u32 %v318, 16
      %v403 = vrot.slane %v401, 1
      %v404 = vsel %vm328, %v399, %v403
      %v405 = vshrl.u32 %v318, 16
      %v407 = vor.u32 %v405, %v403
      %v409 = vshll.u32 %v319, 16
      %v411 = vrot.slane %v409, 1
      %v412 = vsel %vm328, %v407, %v411
      %v413 = vshrl.u32 %v319, 16
      %v415 = vor.u32 %v413, %v411
      %v417 = vshll.u32 %v320, 16
      %v419 = vrot.slane %v417, 1
      %v420 = vsel %vm328, %v415, %v419
      %v421 = vshrl.u32 %v320, 16
      %v423 = vor.u32 %v421, %v419
      %v425 = vshll.u32 %v321, 16
      %v427 = vrot.slane %v425, 1
      %v428 = vsel %vm328, %v423, %v427
      %v429 = vshrl.u32 %v321, 16
      %v431 = vor.u32 %v429, %v427
      %v433 = vshll.u32 %v322, 16
      %v435 = vrot.slane %v433, 1
      %v436 = vsel %vm328, %v431, %v435
      %v437 = vshrl.u32 %v322, 16
      %v439 = vor.u32 %v437, %v435
      %v441 = vshll.u32 %v323, 16
      %v443 = vrot.slane %v441, 1
      %v444 = vsel %vm328, %v439, %v443
      %v445 = vshrl.u32 %v323, 16
      %v447 = vor.u32 %v445, %v443
      %v449 = vshll.u32 %v324, 16
      %v451 = vrot.slane %v449, 1
      %v452 = vsel %vm328, %v447, %v451
      %v453 = vshrl.u32 %v324, 16
      %v455 = vor.u32 %v453, %v451
      %v457 = vshll.u32 %v325, 16
      %v459 = vrot.slane %v457, 1
      %v460 = vsel %vm328, %v455, %v459
      %v461 = vshrl.u32 %v325, 16
      %v463 = vor.u32 %v461, %v459
      %v465 = vshll.u32 %v326, 16
      %v467 = vrot.slane %v465, 1
      %v468 = vsel %vm328, %v463, %v467
      %v469 = vshrl.u32 %v326, 16
      %v471 = vor.u32 %v469, %v467
      %v473 = vshll.u32 %v327, 16
      %v475 = vrot.slane %v473, 1
      %v476 = vsel %vm328, %v471, %v475
      %vm477 = vcmask 23552
      %v479 = vsel %vm477, %v340, 0
      %v482 = vsel %vm477, %v348, 0
      %v485 = vsel %vm477, %v356, 0
      %v488 = vsel %vm477, %v364, 0
      %v491 = vsel %vm477, %v372, 0
      %v494 = vsel %vm477, %v380, 0
      %v497 = vsel %vm477, %v388, 0
      %v500 = vsel %vm477, %v396, 0
      %v503 = vsel %vm477, %v404, 0
      %v506 = vsel %vm477, %v412, 0
      %v509 = vsel %vm477, %v420, 0
      %v512 = vsel %vm477, %v428, 0
      %v515 = vsel %vm477, %v436, 0
      %v518 = vsel %vm477, %v444, 0
      %v521 = vsel %vm477, %v452, 0
      %v524 = vsel %vm477, %v460, 0
      %v527 = vsel %vm477, %v468, 0
      %v530 = vsel %vm477, %v476, 0
      %vm532 = vcmask 1040384
      %vm533 = vcmask 1041408
      %v534 = vsel %vm532, 4294967295, 65535
      %v535 = vsel %vm533, %v534, 0
      %v537 = vand.u32 %v234, %v535
      %539 = vmatprep.subr.bf16.mxu0 0
      %540 = vmatpush1.bf16.msra.mxu0 %v537
      %541 = vmatprep.subr.bf16.mxu0 0
      %542 = vmatpush1.bf16.msra.mxu0 0
      %543 = vmatprep.subr.bf16.mxu0 0
      %544 = vmatpush1.bf16.msra.mxu0 0
      %545 = vmatprep.subr.bf16.mxu0 0
      %546 = vmatpush1.bf16.msra.mxu0 0
      %547 = vmatprep.subr.bf16.mxu0 0
      %548 = vmatpush1.bf16.msra.mxu0 0
      %549 = vmatprep.subr.bf16.mxu0 0
      %550 = vmatpush1.bf16.msra.mxu0 0
      %551 = vmatprep.subr.bf16.mxu0 0
      %552 = vmatpush1.bf16.msra.mxu0 0
      %553 = vmatprep.subr.bf16.mxu0 0
      %554 = vmatpush1.bf16.msra.mxu0 0
      %555 = vmatprep.subr.bf16.mxu0 0
      %556 = vmatpush1.bf16.msra.mxu0 0
      %557 = vmatprep.subr.bf16.mxu0 0
      %558 = vmatpush1.bf16.msra.mxu0 0
      %559 = vmatprep.subr.bf16.mxu0 0
      %560 = vmatpush1.bf16.msra.mxu0 0
      %561 = vmatprep.subr.bf16.mxu0 0
      %562 = vmatpush1.bf16.msra.mxu0 0
      %563 = vmatprep.subr.bf16.mxu0 0
      %564 = vmatpush1.bf16.msra.mxu0 0
      %565 = vmatprep.subr.bf16.mxu0 0
      %566 = vmatpush1.bf16.msra.mxu0 0
      %567 = vmatprep.subr.bf16.mxu0 0
      %568 = vmatpush1.bf16.msra.mxu0 0
      %569 = vmatprep.subr.bf16.mxu0 0
      %570 = vmatpush1.bf16.msra.mxu0 0
      %571 = vmatprep.mubr.bf16.mxu0 0
      %572 = vmatmul.mubr.bf16.gmra.mrb[0].mxu0 %v479
      %v573 = vpop.f32.mrb[0].mxu0
      %v574 = vadd.f32 0.0, %v573
      %v575 = vpop.f32.mrb[0].mxu0
      %v576 = vpop.f32.mrb[0].mxu0
      %v577 = vadd.f32 0.0, %v576
      %v578 = vpop.f32.mrb[0].mxu0
      %579 = vmatprep.mubr.bf16.mxu0 0
      %580 = vmatmul.mubr.bf16.gmra.mrb[0].mxu0 %v482
      %v581 = vpop.f32.mrb[0].mxu0
      %v582 = vadd.f32 0.0, %v581
      %v583 = vpop.f32.mrb[0].mxu0
      %v584 = vpop.f32.mrb[0].mxu0
      %v585 = vadd.f32 0.0, %v584
      %v586 = vpop.f32.mrb[0].mxu0
      %587 = vmatprep.mubr.bf16.mxu0 0
      %588 = vmatmul.mubr.bf16.gmra.mrb[0].mxu0 %v485
      %v589 = vpop.f32.mrb[0].mxu0
      %v590 = vadd.f32 0.0, %v589
      %v591 = vpop.f32.mrb[0].mxu0
      %v592 = vpop.f32.mrb[0].mxu0
      %v593 = vadd.f32 0.0, %v592
      %v594 = vpop.f32.mrb[0].mxu0
      %595 = vmatprep.mubr.bf16.mxu0 0
      %596 = vmatmul.mubr.bf16.gmra.mrb[0].mxu0 %v488
      %v597 = vpop.f32.mrb[0].mxu0
      %v598 = vadd.f32 0.0, %v597
      %v599 = vpop.f32.mrb[0].mxu0
      %v600 = vpop.f32.mrb[0].mxu0
      %v601 = vadd.f32 0.0, %v600
      %v602 = vpop.f32.mrb[0].mxu0
      %603 = vmatprep.mubr.bf16.mxu0 0
      %604 = vmatmul.mubr.bf16.gmra.mrb[0].mxu0 %v491
      %v605 = vpop.f32.mrb[0].mxu0
      %v606 = vadd.f32 0.0, %v605
      %v607 = vpop.f32.mrb[0].mxu0
      %v608 = vpop.f32.mrb[0].mxu0
      %v609 = vadd.f32 0.0, %v608
      %v610 = vpop.f32.mrb[0].mxu0
      %611 = vmatprep.mubr.bf16.mxu0 0
      %612 = vmatmul.mubr.bf16.gmra.mrb[0].mxu0 %v494
      %v613 = vpop.f32.mrb[0].mxu0
      %v614 = vadd.f32 0.0, %v613
      %v615 = vpop.f32.mrb[0].mxu0
      %v616 = vpop.f32.mrb[0].mxu0
      %v617 = vadd.f32 0.0, %v616
      %v618 = vpop.f32.mrb[0].mxu0
      %619 = vmatprep.mubr.bf16.mxu0 0
      %620 = vmatmul.mubr.bf16.gmra.mrb[0].mxu0 %v497
      %v621 = vpop.f32.mrb[0].mxu0
      %v622 = vadd.f32 0.0, %v621
      %v623 = vpop.f32.mrb[0].mxu0
      %v624 = vpop.f32.mrb[0].mxu0
      %v625 = vadd.f32 0.0, %v624
      %v626 = vpop.f32.mrb[0].mxu0
      %627 = vmatprep.mubr.bf16.mxu0 0
      %628 = vmatmul.mubr.bf16.gmra.mrb[0].mxu0 %v500
      %v629 = vpop.f32.mrb[0].mxu0
      %v630 = vadd.f32 0.0, %v629
      %v631 = vpop.f32.mrb[0].mxu0
      %v632 = vpop.f32.mrb[0].mxu0
      %v633 = vadd.f32 0.0, %v632
      %v634 = vpop.f32.mrb[0].mxu0
      %635 = vmatprep.mubr.bf16.mxu0 0
      %636 = vmatmul.mubr.bf16.gmra.mrb[0].mxu0 %v503
      %v637 = vpop.f32.mrb[0].mxu0
      %v638 = vadd.f32 0.0, %v637
      %v639 = vpop.f32.mrb[0].mxu0
      %v640 = vpop.f32.mrb[0].mxu0
      %v641 = vadd.f32 0.0, %v640
      %v642 = vpop.f32.mrb[0].mxu0
      %643 = vmatprep.mubr.bf16.mxu0 0
      %644 = vmatmul.mubr.bf16.gmra.mrb[0].mxu0 %v506
      %v645 = vpop.f32.mrb[0].mxu0
      %v646 = vadd.f32 0.0, %v645
      %v647 = vpop.f32.mrb[0].mxu0
      %v648 = vpop.f32.mrb[0].mxu0
      %v649 = vadd.f32 0.0, %v648
      %v650 = vpop.f32.mrb[0].mxu0
      %651 = vmatprep.mubr.bf16.mxu0 0
      %652 = vmatmul.mubr.bf16.gmra.mrb[0].mxu0 %v509
      %v653 = vpop.f32.mrb[0].mxu0
      %v654 = vadd.f32 0.0, %v653
      %v655 = vpop.f32.mrb[0].mxu0
      %v656 = vpop.f32.mrb[0].mxu0
      %v657 = vadd.f32 0.0, %v656
      %v658 = vpop.f32.mrb[0].mxu0
      %659 = vmatprep.mubr.bf16.mxu0 0
      %660 = vmatmul.mubr.bf16.gmra.mrb[0].mxu0 %v512
      %v661 = vpop.f32.mrb[0].mxu0
      %v662 = vadd.f32 0.0, %v661
      %v663 = vpop.f32.mrb[0].mxu0
      %v664 = vpop.f32.mrb[0].mxu0
      %v665 = vadd.f32 0.0, %v664
      %v666 = vpop.f32.mrb[0].mxu0
      %667 = vmatprep.mubr.bf16.mxu0 0
      %668 = vmatmul.mubr.bf16.gmra.mrb[0].mxu0 %v515
      %v669 = vpop.f32.mrb[0].mxu0
      %v670 = vadd.f32 0.0, %v669
      %v671 = vpop.f32.mrb[0].mxu0
      %v672 = vpop.f32.mrb[0].mxu0
      %v673 = vadd.f32 0.0, %v672
      %v674 = vpop.f32.mrb[0].mxu0
      %675 = vmatprep.mubr.bf16.mxu0 0
      %676 = vmatmul.mubr.bf16.gmra.mrb[0].mxu0 %v518
      %v677 = vpop.f32.mrb[0].mxu0
      %v678 = vadd.f32 0.0, %v677
      %v679 = vpop.f32.mrb[0].mxu0
      %v680 = vpop.f32.mrb[0].mxu0
      %v681 = vadd.f32 0.0, %v680
      %v682 = vpop.f32.mrb[0].mxu0
      %683 = vmatprep.mubr.bf16.mxu0 0
      %684 = vmatmul.mubr.bf16.gmra.mrb[0].mxu0 %v521
      %v685 = vpop.f32.mrb[0].mxu0
      %v686 = vadd.f32 0.0, %v685
      %v687 = vpop.f32.mrb[0].mxu0
      %v688 = vpop.f32.mrb[0].mxu0
      %v689 = vadd.f32 0.0, %v688
      %v690 = vpop.f32.mrb[0].mxu0
      %691 = vmatprep.mubr.bf16.mxu0 0
      %692 = vmatmul.mubr.bf16.gmra.mrb[0].mxu0 %v524
      %v693 = vpop.f32.mrb[0].mxu0
      %v694 = vadd.f32 0.0, %v693
      %v695 = vpop.f32.mrb[0].mxu0
      %v696 = vpop.f32.mrb[0].mxu0
      %v697 = vadd.f32 0.0, %v696
      %v698 = vpop.f32.mrb[0].mxu0
      %699 = vmatprep.mubr.bf16.mxu0 0
      %700 = vmatmul.mubr.bf16.gmra.mrb[0].mxu0 %v527
      %v701 = vpop.f32.mrb[0].mxu0
      %v702 = vadd.f32 0.0, %v701
      %v703 = vpop.f32.mrb[0].mxu0
      %v704 = vpop.f32.mrb[0].mxu0
      %v705 = vadd.f32 0.0, %v704
      %v706 = vpop.f32.mrb[0].mxu0
      %707 = vmatprep.mubr.bf16.mxu0 0
      %708 = vmatmul.mubr.bf16.gmra.mrb[0].mxu0 %v530
      %v709 = vpop.f32.mrb[0].mxu0
      %v710 = vadd.f32 0.0, %v709
      %v711 = vpop.f32.mrb[0].mxu0
      %v712 = vpop.f32.mrb[0].mxu0
      %v713 = vadd.f32 0.0, %v712
      %v714 = vpop.f32.mrb[0].mxu0
      %715 = vdwg.mxu0
      %v716 = vsel %vm477, %v309, 0
      %v718 = vsel %vm477, %v310, 0
      %v720 = vsel %vm477, %v311, 0
      %v722 = vsel %vm477, %v312, 0
      %v724 = vsel %vm477, %v313, 0
      %v726 = vsel %vm477, %v314, 0
      %v728 = vsel %vm477, %v315, 0
      %v730 = vsel %vm477, %v316, 0
      %v732 = vsel %vm477, %v317, 0
      %v734 = vsel %vm477, %v318, 0
      %v736 = vsel %vm477, %v319, 0
      %v738 = vsel %vm477, %v320, 0
      %v740 = vsel %vm477, %v321, 0
      %v742 = vsel %vm477, %v322, 0
      %v744 = vsel %vm477, %v323, 0
      %v746 = vsel %vm477, %v324, 0
      %v748 = vsel %vm477, %v325, 0
      %v750 = vsel %vm477, %v326, 0
      %v753 = vand.u32 %v231, %v535
      %755 = vmatprep.subr.bf16.mxu0 0
      %756 = vmatpush1.bf16.msra.mxu0 %v753
      %757 = vmatprep.subr.bf16.mxu0 0
      %758 = vmatpush1.bf16.msra.mxu0 0
      %759 = vmatprep.subr.bf16.mxu0 0
      %760 = vmatpush1.bf16.msra.mxu0 0
      %761 = vmatprep.subr.bf16.mxu0 0
      %762 = vmatpush1.bf16.msra.mxu0 0
      %763 = vmatprep.subr.bf16.mxu0 0
      %764 = vmatpush1.bf16.msra.mxu0 0
      %765 = vmatprep.subr.bf16.mxu0 0
      %766 = vmatpush1.bf16.msra.mxu0 0
      %767 = vmatprep.subr.bf16.mxu0 0
      %768 = vmatpush1.bf16.msra.mxu0 0
      %769 = vmatprep.subr.bf16.mxu0 0
      %770 = vmatpush1.bf16.msra.mxu0 0
      %771 = vmatprep.subr.bf16.mxu0 0
      %772 = vmatpush1.bf16.msra.mxu0 0
      %773 = vmatprep.subr.bf16.mxu0 0
      %774 = vmatpush1.bf16.msra.mxu0 0
      %775 = vmatprep.subr.bf16.mxu0 0
      %776 = vmatpush1.bf16.msra.mxu0 0
      %777 = vmatprep.subr.bf16.mxu0 0
      %778 = vmatpush1.bf16.msra.mxu0 0
      %779 = vmatprep.subr.bf16.mxu0 0
      %780 = vmatpush1.bf16.msra.mxu0 0
      %781 = vmatprep.subr.bf16.mxu0 0
      %782 = vmatpush1.bf16.msra.mxu0 0
      %783 = vmatprep.subr.bf16.mxu0 0
      %784 = vmatpush1.bf16.msra.mxu0 0
      %785 = vmatprep.subr.bf16.mxu0 0
      %786 = vmatpush1.bf16.msra.mxu0 0
      %787 = vmatprep.mubr.bf16.mxu0 0
      %788 = vmatmul.mubr.bf16.gmra.mrb[0].mxu0 %v716
      %v789 = vpop.f32.mrb[0].mxu0
      %v790 = vadd.f32 %v574, %v789
      %v791 = vpop.f32.mrb[0].mxu0
      %v792 = vpop.f32.mrb[0].mxu0
      %v793 = vadd.f32 %v577, %v792
      %v794 = vpop.f32.mrb[0].mxu0
      %795 = vmatprep.mubr.bf16.mxu0 0
      %796 = vmatmul.mubr.bf16.gmra.mrb[0].mxu0 %v718
      %v797 = vpop.f32.mrb[0].mxu0
      %v798 = vadd.f32 %v582, %v797
      %v799 = vpop.f32.mrb[0].mxu0
      %v800 = vpop.f32.mrb[0].mxu0
      %v801 = vadd.f32 %v585, %v800
      %v802 = vpop.f32.mrb[0].mxu0
      %803 = vmatprep.mubr.bf16.mxu0 0
      %804 = vmatmul.mubr.bf16.gmra.mrb[0].mxu0 %v720
      %v805 = vpop.f32.mrb[0].mxu0
      %v806 = vadd.f32 %v590, %v805
      %v807 = vpop.f32.mrb[0].mxu0
      %v808 = vpop.f32.mrb[0].mxu0
      %v809 = vadd.f32 %v593, %v808
      %v810 = vpop.f32.mrb[0].mxu0
      %811 = vmatprep.mubr.bf16.mxu0 0
      %812 = vmatmul.mubr.bf16.gmra.mrb[0].mxu0 %v722
      %v813 = vpop.f32.mrb[0].mxu0
      %v814 = vadd.f32 %v598, %v813
      %v815 = vpop.f32.mrb[0].mxu0
      %v816 = vpop.f32.mrb[0].mxu0
      %v817 = vadd.f32 %v601, %v816
      %v818 = vpop.f32.mrb[0].mxu0
      %819 = vmatprep.mubr.bf16.mxu0 0
      %820 = vmatmul.mubr.bf16.gmra.mrb[0].mxu0 %v724
      %v821 = vpop.f32.mrb[0].mxu0
      %v822 = vadd.f32 %v606, %v821
      %v823 = vpop.f32.mrb[0].mxu0
      %v824 = vpop.f32.mrb[0].mxu0
      %v825 = vadd.f32 %v609, %v824
      %v826 = vpop.f32.mrb[0].mxu0
      %827 = vmatprep.mubr.bf16.mxu0 0
      %828 = vmatmul.mubr.bf16.gmra.mrb[0].mxu0 %v726
      %v829 = vpop.f32.mrb[0].mxu0
      %v830 = vadd.f32 %v614, %v829
      %v831 = vpop.f32.mrb[0].mxu0
      %v832 = vpop.f32.mrb[0].mxu0
      %v833 = vadd.f32 %v617, %v832
      %v834 = vpop.f32.mrb[0].mxu0
      %835 = vmatprep.mubr.bf16.mxu0 0
      %836 = vmatmul.mubr.bf16.gmra.mrb[0].mxu0 %v728
      %v837 = vpop.f32.mrb[0].mxu0
      %v838 = vadd.f32 %v622, %v837
      %v839 = vpop.f32.mrb[0].mxu0
      %v840 = vpop.f32.mrb[0].mxu0
      %v841 = vadd.f32 %v625, %v840
      %v842 = vpop.f32.mrb[0].mxu0
      %843 = vmatprep.mubr.bf16.mxu0 0
      %844 = vmatmul.mubr.bf16.gmra.mrb[0].mxu0 %v730
      %v845 = vpop.f32.mrb[0].mxu0
      %v846 = vadd.f32 %v630, %v845
      %v847 = vpop.f32.mrb[0].mxu0
      %v848 = vpop.f32.mrb[0].mxu0
      %v849 = vadd.f32 %v633, %v848
      %v850 = vpop.f32.mrb[0].mxu0
      %851 = vmatprep.mubr.bf16.mxu0 0
      %852 = vmatmul.mubr.bf16.gmra.mrb[0].mxu0 %v732
      %v853 = vpop.f32.mrb[0].mxu0
      %v854 = vadd.f32 %v638, %v853
      %v855 = vpop.f32.mrb[0].mxu0
      %v856 = vpop.f32.mrb[0].mxu0
      %v857 = vadd.f32 %v641, %v856
      %v858 = vpop.f32.mrb[0].mxu0
      %859 = vmatprep.mubr.bf16.mxu0 0
      %860 = vmatmul.mubr.bf16.gmra.mrb[0].mxu0 %v734
      %v861 = vpop.f32.mrb[0].mxu0
      %v862 = vadd.f32 %v646, %v861
      %v863 = vpop.f32.mrb[0].mxu0
      %v864 = vpop.f32.mrb[0].mxu0
      %v865 = vadd.f32 %v649, %v864
      %v866 = vpop.f32.mrb[0].mxu0
      %867 = vmatprep.mubr.bf16.mxu0 0
      %868 = vmatmul.mubr.bf16.gmra.mrb[0].mxu0 %v736
      %v869 = vpop.f32.mrb[0].mxu0
      %v870 = vadd.f32 %v654, %v869
      %v871 = vpop.f32.mrb[0].mxu0
      %v872 = vpop.f32.mrb[0].mxu0
      %v873 = vadd.f32 %v657, %v872
      %v874 = vpop.f32.mrb[0].mxu0
      %875 = vmatprep.mubr.bf16.mxu0 0
      %876 = vmatmul.mubr.bf16.gmra.mrb[0].mxu0 %v738
      %v877 = vpop.f32.mrb[0].mxu0
      %v878 = vadd.f32 %v662, %v877
      %v879 = vpop.f32.mrb[0].mxu0
      %v880 = vpop.f32.mrb[0].mxu0
      %v881 = vadd.f32 %v665, %v880
      %v882 = vpop.f32.mrb[0].mxu0
      %883 = vmatprep.mubr.bf16.mxu0 0
      %884 = vmatmul.mubr.bf16.gmra.mrb[0].mxu0 %v740
      %v885 = vpop.f32.mrb[0].mxu0
      %v886 = vadd.f32 %v670, %v885
      %v887 = vpop.f32.mrb[0].mxu0
      %v888 = vpop.f32.mrb[0].mxu0
      %v889 = vadd.f32 %v673, %v888
      %v890 = vpop.f32.mrb[0].mxu0
      %891 = vmatprep.mubr.bf16.mxu0 0
      %892 = vmatmul.mubr.bf16.gmra.mrb[0].mxu0 %v742
      %v893 = vpop.f32.mrb[0].mxu0
      %v894 = vadd.f32 %v678, %v893
      %v895 = vpop.f32.mrb[0].mxu0
      %v896 = vpop.f32.mrb[0].mxu0
      %v897 = vadd.f32 %v681, %v896
      %v898 = vpop.f32.mrb[0].mxu0
      %899 = vmatprep.mubr.bf16.mxu0 0
      %900 = vmatmul.mubr.bf16.gmra.mrb[0].mxu0 %v744
      %v901 = vpop.f32.mrb[0].mxu0
      %v902 = vadd.f32 %v686, %v901
      %v903 = vpop.f32.mrb[0].mxu0
      %v904 = vpop.f32.mrb[0].mxu0
      %v905 = vadd.f32 %v689, %v904
      %v906 = vpop.f32.mrb[0].mxu0
      %907 = vmatprep.mubr.bf16.mxu0 0
      %908 = vmatmul.mubr.bf16.gmra.mrb[0].mxu0 %v746
      %v909 = vpop.f32.mrb[0].mxu0
      %v910 = vadd.f32 %v694, %v909
      %v911 = vpop.f32.mrb[0].mxu0
      %v912 = vpop.f32.mrb[0].mxu0
      %v913 = vadd.f32 %v697, %v912
      %v914 = vpop.f32.mrb[0].mxu0
      %915 = vmatprep.mubr.bf16.mxu0 0
      %916 = vmatmul.mubr.bf16.gmra.mrb[0].mxu0 %v748
      %v917 = vpop.f32.mrb[0].mxu0
      %v918 = vadd.f32 %v702, %v917
      %v919 = vpop.f32.mrb[0].mxu0
      %v920 = vpop.f32.mrb[0].mxu0
      %v921 = vadd.f32 %v705, %v920
      %v922 = vpop.f32.mrb[0].mxu0
      %923 = vmatprep.mubr.bf16.mxu0 0
      %924 = vmatmul.mubr.bf16.gmra.mrb[0].mxu0 %v750
      %v925 = vpop.f32.mrb[0].mxu0
      %v926 = vadd.f32 %v710, %v925
      %v927 = vpop.f32.mrb[0].mxu0
      %v928 = vpop.f32.mrb[0].mxu0
      %v929 = vadd.f32 %v713, %v928
      %v930 = vpop.f32.mrb[0].mxu0
      %931 = vdwg.mxu0
      %v932 = vld [vmem:[%s183] sm:$0xe]
      %s933 = scalar_lea.vmem %s1, 4
      %v934 = vld [vmem:[%s933] sm:$0x3]
      %v936 = vunpack.c.l.b16 %v932
      %v937 = vpack.c.b16 %v273, %v936
      %vm938 = vcmask 1046528
      %v939 = vrot.slane %v937, 1
      %v940 = vrot.slane %v310, 1
      %v941 = vsel %vm938, %v939, %v940
      %v942 = vrot.slane %v311, 1
      %v943 = vsel %vm938, %v940, %v942
      %v944 = vrot.slane %v312, 1
      %v945 = vsel %vm938, %v942, %v944
      %v946 = vrot.slane %v313, 1
      %v947 = vsel %vm938, %v944, %v946
      %v948 = vrot.slane %v314, 1
      %v949 = vsel %vm938, %v946, %v948
      %v950 = vrot.slane %v315, 1
      %v951 = vsel %vm938, %v948, %v950
      %v952 = vrot.slane %v316, 1
      %v953 = vsel %vm938, %v950, %v952
      %v954 = vrot.slane %v317, 1
      %v955 = vsel %vm938, %v952, %v954
      %v956 = vrot.slane %v318, 1
      %v957 = vsel %vm938, %v954, %v956
      %v958 = vrot.slane %v319, 1
      %v959 = vsel %vm938, %v956, %v958
      %v960 = vrot.slane %v320, 1
      %v961 = vsel %vm938, %v958, %v960
      %v962 = vrot.slane %v321, 1
      %v963 = vsel %vm938, %v960, %v962
      %v964 = vrot.slane %v322, 1
      %v965 = vsel %vm938, %v962, %v964
      %v966 = vrot.slane %v323, 1
      %v967 = vsel %vm938, %v964, %v966
      %v968 = vrot.slane %v324, 1
      %v969 = vsel %vm938, %v966, %v968
      %v970 = vrot.slane %v325, 1
      %v971 = vsel %vm938, %v968, %v970
      %v972 = vrot.slane %v326, 1
      %v973 = vsel %vm938, %v970, %v972
      %v974 = vrot.slane %v327, 1
      %v975 = vsel %vm938, %v972, %v974
      %v977 = vsel %vm477, %v941, 0
      %v980 = vsel %vm477, %v943, 0
      %v983 = vsel %vm477, %v945, 0
      %v986 = vsel %vm477, %v947, 0
      %v989 = vsel %vm477, %v949, 0
      %v992 = vsel %vm477, %v951, 0
      %v995 = vsel %vm477, %v953, 0
      %v998 = vsel %vm477, %v955, 0
      %v1001 = vsel %vm477, %v957, 0
      %v1004 = vsel %vm477, %v959, 0
      %v1007 = vsel %vm477, %v961, 0
      %v1010 = vsel %vm477, %v963, 0
      %v1013 = vsel %vm477, %v965, 0
      %v1016 = vsel %vm477, %v967, 0
      %v1019 = vsel %vm477, %v969, 0
      %v1022 = vsel %vm477, %v971, 0
      %v1025 = vsel %vm477, %v973, 0
      %v1028 = vsel %vm477, %v975, 0
      %v1031 = vand.u32 %v934, %v535
      %1033 = vmatprep.subr.bf16.mxu0 0
      %1034 = vmatpush1.bf16.msra.mxu0 %v1031
      %1035 = vmatprep.subr.bf16.mxu0 0
      %1036 = vmatpush1.bf16.msra.mxu0 0
      %1037 = vmatprep.subr.bf16.mxu0 0
      %1038 = vmatpush1.bf16.msra.mxu0 0
      %1039 = vmatprep.subr.bf16.mxu0 0
      %1040 = vmatpush1.bf16.msra.mxu0 0
      %1041 = vmatprep.subr.bf16.mxu0 0
      %1042 = vmatpush1.bf16.msra.mxu0 0
      %1043 = vmatprep.subr.bf16.mxu0 0
      %1044 = vmatpush1.bf16.msra.mxu0 0
      %1045 = vmatprep.subr.bf16.mxu0 0
      %1046 = vmatpush1.bf16.msra.mxu0 0
      %1047 = vmatprep.subr.bf16.mxu0 0
      %1048 = vmatpush1.bf16.msra.mxu0 0
      %1049 = vmatprep.subr.bf16.mxu0 0
      %1050 = vmatpush1.bf16.msra.mxu0 0
      %1051 = vmatprep.subr.bf16.mxu0 0
      %1052 = vmatpush1.bf16.msra.mxu0 0
      %1053 = vmatprep.subr.bf16.mxu0 0
      %1054 = vmatpush1.bf16.msra.mxu0 0
      %1055 = vmatprep.subr.bf16.mxu0 0
      %1056 = vmatpush1.bf16.msra.mxu0 0
      %1057 = vmatprep.subr.bf16.mxu0 0
      %1058 = vmatpush1.bf16.msra.mxu0 0
      %1059 = vmatprep.subr.bf16.mxu0 0
      %1060 = vmatpush1.bf16.msra.mxu0 0
      %1061 = vmatprep.subr.bf16.mxu0 0
      %1062 = vmatpush1.bf16.msra.mxu0 0
      %1063 = vmatprep.subr.bf16.mxu0 0
      %1064 = vmatpush1.bf16.msra.mxu0 0
      %1065 = vmatprep.mubr.bf16.mxu0 0
      %1066 = vmatmul.mubr.bf16.gmra.mrb[0].mxu0 %v977
      %v1067 = vpop.f32.mrb[0].mxu0
      %v1068 = vadd.f32 0.0, %v1067
      %v1069 = vpop.f32.mrb[0].mxu0
      %v1070 = vpop.f32.mrb[0].mxu0
      %v1071 = vadd.f32 0.0, %v1070
      %v1072 = vpop.f32.mrb[0].mxu0
      %1073 = vmatprep.mubr.bf16.mxu0 0
      %1074 = vmatmul.mubr.bf16.gmra.mrb[0].mxu0 %v980
      %v1075 = vpop.f32.mrb[0].mxu0
      %v1076 = vadd.f32 0.0, %v1075
      %v1077 = vpop.f32.mrb[0].mxu0
      %v1078 = vpop.f32.mrb[0].mxu0
      %v1079 = vadd.f32 0.0, %v1078
      %v1080 = vpop.f32.mrb[0].mxu0
      %1081 = vmatprep.mubr.bf16.mxu0 0
      %1082 = vmatmul.mubr.bf16.gmra.mrb[0].mxu0 %v983
      %v1083 = vpop.f32.mrb[0].mxu0
      %v1084 = vadd.f32 0.0, %v1083
      %v1085 = vpop.f32.mrb[0].mxu0
      %v1086 = vpop.f32.mrb[0].mxu0
      %v1087 = vadd.f32 0.0, %v1086
      %v1088 = vpop.f32.mrb[0].mxu0
      %1089 = vmatprep.mubr.bf16.mxu0 0
      %1090 = vmatmul.mubr.bf16.gmra.mrb[0].mxu0 %v986
      %v1091 = vpop.f32.mrb[0].mxu0
      %v1092 = vadd.f32 0.0, %v1091
      %v1093 = vpop.f32.mrb[0].mxu0
      %v1094 = vpop.f32.mrb[0].mxu0
      %v1095 = vadd.f32 0.0, %v1094
      %v1096 = vpop.f32.mrb[0].mxu0
      %1097 = vmatprep.mubr.bf16.mxu0 0
      %1098 = vmatmul.mubr.bf16.gmra.mrb[0].mxu0 %v989
      %v1099 = vpop.f32.mrb[0].mxu0
      %v1100 = vadd.f32 0.0, %v1099
      %v1101 = vpop.f32.mrb[0].mxu0
      %v1102 = vpop.f32.mrb[0].mxu0
      %v1103 = vadd.f32 0.0, %v1102
      %v1104 = vpop.f32.mrb[0].mxu0
      %1105 = vmatprep.mubr.bf16.mxu0 0
      %1106 = vmatmul.mubr.bf16.gmra.mrb[0].mxu0 %v992
      %v1107 = vpop.f32.mrb[0].mxu0
      %v1108 = vadd.f32 0.0, %v1107
      %v1109 = vpop.f32.mrb[0].mxu0
      %v1110 = vpop.f32.mrb[0].mxu0
      %v1111 = vadd.f32 0.0, %v1110
      %v1112 = vpop.f32.mrb[0].mxu0
      %1113 = vmatprep.mubr.bf16.mxu0 0
      %1114 = vmatmul.mubr.bf16.gmra.mrb[0].mxu0 %v995
      %v1115 = vpop.f32.mrb[0].mxu0
      %v1116 = vadd.f32 0.0, %v1115
      %v1117 = vpop.f32.mrb[0].mxu0
      %v1118 = vpop.f32.mrb[0].mxu0
      %v1119 = vadd.f32 0.0, %v1118
      %v1120 = vpop.f32.mrb[0].mxu0
      %1121 = vmatprep.mubr.bf16.mxu0 0
      %1122 = vmatmul.mubr.bf16.gmra.mrb[0].mxu0 %v998
      %v1123 = vpop.f32.mrb[0].mxu0
      %v1124 = vadd.f32 0.0, %v1123
      %v1125 = vpop.f32.mrb[0].mxu0
      %v1126 = vpop.f32.mrb[0].mxu0
      %v1127 = vadd.f32 0.0, %v1126
      %v1128 = vpop.f32.mrb[0].mxu0
      %1129 = vmatprep.mubr.bf16.mxu0 0
      %1130 = vmatmul.mubr.bf16.gmra.mrb[0].mxu0 %v1001
      %v1131 = vpop.f32.mrb[0].mxu0
      %v1132 = vadd.f32 0.0, %v1131
      %v1133 = vpop.f32.mrb[0].mxu0
      %v1134 = vpop.f32.mrb[0].mxu0
      %v1135 = vadd.f32 0.0, %v1134
      %v1136 = vpop.f32.mrb[0].mxu0
      %1137 = vmatprep.mubr.bf16.mxu0 0
      %1138 = vmatmul.mubr.bf16.gmra.mrb[0].mxu0 %v1004
      %v1139 = vpop.f32.mrb[0].mxu0
      %v1140 = vadd.f32 0.0, %v1139
      %v1141 = vpop.f32.mrb[0].mxu0
      %v1142 = vpop.f32.mrb[0].mxu0
      %v1143 = vadd.f32 0.0, %v1142
      %v1144 = vpop.f32.mrb[0].mxu0
      %1145 = vmatprep.mubr.bf16.mxu0 0
      %1146 = vmatmul.mubr.bf16.gmra.mrb[0].mxu0 %v1007
      %v1147 = vpop.f32.mrb[0].mxu0
      %v1148 = vadd.f32 0.0, %v1147
      %v1149 = vpop.f32.mrb[0].mxu0
      %v1150 = vpop.f32.mrb[0].mxu0
      %v1151 = vadd.f32 0.0, %v1150
      %v1152 = vpop.f32.mrb[0].mxu0
      %1153 = vmatprep.mubr.bf16.mxu0 0
      %1154 = vmatmul.mubr.bf16.gmra.mrb[0].mxu0 %v1010
      %v1155 = vpop.f32.mrb[0].mxu0
      %v1156 = vadd.f32 0.0, %v1155
      %v1157 = vpop.f32.mrb[0].mxu0
      %v1158 = vpop.f32.mrb[0].mxu0
      %v1159 = vadd.f32 0.0, %v1158
      %v1160 = vpop.f32.mrb[0].mxu0
      %1161 = vmatprep.mubr.bf16.mxu0 0
      %1162 = vmatmul.mubr.bf16.gmra.mrb[0].mxu0 %v1013
      %v1163 = vpop.f32.mrb[0].mxu0
      %v1164 = vadd.f32 0.0, %v1163
      %v1165 = vpop.f32.mrb[0].mxu0
      %v1166 = vpop.f32.mrb[0].mxu0
      %v1167 = vadd.f32 0.0, %v1166
      %v1168 = vpop.f32.mrb[0].mxu0
      %1169 = vmatprep.mubr.bf16.mxu0 0
      %1170 = vmatmul.mubr.bf16.gmra.mrb[0].mxu0 %v1016
      %v1171 = vpop.f32.mrb[0].mxu0
      %v1172 = vadd.f32 0.0, %v1171
      %v1173 = vpop.f32.mrb[0].mxu0
      %v1174 = vpop.f32.mrb[0].mxu0
      %v1175 = vadd.f32 0.0, %v1174
      %v1176 = vpop.f32.mrb[0].mxu0
      %1177 = vmatprep.mubr.bf16.mxu0 0
      %1178 = vmatmul.mubr.bf16.gmra.mrb[0].mxu0 %v1019
      %v1179 = vpop.f32.mrb[0].mxu0
      %v1180 = vadd.f32 0.0, %v1179
      %v1181 = vpop.f32.mrb[0].mxu0
      %v1182 = vpop.f32.mrb[0].mxu0
      %v1183 = vadd.f32 0.0, %v1182
      %v1184 = vpop.f32.mrb[0].mxu0
      %1185 = vmatprep.mubr.bf16.mxu0 0
      %1186 = vmatmul.mubr.bf16.gmra.mrb[0].mxu0 %v1022
      %v1187 = vpop.f32.mrb[0].mxu0
      %v1188 = vadd.f32 0.0, %v1187
      %v1189 = vpop.f32.mrb[0].mxu0
      %v1190 = vpop.f32.mrb[0].mxu0
      %v1191 = vadd.f32 0.0, %v1190
      %v1192 = vpop.f32.mrb[0].mxu0
      %1193 = vmatprep.mubr.bf16.mxu0 0
      %1194 = vmatmul.mubr.bf16.gmra.mrb[0].mxu0 %v1025
      %v1195 = vpop.f32.mrb[0].mxu0
      %v1196 = vadd.f32 0.0, %v1195
      %v1197 = vpop.f32.mrb[0].mxu0
      %v1198 = vpop.f32.mrb[0].mxu0
      %v1199 = vadd.f32 0.0, %v1198
      %v1200 = vpop.f32.mrb[0].mxu0
      %1201 = vmatprep.mubr.bf16.mxu0 0
      %1202 = vmatmul.mubr.bf16.gmra.mrb[0].mxu0 %v1028
      %v1203 = vpop.f32.mrb[0].mxu0
      %v1204 = vadd.f32 0.0, %v1203
      %v1205 = vpop.f32.mrb[0].mxu0
      %v1206 = vpop.f32.mrb[0].mxu0
      %v1207 = vadd.f32 0.0, %v1206
      %v1208 = vpop.f32.mrb[0].mxu0
      %1209 = vdwg.mxu0
      %v1210 = vadd.f32 %v790, %v1068
      %v1211 = vadd.f32 %v793, %v1071
      %v1212 = vadd.f32 %v798, %v1076
      %v1213 = vadd.f32 %v801, %v1079
      %v1214 = vadd.f32 %v806, %v1084
      %v1215 = vadd.f32 %v809, %v1087
      %v1216 = vadd.f32 %v814, %v1092
      %v1217 = vadd.f32 %v817, %v1095
      %v1218 = vadd.f32 %v822, %v1100
      %v1219 = vadd.f32 %v825, %v1103
      %v1220 = vadd.f32 %v830, %v1108
      %v1221 = vadd.f32 %v833, %v1111
      %v1222 = vadd.f32 %v838, %v1116
      %v1223 = vadd.f32 %v841, %v1119
      %v1224 = vadd.f32 %v846, %v1124
      %v1225 = vadd.f32 %v849, %v1127
      %v1226 = vadd.f32 %v854, %v1132
      %v1227 = vadd.f32 %v857, %v1135
      %v1228 = vadd.f32 %v862, %v1140
      %v1229 = vadd.f32 %v865, %v1143
      %v1230 = vadd.f32 %v870, %v1148
      %v1231 = vadd.f32 %v873, %v1151
      %v1232 = vadd.f32 %v878, %v1156
      %v1233 = vadd.f32 %v881, %v1159
      %v1234 = vadd.f32 %v886, %v1164
      %v1235 = vadd.f32 %v889, %v1167
      %v1236 = vadd.f32 %v894, %v1172
      %v1237 = vadd.f32 %v897, %v1175
      %v1238 = vadd.f32 %v902, %v1180
      %v1239 = vadd.f32 %v905, %v1183
      %v1240 = vadd.f32 %v910, %v1188
      %v1241 = vadd.f32 %v913, %v1191
      %v1242 = vadd.f32 %v918, %v1196
      %v1243 = vadd.f32 %v921, %v1199
      %v1244 = vadd.f32 %v926, %v1204
      %v1245 = vadd.f32 %v929, %v1207
      %v1246 = vld [vmem:[%s183 + $0x8] sm:$0xe]
      %v1247 = vld [vmem:[%s183 + $0xc] sm:$0xf]
      %v1248 = vld [vmem:[%s183 + $0x10] sm:$0xf]
      %v1249 = vld [vmem:[%s183 + $0x14] sm:$0xf]
      %v1250 = vld [vmem:[%s183 + $0x18] sm:$0xf]
      %v1251 = vld [vmem:[%s183 + $0x1c] sm:$0xf]
      %v1252 = vld [vmem:[%s183 + $0x20] sm:$0xf]
      %v1253 = vld [vmem:[%s183 + $0x24] sm:$0xf]
      %v1254 = vld [vmem:[%s183 + $0x28] sm:$0xf]
      %v1255 = vld [vmem:[%s183 + $0x2c] sm:$0xf]
      %v1256 = vld [vmem:[%s183 + $0x30] sm:$0xf]
      %v1257 = vld [vmem:[%s183 + $0x34] sm:$0xf]
      %v1258 = vld [vmem:[%s183 + $0x38] sm:$0xf]
      %v1259 = vld [vmem:[%s183 + $0x3c] sm:$0xf]
      %v1260 = vld [vmem:[%s183 + $0x40] sm:$0xf]
      %v1261 = vld [vmem:[%s183 + $0x44] sm:$0xf]
      %v1262 = vld [vmem:[%s183 + $0x48] sm:$0xf]
      %v1263 = vld [vmem:[%s183 + $0x4c] sm:$0xf]
      %v1264 = vld [vmem:[%s183 + $0x50] sm:$0xf]
      %v1265 = vld [vmem:[%s183 + $0x54] sm:$0xf]
      %v1266 = vld [vmem:[%s183 + $0x58] sm:$0xf]
      %v1267 = vld [vmem:[%s183 + $0x5c] sm:$0xf]
      %v1268 = vld [vmem:[%s183 + $0x60] sm:$0xf]
      %v1269 = vld [vmem:[%s183 + $0x64] sm:$0xf]
      %v1270 = vld [vmem:[%s183 + $0x68] sm:$0xf]
      %v1271 = vld [vmem:[%s183 + $0x6c] sm:$0xf]
      %v1272 = vld [vmem:[%s183 + $0x70] sm:$0xf]
      %v1273 = vld [vmem:[%s183 + $0x74] sm:$0xf]
      %v1274 = vld [vmem:[%s183 + $0x78] sm:$0xf]
      %v1275 = vld [vmem:[%s183 + $0x7c] sm:$0xf]
      %v1276 = vld [vmem:[%s183 + $0x80] sm:$0xf]
      %v1277 = vld [vmem:[%s183 + $0x84] sm:$0xf]
      %v1278 = vld [vmem:[%s183 + $0x88] sm:$0xf]
      %v1279 = vld [vmem:[%s183 + $0x8c] sm:$0xf]
      %v1280 = vld [vmem:[%s183 + $0x90] sm:$0xf]
      %v1281 = vld [vmem:[%s183 + $0x94] sm:$0xf]
      %v1282 = vld [vmem:[%s183 + $0x98] sm:$0x1]
      %s1283 = scalar_lea.vmem %s1, 6
      %v1284 = vld [vmem:[%s1283] sm:$0x3]
      %v1322 = vunpack.c.l.b16 %v1246
      %v1323 = vunpack.c.l.b16 %v1247
      %v1324 = vunpack.c.l.b16 %v1248
      %v1325 = vunpack.c.l.b16 %v1249
      %v1326 = vunpack.c.l.b16 %v1250
      %v1327 = vunpack.c.l.b16 %v1251
      %v1328 = vunpack.c.l.b16 %v1252
      %v1329 = vunpack.c.l.b16 %v1253
      %v1330 = vunpack.c.l.b16 %v1254
      %v1331 = vunpack.c.l.b16 %v1255
      %v1332 = vunpack.c.l.b16 %v1256
      %v1333 = vunpack.c.l.b16 %v1257
      %v1334 = vunpack.c.l.b16 %v1258
      %v1335 = vunpack.c.l.b16 %v1259
      %v1336 = vunpack.c.l.b16 %v1260
      %v1337 = vunpack.c.l.b16 %v1261
      %v1338 = vunpack.c.l.b16 %v1262
      %v1339 = vunpack.c.l.b16 %v1263
      %v1340 = vunpack.c.l.b16 %v1264
      %v1341 = vunpack.c.l.b16 %v1265
      %v1342 = vunpack.c.l.b16 %v1266
      %v1343 = vunpack.c.l.b16 %v1267
      %v1344 = vunpack.c.l.b16 %v1268
      %v1345 = vunpack.c.l.b16 %v1269
      %v1346 = vunpack.c.l.b16 %v1270
      %v1347 = vunpack.c.l.b16 %v1271
      %v1348 = vunpack.c.l.b16 %v1272
      %v1349 = vunpack.c.l.b16 %v1273
      %v1350 = vunpack.c.l.b16 %v1274
      %v1351 = vunpack.c.l.b16 %v1275
      %v1352 = vunpack.c.l.b16 %v1276
      %v1353 = vunpack.c.l.b16 %v1277
      %v1354 = vunpack.c.l.b16 %v1278
      %v1355 = vunpack.c.l.b16 %v1279
      %v1356 = vunpack.c.l.b16 %v1280
      %v1357 = vunpack.c.l.b16 %v1281
      %v1358 = vunpack.c.l.b16 %v1282
      %v1359 = vpack.c.b16 %v1323, %v1322
      %v1360 = vpack.c.b16 %v1325, %v1324
      %v1361 = vpack.c.b16 %v1327, %v1326
      %v1362 = vpack.c.b16 %v1329, %v1328
      %v1363 = vpack.c.b16 %v1331, %v1330
      %v1364 = vpack.c.b16 %v1333, %v1332
      %v1365 = vpack.c.b16 %v1335, %v1334
      %v1366 = vpack.c.b16 %v1337, %v1336
      %v1367 = vpack.c.b16 %v1339, %v1338
      %v1368 = vpack.c.b16 %v1341, %v1340
      %v1369 = vpack.c.b16 %v1343, %v1342
      %v1370 = vpack.c.b16 %v1345, %v1344
      %v1371 = vpack.c.b16 %v1347, %v1346
      %v1372 = vpack.c.b16 %v1349, %v1348
      %v1373 = vpack.c.b16 %v1351, %v1350
      %v1374 = vpack.c.b16 %v1353, %v1352
      %v1375 = vpack.c.b16 %v1355, %v1354
      %v1376 = vpack.c.b16 %v1357, %v1356
      %v1377 = vpack.c.b16 %v1358, %v1358
      %v1378 = vrot.slane %v1359, 1
      %v1379 = vrot.slane %v1360, 1
      %v1380 = vsel %vm938, %v1378, %v1379
      %v1381 = vrot.slane %v1361, 1
      %v1382 = vsel %vm938, %v1379, %v1381
      %v1383 = vrot.slane %v1362, 1
      %v1384 = vsel %vm938, %v1381, %v1383
      %v1385 = vrot.slane %v1363, 1
      %v1386 = vsel %vm938, %v1383, %v1385
      %v1387 = vrot.slane %v1364, 1
      %v1388 = vsel %vm938, %v1385, %v1387
      %v1389 = vrot.slane %v1365, 1
      %v1390 = vsel %vm938, %v1387, %v1389
      %v1391 = vrot.slane %v1366, 1
      %v1392 = vsel %vm938, %v1389, %v1391
      %v1393 = vrot.slane %v1367, 1
      %v1394 = vsel %vm938, %v1391, %v1393
      %v1395 = vrot.slane %v1368, 1
      %v1396 = vsel %vm938, %v1393, %v1395
      %v1397 = vrot.slane %v1369, 1
      %v1398 = vsel %vm938, %v1395, %v1397
      %v1399 = vrot.slane %v1370, 1
      %v1400 = vsel %vm938, %v1397, %v1399
      %v1401 = vrot.slane %v1371, 1
      %v1402 = vsel %vm938, %v1399, %v1401
      %v1403 = vrot.slane %v1372, 1
      %v1404 = vsel %vm938, %v1401, %v1403
      %v1405 = vrot.slane %v1373, 1
      %v1406 = vsel %vm938, %v1403, %v1405
      %v1407 = vrot.slane %v1374, 1
      %v1408 = vsel %vm938, %v1405, %v1407
      %v1409 = vrot.slane %v1375, 1
      %v1410 = vsel %vm938, %v1407, %v1409
      %v1411 = vrot.slane %v1376, 1
      %v1412 = vsel %vm938, %v1409, %v1411
      %v1413 = vrot.slane %v1377, 1
      %v1414 = vsel %vm938, %v1411, %v1413
      %v1416 = vsel %vm477, %v1380, 0
      %v1419 = vsel %vm477, %v1382, 0
      %v1422 = vsel %vm477, %v1384, 0
      %v1425 = vsel %vm477, %v1386, 0
      %v1428 = vsel %vm477, %v1388, 0
      %v1431 = vsel %vm477, %v1390, 0
      %v1434 = vsel %vm477, %v1392, 0
      %v1437 = vsel %vm477, %v1394, 0
      %v1440 = vsel %vm477, %v1396, 0
      %v1443 = vsel %vm477, %v1398, 0
      %v1446 = vsel %vm477, %v1400, 0
      %v1449 = vsel %vm477, %v1402, 0
      %v1452 = vsel %vm477, %v1404, 0
      %v1455 = vsel %vm477, %v1406, 0
      %v1458 = vsel %vm477, %v1408, 0
      %v1461 = vsel %vm477, %v1410, 0
      %v1464 = vsel %vm477, %v1412, 0
      %v1467 = vsel %vm477, %v1414, 0
      %v1470 = vand.u32 %v1284, %v535
      %1472 = vmatprep.subr.bf16.mxu0 0
      %1473 = vmatpush1.bf16.msra.mxu0 %v1470
      %1474 = vmatprep.subr.bf16.mxu0 0
      %1475 = vmatpush1.bf16.msra.mxu0 0
      %1476 = vmatprep.subr.bf16.mxu0 0
      %1477 = vmatpush1.bf16.msra.mxu0 0
      %1478 = vmatprep.subr.bf16.mxu0 0
      %1479 = vmatpush1.bf16.msra.mxu0 0
      %1480 = vmatprep.subr.bf16.mxu0 0
      %1481 = vmatpush1.bf16.msra.mxu0 0
      %1482 = vmatprep.subr.bf16.mxu0 0
      %1483 = vmatpush1.bf16.msra.mxu0 0
      %1484 = vmatprep.subr.bf16.mxu0 0
      %1485 = vmatpush1.bf16.msra.mxu0 0
      %1486 = vmatprep.subr.bf16.mxu0 0
      %1487 = vmatpush1.bf16.msra.mxu0 0
      %1488 = vmatprep.subr.bf16.mxu0 0
      %1489 = vmatpush1.bf16.msra.mxu0 0
      %1490 = vmatprep.subr.bf16.mxu0 0
      %1491 = vmatpush1.bf16.msra.mxu0 0
      %1492 = vmatprep.subr.bf16.mxu0 0
      %1493 = vmatpush1.bf16.msra.mxu0 0
      %1494 = vmatprep.subr.bf16.mxu0 0
      %1495 = vmatpush1.bf16.msra.mxu0 0
      %1496 = vmatprep.subr.bf16.mxu0 0
      %1497 = vmatpush1.bf16.msra.mxu0 0
      %1498 = vmatprep.subr.bf16.mxu0 0
      %1499 = vmatpush1.bf16.msra.mxu0 0
      %1500 = vmatprep.subr.bf16.mxu0 0
      %1501 = vmatpush1.bf16.msra.mxu0 0
      %1502 = vmatprep.subr.bf16.mxu0 0
      %1503 = vmatpush1.bf16.msra.mxu0 0
      %1504 = vmatprep.mubr.bf16.mxu0 0
      %1505 = vmatmul.mubr.bf16.gmra.mrb[0].mxu0 %v1416
      %v1506 = vpop.f32.mrb[0].mxu0
      %v1507 = vadd.f32 0.0, %v1506
      %v1508 = vpop.f32.mrb[0].mxu0
      %v1509 = vpop.f32.mrb[0].mxu0
      %v1510 = vadd.f32 0.0, %v1509
      %v1511 = vpop.f32.mrb[0].mxu0
      %1512 = vmatprep.mubr.bf16.mxu0 0
      %1513 = vmatmul.mubr.bf16.gmra.mrb[0].mxu0 %v1419
      %v1514 = vpop.f32.mrb[0].mxu0
      %v1515 = vadd.f32 0.0, %v1514
      %v1516 = vpop.f32.mrb[0].mxu0
      %v1517 = vpop.f32.mrb[0].mxu0
      %v1518 = vadd.f32 0.0, %v1517
      %v1519 = vpop.f32.mrb[0].mxu0
      %1520 = vmatprep.mubr.bf16.mxu0 0
      %1521 = vmatmul.mubr.bf16.gmra.mrb[0].mxu0 %v1422
      %v1522 = vpop.f32.mrb[0].mxu0
      %v1523 = vadd.f32 0.0, %v1522
      %v1524 = vpop.f32.mrb[0].mxu0
      %v1525 = vpop.f32.mrb[0].mxu0
      %v1526 = vadd.f32 0.0, %v1525
      %v1527 = vpop.f32.mrb[0].mxu0
      %1528 = vmatprep.mubr.bf16.mxu0 0
      %1529 = vmatmul.mubr.bf16.gmra.mrb[0].mxu0 %v1425
      %v1530 = vpop.f32.mrb[0].mxu0
      %v1531 = vadd.f32 0.0, %v1530
      %v1532 = vpop.f32.mrb[0].mxu0
      %v1533 = vpop.f32.mrb[0].mxu0
      %v1534 = vadd.f32 0.0, %v1533
      %v1535 = vpop.f32.mrb[0].mxu0
      %1536 = vmatprep.mubr.bf16.mxu0 0
      %1537 = vmatmul.mubr.bf16.gmra.mrb[0].mxu0 %v1428
      %v1538 = vpop.f32.mrb[0].mxu0
      %v1539 = vadd.f32 0.0, %v1538
      %v1540 = vpop.f32.mrb[0].mxu0
      %v1541 = vpop.f32.mrb[0].mxu0
      %v1542 = vadd.f32 0.0, %v1541
      %v1543 = vpop.f32.mrb[0].mxu0
      %1544 = vmatprep.mubr.bf16.mxu0 0
      %1545 = vmatmul.mubr.bf16.gmra.mrb[0].mxu0 %v1431
      %v1546 = vpop.f32.mrb[0].mxu0
      %v1547 = vadd.f32 0.0, %v1546
      %v1548 = vpop.f32.mrb[0].mxu0
      %v1549 = vpop.f32.mrb[0].mxu0
      %v1550 = vadd.f32 0.0, %v1549
      %v1551 = vpop.f32.mrb[0].mxu0
      %1552 = vmatprep.mubr.bf16.mxu0 0
      %1553 = vmatmul.mubr.bf16.gmra.mrb[0].mxu0 %v1434
      %v1554 = vpop.f32.mrb[0].mxu0
      %v1555 = vadd.f32 0.0, %v1554
      %v1556 = vpop.f32.mrb[0].mxu0
      %v1557 = vpop.f32.mrb[0].mxu0
      %v1558 = vadd.f32 0.0, %v1557
      %v1559 = vpop.f32.mrb[0].mxu0
      %1560 = vmatprep.mubr.bf16.mxu0 0
      %1561 = vmatmul.mubr.bf16.gmra.mrb[0].mxu0 %v1437
      %v1562 = vpop.f32.mrb[0].mxu0
      %v1563 = vadd.f32 0.0, %v1562
      %v1564 = vpop.f32.mrb[0].mxu0
      %v1565 = vpop.f32.mrb[0].mxu0
      %v1566 = vadd.f32 0.0, %v1565
      %v1567 = vpop.f32.mrb[0].mxu0
      %1568 = vmatprep.mubr.bf16.mxu0 0
      %1569 = vmatmul.mubr.bf16.gmra.mrb[0].mxu0 %v1440
      %v1570 = vpop.f32.mrb[0].mxu0
      %v1571 = vadd.f32 0.0, %v1570
      %v1572 = vpop.f32.mrb[0].mxu0
      %v1573 = vpop.f32.mrb[0].mxu0
      %v1574 = vadd.f32 0.0, %v1573
      %v1575 = vpop.f32.mrb[0].mxu0
      %1576 = vmatprep.mubr.bf16.mxu0 0
      %1577 = vmatmul.mubr.bf16.gmra.mrb[0].mxu0 %v1443
      %v1578 = vpop.f32.mrb[0].mxu0
      %v1579 = vadd.f32 0.0, %v1578
      %v1580 = vpop.f32.mrb[0].mxu0
      %v1581 = vpop.f32.mrb[0].mxu0
      %v1582 = vadd.f32 0.0, %v1581
      %v1583 = vpop.f32.mrb[0].mxu0
      %1584 = vmatprep.mubr.bf16.mxu0 0
      %1585 = vmatmul.mubr.bf16.gmra.mrb[0].mxu0 %v1446
      %v1586 = vpop.f32.mrb[0].mxu0
      %v1587 = vadd.f32 0.0, %v1586
      %v1588 = vpop.f32.mrb[0].mxu0
      %v1589 = vpop.f32.mrb[0].mxu0
      %v1590 = vadd.f32 0.0, %v1589
      %v1591 = vpop.f32.mrb[0].mxu0
      %1592 = vmatprep.mubr.bf16.mxu0 0
      %1593 = vmatmul.mubr.bf16.gmra.mrb[0].mxu0 %v1449
      %v1594 = vpop.f32.mrb[0].mxu0
      %v1595 = vadd.f32 0.0, %v1594
      %v1596 = vpop.f32.mrb[0].mxu0
      %v1597 = vpop.f32.mrb[0].mxu0
      %v1598 = vadd.f32 0.0, %v1597
      %v1599 = vpop.f32.mrb[0].mxu0
      %1600 = vmatprep.mubr.bf16.mxu0 0
      %1601 = vmatmul.mubr.bf16.gmra.mrb[0].mxu0 %v1452
      %v1602 = vpop.f32.mrb[0].mxu0
      %v1603 = vadd.f32 0.0, %v1602
      %v1604 = vpop.f32.mrb[0].mxu0
      %v1605 = vpop.f32.mrb[0].mxu0
      %v1606 = vadd.f32 0.0, %v1605
      %v1607 = vpop.f32.mrb[0].mxu0
      %1608 = vmatprep.mubr.bf16.mxu0 0
      %1609 = vmatmul.mubr.bf16.gmra.mrb[0].mxu0 %v1455
      %v1610 = vpop.f32.mrb[0].mxu0
      %v1611 = vadd.f32 0.0, %v1610
      %v1612 = vpop.f32.mrb[0].mxu0
      %v1613 = vpop.f32.mrb[0].mxu0
      %v1614 = vadd.f32 0.0, %v1613
      %v1615 = vpop.f32.mrb[0].mxu0
      %1616 = vmatprep.mubr.bf16.mxu0 0
      %1617 = vmatmul.mubr.bf16.gmra.mrb[0].mxu0 %v1458
      %v1618 = vpop.f32.mrb[0].mxu0
      %v1619 = vadd.f32 0.0, %v1618
      %v1620 = vpop.f32.mrb[0].mxu0
      %v1621 = vpop.f32.mrb[0].mxu0
      %v1622 = vadd.f32 0.0, %v1621
      %v1623 = vpop.f32.mrb[0].mxu0
      %1624 = vmatprep.mubr.bf16.mxu0 0
      %1625 = vmatmul.mubr.bf16.gmra.mrb[0].mxu0 %v1461
      %v1626 = vpop.f32.mrb[0].mxu0
      %v1627 = vadd.f32 0.0, %v1626
      %v1628 = vpop.f32.mrb[0].mxu0
      %v1629 = vpop.f32.mrb[0].mxu0
      %v1630 = vadd.f32 0.0, %v1629
      %v1631 = vpop.f32.mrb[0].mxu0
      %1632 = vmatprep.mubr.bf16.mxu0 0
      %1633 = vmatmul.mubr.bf16.gmra.mrb[0].mxu0 %v1464
      %v1634 = vpop.f32.mrb[0].mxu0
      %v1635 = vadd.f32 0.0, %v1634
      %v1636 = vpop.f32.mrb[0].mxu0
      %v1637 = vpop.f32.mrb[0].mxu0
      %v1638 = vadd.f32 0.0, %v1637
      %v1639 = vpop.f32.mrb[0].mxu0
      %1640 = vmatprep.mubr.bf16.mxu0 0
      %1641 = vmatmul.mubr.bf16.gmra.mrb[0].mxu0 %v1467
      %v1642 = vpop.f32.mrb[0].mxu0
      %v1643 = vadd.f32 0.0, %v1642
      %v1644 = vpop.f32.mrb[0].mxu0
      %v1645 = vpop.f32.mrb[0].mxu0
      %v1646 = vadd.f32 0.0, %v1645
      %v1647 = vpop.f32.mrb[0].mxu0
      %1648 = vdwg.mxu0
      %v1649 = vadd.f32 %v1210, %v1507
      %v1650 = vadd.f32 %v1211, %v1510
      %v1651 = vadd.f32 %v1212, %v1515
      %v1652 = vadd.f32 %v1213, %v1518
      %v1653 = vadd.f32 %v1214, %v1523
      %v1654 = vadd.f32 %v1215, %v1526
      %v1655 = vadd.f32 %v1216, %v1531
      %v1656 = vadd.f32 %v1217, %v1534
      %v1657 = vadd.f32 %v1218, %v1539
      %v1658 = vadd.f32 %v1219, %v1542
      %v1659 = vadd.f32 %v1220, %v1547
      %v1660 = vadd.f32 %v1221, %v1550
      %v1661 = vadd.f32 %v1222, %v1555
      %v1662 = vadd.f32 %v1223, %v1558
      %v1663 = vadd.f32 %v1224, %v1563
      %v1664 = vadd.f32 %v1225, %v1566
      %v1665 = vadd.f32 %v1226, %v1571
      %v1666 = vadd.f32 %v1227, %v1574
      %v1667 = vadd.f32 %v1228, %v1579
      %v1668 = vadd.f32 %v1229, %v1582
      %v1669 = vadd.f32 %v1230, %v1587
      %v1670 = vadd.f32 %v1231, %v1590
      %v1671 = vadd.f32 %v1232, %v1595
      %v1672 = vadd.f32 %v1233, %v1598
      %v1673 = vadd.f32 %v1234, %v1603
      %v1674 = vadd.f32 %v1235, %v1606
      %v1675 = vadd.f32 %v1236, %v1611
      %v1676 = vadd.f32 %v1237, %v1614
      %v1677 = vadd.f32 %v1238, %v1619
      %v1678 = vadd.f32 %v1239, %v1622
      %v1679 = vadd.f32 %v1240, %v1627
      %v1680 = vadd.f32 %v1241, %v1630
      %v1681 = vadd.f32 %v1242, %v1635
      %v1682 = vadd.f32 %v1243, %v1638
      %v1683 = vadd.f32 %v1244, %v1643
      %v1684 = vadd.f32 %v1245, %v1646
      %v1685 = vld [vmem:[%s183 + $0x98] sm:$0x3]
      %s1686 = scalar_lea.vmem %s1, 8
      %v1687 = vld [vmem:[%s1686] sm:$0x3]
      %v1689 = vunpack.c.l.b16 %v1685
      %v1690 = vpack.c.b16 %v1689, %v1689
      %vm1691 = vsmask.f32 6400
      %v1693 = vshrl.u32 %v1359, 16
      %v1695 = vrot.slane %v1693, 1
      %v1696 = vshll.u32 %v1359, 16
      %v1698 = vrot.slane %v1696, 2
      %v1699 = vor.u32 %v1695, %v1698
      %v1701 = vshrl.u32 %v1360, 16
      %v1703 = vrot.slane %v1701, 1
      %v1704 = vshll.u32 %v1360, 16
      %v1706 = vrot.slane %v1704, 2
      %v1707 = vor.u32 %v1703, %v1706
      %v1708 = vsel %vm1691, %v1699, %v1707
      %v1710 = vshrl.u32 %v1361, 16
      %v1712 = vrot.slane %v1710, 1
      %v1713 = vshll.u32 %v1361, 16
      %v1715 = vrot.slane %v1713, 2
      %v1716 = vor.u32 %v1712, %v1715
      %v1717 = vsel %vm1691, %v1707, %v1716
      %v1719 = vshrl.u32 %v1362, 16
      %v1721 = vrot.slane %v1719, 1
      %v1722 = vshll.u32 %v1362, 16
      %v1724 = vrot.slane %v1722, 2
      %v1725 = vor.u32 %v1721, %v1724
      %v1726 = vsel %vm1691, %v1716, %v1725
      %v1728 = vshrl.u32 %v1363, 16
      %v1730 = vrot.slane %v1728, 1
      %v1731 = vshll.u32 %v1363, 16
      %v1733 = vrot.slane %v1731, 2
      %v1734 = vor.u32 %v1730, %v1733
      %v1735 = vsel %vm1691, %v1725, %v1734
      %v1737 = vshrl.u32 %v1364, 16
      %v1739 = vrot.slane %v1737, 1
      %v1740 = vshll.u32 %v1364, 16
      %v1742 = vrot.slane %v1740, 2
      %v1743 = vor.u32 %v1739, %v1742
      %v1744 = vsel %vm1691, %v1734, %v1743
      %v1746 = vshrl.u32 %v1365, 16
      %v1748 = vrot.slane %v1746, 1
      %v1749 = vshll.u32 %v1365, 16
      %v1751 = vrot.slane %v1749, 2
      %v1752 = vor.u32 %v1748, %v1751
      %v1753 = vsel %vm1691, %v1743, %v1752
      %v1755 = vshrl.u32 %v1366, 16
      %v1757 = vrot.slane %v1755, 1
      %v1758 = vshll.u32 %v1366, 16
      %v1760 = vrot.slane %v1758, 2
      %v1761 = vor.u32 %v1757, %v1760
      %v1762 = vsel %vm1691, %v1752, %v1761
      %v1764 = vshrl.u32 %v1367, 16
      %v1766 = vrot.slane %v1764, 1
      %v1767 = vshll.u32 %v1367, 16
      %v1769 = vrot.slane %v1767, 2
      %v1770 = vor.u32 %v1766, %v1769
      %v1771 = vsel %vm1691, %v1761, %v1770
      %v1773 = vshrl.u32 %v1368, 16
      %v1775 = vrot.slane %v1773, 1
      %v1776 = vshll.u32 %v1368, 16
      %v1778 = vrot.slane %v1776, 2
      %v1779 = vor.u32 %v1775, %v1778
      %v1780 = vsel %vm1691, %v1770, %v1779
      %v1782 = vshrl.u32 %v1369, 16
      %v1784 = vrot.slane %v1782, 1
      %v1785 = vshll.u32 %v1369, 16
      %v1787 = vrot.slane %v1785, 2
      %v1788 = vor.u32 %v1784, %v1787
      %v1789 = vsel %vm1691, %v1779, %v1788
      %v1791 = vshrl.u32 %v1370, 16
      %v1793 = vrot.slane %v1791, 1
      %v1794 = vshll.u32 %v1370, 16
      %v1796 = vrot.slane %v1794, 2
      %v1797 = vor.u32 %v1793, %v1796
      %v1798 = vsel %vm1691, %v1788, %v1797
      %v1800 = vshrl.u32 %v1371, 16
      %v1802 = vrot.slane %v1800, 1
      %v1803 = vshll.u32 %v1371, 16
      %v1805 = vrot.slane %v1803, 2
      %v1806 = vor.u32 %v1802, %v1805
      %v1807 = vsel %vm1691, %v1797, %v1806
      %v1809 = vshrl.u32 %v1372, 16
      %v1811 = vrot.slane %v1809, 1
      %v1812 = vshll.u32 %v1372, 16
      %v1814 = vrot.slane %v1812, 2
      %v1815 = vor.u32 %v1811, %v1814
      %v1816 = vsel %vm1691, %v1806, %v1815
      %v1818 = vshrl.u32 %v1373, 16
      %v1820 = vrot.slane %v1818, 1
      %v1821 = vshll.u32 %v1373, 16
      %v1823 = vrot.slane %v1821, 2
      %v1824 = vor.u32 %v1820, %v1823
      %v1825 = vsel %vm1691, %v1815, %v1824
      %v1827 = vshrl.u32 %v1374, 16
      %v1829 = vrot.slane %v1827, 1
      %v1830 = vshll.u32 %v1374, 16
      %v1832 = vrot.slane %v1830, 2
      %v1833 = vor.u32 %v1829, %v1832
      %v1834 = vsel %vm1691, %v1824, %v1833
      %v1836 = vshrl.u32 %v1375, 16
      %v1838 = vrot.slane %v1836, 1
      %v1839 = vshll.u32 %v1375, 16
      %v1841 = vrot.slane %v1839, 2
      %v1842 = vor.u32 %v1838, %v1841
      %v1843 = vsel %vm1691, %v1833, %v1842
      %v1845 = vshrl.u32 %v1376, 16
      %v1847 = vrot.slane %v1845, 1
      %v1848 = vshll.u32 %v1376, 16
      %v1850 = vrot.slane %v1848, 2
      %v1851 = vor.u32 %v1847, %v1850
      %v1852 = vsel %vm1691, %v1842, %v1851
      %v1854 = vshrl.u32 %v1690, 16
      %v1856 = vrot.slane %v1854, 1
      %v1857 = vshll.u32 %v1690, 16
      %v1859 = vrot.slane %v1857, 2
      %v1860 = vor.u32 %v1856, %v1859
      %v1861 = vsel %vm1691, %v1851, %v1860
      %v1863 = vsel %vm477, %v1708, 0
      %v1866 = vsel %vm477, %v1717, 0
      %v1869 = vsel %vm477, %v1726, 0
      %v1872 = vsel %vm477, %v1735, 0
      %v1875 = vsel %vm477, %v1744, 0
      %v1878 = vsel %vm477, %v1753, 0
      %v1881 = vsel %vm477, %v1762, 0
      %v1884 = vsel %vm477, %v1771, 0
      %v1887 = vsel %vm477, %v1780, 0
      %v1890 = vsel %vm477, %v1789, 0
      %v1893 = vsel %vm477, %v1798, 0
      %v1896 = vsel %vm477, %v1807, 0
      %v1899 = vsel %vm477, %v1816, 0
      %v1902 = vsel %vm477, %v1825, 0
      %v1905 = vsel %vm477, %v1834, 0
      %v1908 = vsel %vm477, %v1843, 0
      %v1911 = vsel %vm477, %v1852, 0
      %v1914 = vsel %vm477, %v1861, 0
      %v1917 = vand.u32 %v1687, %v535
      %1919 = vmatprep.subr.bf16.mxu0 0
      %1920 = vmatpush1.bf16.msra.mxu0 %v1917
      %1921 = vmatprep.subr.bf16.mxu0 0
      %1922 = vmatpush1.bf16.msra.mxu0 0
      %1923 = vmatprep.subr.bf16.mxu0 0
      %1924 = vmatpush1.bf16.msra.mxu0 0
      %1925 = vmatprep.subr.bf16.mxu0 0
      %1926 = vmatpush1.bf16.msra.mxu0 0
      %1927 = vmatprep.subr.bf16.mxu0 0
      %1928 = vmatpush1.bf16.msra.mxu0 0
      %1929 = vmatprep.subr.bf16.mxu0 0
      %1930 = vmatpush1.bf16.msra.mxu0 0
      %1931 = vmatprep.subr.bf16.mxu0 0
      %1932 = vmatpush1.bf16.msra.mxu0 0
      %1933 = vmatprep.subr.bf16.mxu0 0
      %1934 = vmatpush1.bf16.msra.mxu0 0
      %1935 = vmatprep.subr.bf16.mxu0 0
      %1936 = vmatpush1.bf16.msra.mxu0 0
      %1937 = vmatprep.subr.bf16.mxu0 0
      %1938 = vmatpush1.bf16.msra.mxu0 0
      %1939 = vmatprep.subr.bf16.mxu0 0
      %1940 = vmatpush1.bf16.msra.mxu0 0
      %1941 = vmatprep.subr.bf16.mxu0 0
      %1942 = vmatpush1.bf16.msra.mxu0 0
      %1943 = vmatprep.subr.bf16.mxu0 0
      %1944 = vmatpush1.bf16.msra.mxu0 0
      %1945 = vmatprep.subr.bf16.mxu0 0
      %1946 = vmatpush1.bf16.msra.mxu0 0
      %1947 = vmatprep.subr.bf16.mxu0 0
      %1948 = vmatpush1.bf16.msra.mxu0 0
      %1949 = vmatprep.subr.bf16.mxu0 0
      %1950 = vmatpush1.bf16.msra.mxu0 0
      %1951 = vmatprep.mubr.bf16.mxu0 0
      %1952 = vmatmul.mubr.bf16.gmra.mrb[0].mxu0 %v1863
      %v1953 = vpop.f32.mrb[0].mxu0
      %v1954 = vadd.f32 0.0, %v1953
      %v1955 = vpop.f32.mrb[0].mxu0
      %v1956 = vpop.f32.mrb[0].mxu0
      %v1957 = vadd.f32 0.0, %v1956
      %v1958 = vpop.f32.mrb[0].mxu0
      %1959 = vmatprep.mubr.bf16.mxu0 0
      %1960 = vmatmul.mubr.bf16.gmra.mrb[0].mxu0 %v1866
      %v1961 = vpop.f32.mrb[0].mxu0
      %v1962 = vadd.f32 0.0, %v1961
      %v1963 = vpop.f32.mrb[0].mxu0
      %v1964 = vpop.f32.mrb[0].mxu0
      %v1965 = vadd.f32 0.0, %v1964
      %v1966 = vpop.f32.mrb[0].mxu0
      %1967 = vmatprep.mubr.bf16.mxu0 0
      %1968 = vmatmul.mubr.bf16.gmra.mrb[0].mxu0 %v1869
      %v1969 = vpop.f32.mrb[0].mxu0
      %v1970 = vadd.f32 0.0, %v1969
      %v1971 = vpop.f32.mrb[0].mxu0
      %v1972 = vpop.f32.mrb[0].mxu0
      %v1973 = vadd.f32 0.0, %v1972
      %v1974 = vpop.f32.mrb[0].mxu0
      %1975 = vmatprep.mubr.bf16.mxu0 0
      %1976 = vmatmul.mubr.bf16.gmra.mrb[0].mxu0 %v1872
      %v1977 = vpop.f32.mrb[0].mxu0
      %v1978 = vadd.f32 0.0, %v1977
      %v1979 = vpop.f32.mrb[0].mxu0
      %v1980 = vpop.f32.mrb[0].mxu0
      %v1981 = vadd.f32 0.0, %v1980
      %v1982 = vpop.f32.mrb[0].mxu0
      %1983 = vmatprep.mubr.bf16.mxu0 0
      %1984 = vmatmul.mubr.bf16.gmra.mrb[0].mxu0 %v1875
      %v1985 = vpop.f32.mrb[0].mxu0
      %v1986 = vadd.f32 0.0, %v1985
      %v1987 = vpop.f32.mrb[0].mxu0
      %v1988 = vpop.f32.mrb[0].mxu0
      %v1989 = vadd.f32 0.0, %v1988
      %v1990 = vpop.f32.mrb[0].mxu0
      %1991 = vmatprep.mubr.bf16.mxu0 0
      %1992 = vmatmul.mubr.bf16.gmra.mrb[0].mxu0 %v1878
      %v1993 = vpop.f32.mrb[0].mxu0
      %v1994 = vadd.f32 0.0, %v1993
      %v1995 = vpop.f32.mrb[0].mxu0
      %v1996 = vpop.f32.mrb[0].mxu0
      %v1997 = vadd.f32 0.0, %v1996
      %v1998 = vpop.f32.mrb[0].mxu0
      %1999 = vmatprep.mubr.bf16.mxu0 0
      %2000 = vmatmul.mubr.bf16.gmra.mrb[0].mxu0 %v1881
      %v2001 = vpop.f32.mrb[0].mxu0
      %v2002 = vadd.f32 0.0, %v2001
      %v2003 = vpop.f32.mrb[0].mxu0
      %v2004 = vpop.f32.mrb[0].mxu0
      %v2005 = vadd.f32 0.0, %v2004
      %v2006 = vpop.f32.mrb[0].mxu0
      %2007 = vmatprep.mubr.bf16.mxu0 0
      %2008 = vmatmul.mubr.bf16.gmra.mrb[0].mxu0 %v1884
      %v2009 = vpop.f32.mrb[0].mxu0
      %v2010 = vadd.f32 0.0, %v2009
      %v2011 = vpop.f32.mrb[0].mxu0
      %v2012 = vpop.f32.mrb[0].mxu0
      %v2013 = vadd.f32 0.0, %v2012
      %v2014 = vpop.f32.mrb[0].mxu0
      %2015 = vmatprep.mubr.bf16.mxu0 0
      %2016 = vmatmul.mubr.bf16.gmra.mrb[0].mxu0 %v1887
      %v2017 = vpop.f32.mrb[0].mxu0
      %v2018 = vadd.f32 0.0, %v2017
      %v2019 = vpop.f32.mrb[0].mxu0
      %v2020 = vpop.f32.mrb[0].mxu0
      %v2021 = vadd.f32 0.0, %v2020
      %v2022 = vpop.f32.mrb[0].mxu0
      %2023 = vmatprep.mubr.bf16.mxu0 0
      %2024 = vmatmul.mubr.bf16.gmra.mrb[0].mxu0 %v1890
      %v2025 = vpop.f32.mrb[0].mxu0
      %v2026 = vadd.f32 0.0, %v2025
      %v2027 = vpop.f32.mrb[0].mxu0
      %v2028 = vpop.f32.mrb[0].mxu0
      %v2029 = vadd.f32 0.0, %v2028
      %v2030 = vpop.f32.mrb[0].mxu0
      %2031 = vmatprep.mubr.bf16.mxu0 0
      %2032 = vmatmul.mubr.bf16.gmra.mrb[0].mxu0 %v1893
      %v2033 = vpop.f32.mrb[0].mxu0
      %v2034 = vadd.f32 0.0, %v2033
      %v2035 = vpop.f32.mrb[0].mxu0
      %v2036 = vpop.f32.mrb[0].mxu0
      %v2037 = vadd.f32 0.0, %v2036
      %v2038 = vpop.f32.mrb[0].mxu0
      %2039 = vmatprep.mubr.bf16.mxu0 0
      %2040 = vmatmul.mubr.bf16.gmra.mrb[0].mxu0 %v1896
      %v2041 = vpop.f32.mrb[0].mxu0
      %v2042 = vadd.f32 0.0, %v2041
      %v2043 = vpop.f32.mrb[0].mxu0
      %v2044 = vpop.f32.mrb[0].mxu0
      %v2045 = vadd.f32 0.0, %v2044
      %v2046 = vpop.f32.mrb[0].mxu0
      %2047 = vmatprep.mubr.bf16.mxu0 0
      %2048 = vmatmul.mubr.bf16.gmra.mrb[0].mxu0 %v1899
      %v2049 = vpop.f32.mrb[0].mxu0
      %v2050 = vadd.f32 0.0, %v2049
      %v2051 = vpop.f32.mrb[0].mxu0
      %v2052 = vpop.f32.mrb[0].mxu0
      %v2053 = vadd.f32 0.0, %v2052
      %v2054 = vpop.f32.mrb[0].mxu0
      %2055 = vmatprep.mubr.bf16.mxu0 0
      %2056 = vmatmul.mubr.bf16.gmra.mrb[0].mxu0 %v1902
      %v2057 = vpop.f32.mrb[0].mxu0
      %v2058 = vadd.f32 0.0, %v2057
      %v2059 = vpop.f32.mrb[0].mxu0
      %v2060 = vpop.f32.mrb[0].mxu0
      %v2061 = vadd.f32 0.0, %v2060
      %v2062 = vpop.f32.mrb[0].mxu0
      %2063 = vmatprep.mubr.bf16.mxu0 0
      %2064 = vmatmul.mubr.bf16.gmra.mrb[0].mxu0 %v1905
      %v2065 = vpop.f32.mrb[0].mxu0
      %v2066 = vadd.f32 0.0, %v2065
      %v2067 = vpop.f32.mrb[0].mxu0
      %v2068 = vpop.f32.mrb[0].mxu0
      %v2069 = vadd.f32 0.0, %v2068
      %v2070 = vpop.f32.mrb[0].mxu0
      %2071 = vmatprep.mubr.bf16.mxu0 0
      %2072 = vmatmul.mubr.bf16.gmra.mrb[0].mxu0 %v1908
      %v2073 = vpop.f32.mrb[0].mxu0
      %v2074 = vadd.f32 0.0, %v2073
      %v2075 = vpop.f32.mrb[0].mxu0
      %v2076 = vpop.f32.mrb[0].mxu0
      %v2077 = vadd.f32 0.0, %v2076
      %v2078 = vpop.f32.mrb[0].mxu0
      %2079 = vmatprep.mubr.bf16.mxu0 0
      %2080 = vmatmul.mubr.bf16.gmra.mrb[0].mxu0 %v1911
      %v2081 = vpop.f32.mrb[0].mxu0
      %v2082 = vadd.f32 0.0, %v2081
      %v2083 = vpop.f32.mrb[0].mxu0
      %v2084 = vpop.f32.mrb[0].mxu0
      %v2085 = vadd.f32 0.0, %v2084
      %v2086 = vpop.f32.mrb[0].mxu0
      %2087 = vmatprep.mubr.bf16.mxu0 0
      %2088 = vmatmul.mubr.bf16.gmra.mrb[0].mxu0 %v1914
      %v2089 = vpop.f32.mrb[0].mxu0
      %v2090 = vadd.f32 0.0, %v2089
      %v2091 = vpop.f32.mrb[0].mxu0
      %v2092 = vpop.f32.mrb[0].mxu0
      %v2093 = vadd.f32 0.0, %v2092
      %v2094 = vpop.f32.mrb[0].mxu0
      %2095 = vdwg.mxu0
      %v2096 = vadd.f32 %v1649, %v1954
      %v2097 = vadd.f32 %v1650, %v1957
      %v2098 = vadd.f32 %v1651, %v1962
      %v2099 = vadd.f32 %v1652, %v1965
      %v2100 = vadd.f32 %v1653, %v1970
      %v2101 = vadd.f32 %v1654, %v1973
      %v2102 = vadd.f32 %v1655, %v1978
      %v2103 = vadd.f32 %v1656, %v1981
      %v2104 = vadd.f32 %v1657, %v1986
      %v2105 = vadd.f32 %v1658, %v1989
      %v2106 = vadd.f32 %v1659, %v1994
      %v2107 = vadd.f32 %v1660, %v1997
      %v2108 = vadd.f32 %v1661, %v2002
      %v2109 = vadd.f32 %v1662, %v2005
      %v2110 = vadd.f32 %v1663, %v2010
      %v2111 = vadd.f32 %v1664, %v2013
      %v2112 = vadd.f32 %v1665, %v2018
      %v2113 = vadd.f32 %v1666, %v2021
      %v2114 = vadd.f32 %v1667, %v2026
      %v2115 = vadd.f32 %v1668, %v2029
      %v2116 = vadd.f32 %v1669, %v2034
      %v2117 = vadd.f32 %v1670, %v2037
      %v2118 = vadd.f32 %v1671, %v2042
      %v2119 = vadd.f32 %v1672, %v2045
      %v2120 = vadd.f32 %v1673, %v2050
      %v2121 = vadd.f32 %v1674, %v2053
      %v2122 = vadd.f32 %v1675, %v2058
      %v2123 = vadd.f32 %v1676, %v2061
      %v2124 = vadd.f32 %v1677, %v2066
      %v2125 = vadd.f32 %v1678, %v2069
      %v2126 = vadd.f32 %v1679, %v2074
      %v2127 = vadd.f32 %v1680, %v2077
      %v2128 = vadd.f32 %v1681, %v2082
      %v2129 = vadd.f32 %v1682, %v2085
      %v2130 = vadd.f32 %v1683, %v2090
      %v2131 = vadd.f32 %v1684, %v2093
      %v2132 = vld [vmem:[%s183 + $0x8] sm:$0xc]
      %s2133 = scalar_lea.vmem %s1, 10
      %v2134 = vld [vmem:[%s2133] sm:$0x3]
      %v2136 = vunpack.c.l.b16 %v2132
      %v2137 = vpack.c.b16 %v1323, %v2136
      %vm2138 = vcmask 1045504
      %v2139 = vrot.slane %v2137, 2
      %v2140 = vrot.slane %v1360, 2
      %v2141 = vsel %vm2138, %v2139, %v2140
      %v2142 = vrot.slane %v1361, 2
      %v2143 = vsel %vm2138, %v2140, %v2142
      %v2144 = vrot.slane %v1362, 2
      %v2145 = vsel %vm2138, %v2142, %v2144
      %v2146 = vrot.slane %v1363, 2
      %v2147 = vsel %vm2138, %v2144, %v2146
      %v2148 = vrot.slane %v1364, 2
      %v2149 = vsel %vm2138, %v2146, %v2148
      %v2150 = vrot.slane %v1365, 2
      %v2151 = vsel %vm2138, %v2148, %v2150
      %v2152 = vrot.slane %v1366, 2
      %v2153 = vsel %vm2138, %v2150, %v2152
      %v2154 = vrot.slane %v1367, 2
      %v2155 = vsel %vm2138, %v2152, %v2154
      %v2156 = vrot.slane %v1368, 2
      %v2157 = vsel %vm2138, %v2154, %v2156
      %v2158 = vrot.slane %v1369, 2
      %v2159 = vsel %vm2138, %v2156, %v2158
      %v2160 = vrot.slane %v1370, 2
      %v2161 = vsel %vm2138, %v2158, %v2160
      %v2162 = vrot.slane %v1371, 2
      %v2163 = vsel %vm2138, %v2160, %v2162
      %v2164 = vrot.slane %v1372, 2
      %v2165 = vsel %vm2138, %v2162, %v2164
      %v2166 = vrot.slane %v1373, 2
      %v2167 = vsel %vm2138, %v2164, %v2166
      %v2168 = vrot.slane %v1374, 2
      %v2169 = vsel %vm2138, %v2166, %v2168
      %v2170 = vrot.slane %v1375, 2
      %v2171 = vsel %vm2138, %v2168, %v2170
      %v2172 = vrot.slane %v1376, 2
      %v2173 = vsel %vm2138, %v2170, %v2172
      %v2174 = vrot.slane %v1690, 2
      %v2175 = vsel %vm2138, %v2172, %v2174
      %v2177 = vsel %vm477, %v2141, 0
      %v2180 = vsel %vm477, %v2143, 0
      %v2183 = vsel %vm477, %v2145, 0
      %v2186 = vsel %vm477, %v2147, 0
      %v2189 = vsel %vm477, %v2149, 0
      %v2192 = vsel %vm477, %v2151, 0
      %v2195 = vsel %vm477, %v2153, 0
      %v2198 = vsel %vm477, %v2155, 0
      %v2201 = vsel %vm477, %v2157, 0
      %v2204 = vsel %vm477, %v2159, 0
      %v2207 = vsel %vm477, %v2161, 0
      %v2210 = vsel %vm477, %v2163, 0
      %v2213 = vsel %vm477, %v2165, 0
      %v2216 = vsel %vm477, %v2167, 0
      %v2219 = vsel %vm477, %v2169, 0
      %v2222 = vsel %vm477, %v2171, 0
      %v2225 = vsel %vm477, %v2173, 0
      %v2228 = vsel %vm477, %v2175, 0
      %v2231 = vand.u32 %v2134, %v535
      %2233 = vmatprep.subr.bf16.mxu0 0
      %2234 = vmatpush1.bf16.msra.mxu0 %v2231
      %2235 = vmatprep.subr.bf16.mxu0 0
      %2236 = vmatpush1.bf16.msra.mxu0 0
      %2237 = vmatprep.subr.bf16.mxu0 0
      %2238 = vmatpush1.bf16.msra.mxu0 0
      %2239 = vmatprep.subr.bf16.mxu0 0
      %2240 = vmatpush1.bf16.msra.mxu0 0
      %2241 = vmatprep.subr.bf16.mxu0 0
      %2242 = vmatpush1.bf16.msra.mxu0 0
      %2243 = vmatprep.subr.bf16.mxu0 0
      %2244 = vmatpush1.bf16.msra.mxu0 0
      %2245 = vmatprep.subr.bf16.mxu0 0
      %2246 = vmatpush1.bf16.msra.mxu0 0
      %2247 = vmatprep.subr.bf16.mxu0 0
      %2248 = vmatpush1.bf16.msra.mxu0 0
      %2249 = vmatprep.subr.bf16.mxu0 0
      %2250 = vmatpush1.bf16.msra.mxu0 0
      %2251 = vmatprep.subr.bf16.mxu0 0
      %2252 = vmatpush1.bf16.msra.mxu0 0
      %2253 = vmatprep.subr.bf16.mxu0 0
      %2254 = vmatpush1.bf16.msra.mxu0 0
      %2255 = vmatprep.subr.bf16.mxu0 0
      %2256 = vmatpush1.bf16.msra.mxu0 0
      %2257 = vmatprep.subr.bf16.mxu0 0
      %2258 = vmatpush1.bf16.msra.mxu0 0
      %2259 = vmatprep.subr.bf16.mxu0 0
      %2260 = vmatpush1.bf16.msra.mxu0 0
      %2261 = vmatprep.subr.bf16.mxu0 0
      %2262 = vmatpush1.bf16.msra.mxu0 0
      %2263 = vmatprep.subr.bf16.mxu0 0
      %2264 = vmatpush1.bf16.msra.mxu0 0
      %2265 = vmatprep.mubr.bf16.mxu0 0
      %2266 = vmatmul.mubr.bf16.gmra.mrb[0].mxu0 %v2177
      %v2267 = vpop.f32.mrb[0].mxu0
      %v2268 = vadd.f32 0.0, %v2267
      %v2269 = vpop.f32.mrb[0].mxu0
      %v2270 = vpop.f32.mrb[0].mxu0
      %v2271 = vadd.f32 0.0, %v2270
      %v2272 = vpop.f32.mrb[0].mxu0
      %2273 = vmatprep.mubr.bf16.mxu0 0
      %2274 = vmatmul.mubr.bf16.gmra.mrb[0].mxu0 %v2180
      %v2275 = vpop.f32.mrb[0].mxu0
      %v2276 = vadd.f32 0.0, %v2275
      %v2277 = vpop.f32.mrb[0].mxu0
      %v2278 = vpop.f32.mrb[0].mxu0
      %v2279 = vadd.f32 0.0, %v2278
      %v2280 = vpop.f32.mrb[0].mxu0
      %2281 = vmatprep.mubr.bf16.mxu0 0
      %2282 = vmatmul.mubr.bf16.gmra.mrb[0].mxu0 %v2183
      %v2283 = vpop.f32.mrb[0].mxu0
      %v2284 = vadd.f32 0.0, %v2283
      %v2285 = vpop.f32.mrb[0].mxu0
      %v2286 = vpop.f32.mrb[0].mxu0
      %v2287 = vadd.f32 0.0, %v2286
      %v2288 = vpop.f32.mrb[0].mxu0
      %2289 = vmatprep.mubr.bf16.mxu0 0
      %2290 = vmatmul.mubr.bf16.gmra.mrb[0].mxu0 %v2186
      %v2291 = vpop.f32.mrb[0].mxu0
      %v2292 = vadd.f32 0.0, %v2291
      %v2293 = vpop.f32.mrb[0].mxu0
      %v2294 = vpop.f32.mrb[0].mxu0
      %v2295 = vadd.f32 0.0, %v2294
      %v2296 = vpop.f32.mrb[0].mxu0
      %2297 = vmatprep.mubr.bf16.mxu0 0
      %2298 = vmatmul.mubr.bf16.gmra.mrb[0].mxu0 %v2189
      %v2299 = vpop.f32.mrb[0].mxu0
      %v2300 = vadd.f32 0.0, %v2299
      %v2301 = vpop.f32.mrb[0].mxu0
      %v2302 = vpop.f32.mrb[0].mxu0
      %v2303 = vadd.f32 0.0, %v2302
      %v2304 = vpop.f32.mrb[0].mxu0
      %2305 = vmatprep.mubr.bf16.mxu0 0
      %2306 = vmatmul.mubr.bf16.gmra.mrb[0].mxu0 %v2192
      %v2307 = vpop.f32.mrb[0].mxu0
      %v2308 = vadd.f32 0.0, %v2307
      %v2309 = vpop.f32.mrb[0].mxu0
      %v2310 = vpop.f32.mrb[0].mxu0
      %v2311 = vadd.f32 0.0, %v2310
      %v2312 = vpop.f32.mrb[0].mxu0
      %2313 = vmatprep.mubr.bf16.mxu0 0
      %2314 = vmatmul.mubr.bf16.gmra.mrb[0].mxu0 %v2195
      %v2315 = vpop.f32.mrb[0].mxu0
      %v2316 = vadd.f32 0.0, %v2315
      %v2317 = vpop.f32.mrb[0].mxu0
      %v2318 = vpop.f32.mrb[0].mxu0
      %v2319 = vadd.f32 0.0, %v2318
      %v2320 = vpop.f32.mrb[0].mxu0
      %2321 = vmatprep.mubr.bf16.mxu0 0
      %2322 = vmatmul.mubr.bf16.gmra.mrb[0].mxu0 %v2198
      %v2323 = vpop.f32.mrb[0].mxu0
      %v2324 = vadd.f32 0.0, %v2323
      %v2325 = vpop.f32.mrb[0].mxu0
      %v2326 = vpop.f32.mrb[0].mxu0
      %v2327 = vadd.f32 0.0, %v2326
      %v2328 = vpop.f32.mrb[0].mxu0
      %2329 = vmatprep.mubr.bf16.mxu0 0
      %2330 = vmatmul.mubr.bf16.gmra.mrb[0].mxu0 %v2201
      %v2331 = vpop.f32.mrb[0].mxu0
      %v2332 = vadd.f32 0.0, %v2331
      %v2333 = vpop.f32.mrb[0].mxu0
      %v2334 = vpop.f32.mrb[0].mxu0
      %v2335 = vadd.f32 0.0, %v2334
      %v2336 = vpop.f32.mrb[0].mxu0
      %2337 = vmatprep.mubr.bf16.mxu0 0
      %2338 = vmatmul.mubr.bf16.gmra.mrb[0].mxu0 %v2204
      %v2339 = vpop.f32.mrb[0].mxu0
      %v2340 = vadd.f32 0.0, %v2339
      %v2341 = vpop.f32.mrb[0].mxu0
      %v2342 = vpop.f32.mrb[0].mxu0
      %v2343 = vadd.f32 0.0, %v2342
      %v2344 = vpop.f32.mrb[0].mxu0
      %2345 = vmatprep.mubr.bf16.mxu0 0
      %2346 = vmatmul.mubr.bf16.gmra.mrb[0].mxu0 %v2207
      %v2347 = vpop.f32.mrb[0].mxu0
      %v2348 = vadd.f32 0.0, %v2347
      %v2349 = vpop.f32.mrb[0].mxu0
      %v2350 = vpop.f32.mrb[0].mxu0
      %v2351 = vadd.f32 0.0, %v2350
      %v2352 = vpop.f32.mrb[0].mxu0
      %2353 = vmatprep.mubr.bf16.mxu0 0
      %2354 = vmatmul.mubr.bf16.gmra.mrb[0].mxu0 %v2210
      %v2355 = vpop.f32.mrb[0].mxu0
      %v2356 = vadd.f32 0.0, %v2355
      %v2357 = vpop.f32.mrb[0].mxu0
      %v2358 = vpop.f32.mrb[0].mxu0
      %v2359 = vadd.f32 0.0, %v2358
      %v2360 = vpop.f32.mrb[0].mxu0
      %2361 = vmatprep.mubr.bf16.mxu0 0
      %2362 = vmatmul.mubr.bf16.gmra.mrb[0].mxu0 %v2213
      %v2363 = vpop.f32.mrb[0].mxu0
      %v2364 = vadd.f32 0.0, %v2363
      %v2365 = vpop.f32.mrb[0].mxu0
      %v2366 = vpop.f32.mrb[0].mxu0
      %v2367 = vadd.f32 0.0, %v2366
      %v2368 = vpop.f32.mrb[0].mxu0
      %2369 = vmatprep.mubr.bf16.mxu0 0
      %2370 = vmatmul.mubr.bf16.gmra.mrb[0].mxu0 %v2216
      %v2371 = vpop.f32.mrb[0].mxu0
      %v2372 = vadd.f32 0.0, %v2371
      %v2373 = vpop.f32.mrb[0].mxu0
      %v2374 = vpop.f32.mrb[0].mxu0
      %v2375 = vadd.f32 0.0, %v2374
      %v2376 = vpop.f32.mrb[0].mxu0
      %2377 = vmatprep.mubr.bf16.mxu0 0
      %2378 = vmatmul.mubr.bf16.gmra.mrb[0].mxu0 %v2219
      %v2379 = vpop.f32.mrb[0].mxu0
      %v2380 = vadd.f32 0.0, %v2379
      %v2381 = vpop.f32.mrb[0].mxu0
      %v2382 = vpop.f32.mrb[0].mxu0
      %v2383 = vadd.f32 0.0, %v2382
      %v2384 = vpop.f32.mrb[0].mxu0
      %2385 = vmatprep.mubr.bf16.mxu0 0
      %2386 = vmatmul.mubr.bf16.gmra.mrb[0].mxu0 %v2222
      %v2387 = vpop.f32.mrb[0].mxu0
      %v2388 = vadd.f32 0.0, %v2387
      %v2389 = vpop.f32.mrb[0].mxu0
      %v2390 = vpop.f32.mrb[0].mxu0
      %v2391 = vadd.f32 0.0, %v2390
      %v2392 = vpop.f32.mrb[0].mxu0
      %2393 = vmatprep.mubr.bf16.mxu0 0
      %2394 = vmatmul.mubr.bf16.gmra.mrb[0].mxu0 %v2225
      %v2395 = vpop.f32.mrb[0].mxu0
      %v2396 = vadd.f32 0.0, %v2395
      %v2397 = vpop.f32.mrb[0].mxu0
      %v2398 = vpop.f32.mrb[0].mxu0
      %v2399 = vadd.f32 0.0, %v2398
      %v2400 = vpop.f32.mrb[0].mxu0
      %2401 = vmatprep.mubr.bf16.mxu0 0
      %2402 = vmatmul.mubr.bf16.gmra.mrb[0].mxu0 %v2228
      %v2403 = vpop.f32.mrb[0].mxu0
      %v2404 = vadd.f32 0.0, %v2403
      %v2405 = vpop.f32.mrb[0].mxu0
      %v2406 = vpop.f32.mrb[0].mxu0
      %v2407 = vadd.f32 0.0, %v2406
      %v2408 = vpop.f32.mrb[0].mxu0
      %2409 = vdwg.mxu0
      %v2410 = vadd.f32 %v2096, %v2268
      %v2411 = vadd.f32 %v2097, %v2271
      %v2412 = vadd.f32 %v2098, %v2276
      %v2413 = vadd.f32 %v2099, %v2279
      %v2414 = vadd.f32 %v2100, %v2284
      %v2415 = vadd.f32 %v2101, %v2287
      %v2416 = vadd.f32 %v2102, %v2292
      %v2417 = vadd.f32 %v2103, %v2295
      %v2418 = vadd.f32 %v2104, %v2300
      %v2419 = vadd.f32 %v2105, %v2303
      %v2420 = vadd.f32 %v2106, %v2308
      %v2421 = vadd.f32 %v2107, %v2311
      %v2422 = vadd.f32 %v2108, %v2316
      %v2423 = vadd.f32 %v2109, %v2319
      %v2424 = vadd.f32 %v2110, %v2324
      %v2425 = vadd.f32 %v2111, %v2327
      %v2426 = vadd.f32 %v2112, %v2332
      %v2427 = vadd.f32 %v2113, %v2335
      %v2428 = vadd.f32 %v2114, %v2340
      %v2429 = vadd.f32 %v2115, %v2343
      %v2430 = vadd.f32 %v2116, %v2348
      %v2431 = vadd.f32 %v2117, %v2351
      %v2432 = vadd.f32 %v2118, %v2356
      %v2433 = vadd.f32 %v2119, %v2359
      %v2434 = vadd.f32 %v2120, %v2364
      %v2435 = vadd.f32 %v2121, %v2367
      %v2436 = vadd.f32 %v2122, %v2372
      %v2437 = vadd.f32 %v2123, %v2375
      %v2438 = vadd.f32 %v2124, %v2380
      %v2439 = vadd.f32 %v2125, %v2383
      %v2440 = vadd.f32 %v2126, %v2388
      %v2441 = vadd.f32 %v2127, %v2391
      %v2442 = vadd.f32 %v2128, %v2396
      %v2443 = vadd.f32 %v2129, %v2399
      %v2444 = vadd.f32 %v2130, %v2404
      %v2445 = vadd.f32 %v2131, %v2407
      %v2446 = vld [vmem:[%s183 + $0x10] sm:$0xc]
      %v2447 = vld [vmem:[%s183 + $0x14] sm:$0xf]
      %v2448 = vld [vmem:[%s183 + $0x18] sm:$0xf]
      %v2449 = vld [vmem:[%s183 + $0x1c] sm:$0xf]
      %v2450 = vld [vmem:[%s183 + $0x20] sm:$0xf]
      %v2451 = vld [vmem:[%s183 + $0x24] sm:$0xf]
      %v2452 = vld [vmem:[%s183 + $0x28] sm:$0xf]
      %v2453 = vld [vmem:[%s183 + $0x2c] sm:$0xf]
      %v2454 = vld [vmem:[%s183 + $0x30] sm:$0xf]
      %v2455 = vld [vmem:[%s183 + $0x34] sm:$0xf]
      %v2456 = vld [vmem:[%s183 + $0x38] sm:$0xf]
      %v2457 = vld [vmem:[%s183 + $0x3c] sm:$0xf]
      %v2458 = vld [vmem:[%s183 + $0x40] sm:$0xf]
      %v2459 = vld [vmem:[%s183 + $0x44] sm:$0xf]
      %v2460 = vld [vmem:[%s183 + $0x48] sm:$0xf]
      %v2461 = vld [vmem:[%s183 + $0x4c] sm:$0xf]
      %v2462 = vld [vmem:[%s183 + $0x50] sm:$0xf]
      %v2463 = vld [vmem:[%s183 + $0x54] sm:$0xf]
      %v2464 = vld [vmem:[%s183 + $0x58] sm:$0xf]
      %v2465 = vld [vmem:[%s183 + $0x5c] sm:$0xf]
      %v2466 = vld [vmem:[%s183 + $0x60] sm:$0xf]
      %v2467 = vld [vmem:[%s183 + $0x64] sm:$0xf]
      %v2468 = vld [vmem:[%s183 + $0x68] sm:$0xf]
      %v2469 = vld [vmem:[%s183 + $0x6c] sm:$0xf]
      %v2470 = vld [vmem:[%s183 + $0x70] sm:$0xf]
      %v2471 = vld [vmem:[%s183 + $0x74] sm:$0xf]
      %v2472 = vld [vmem:[%s183 + $0x78] sm:$0xf]
      %v2473 = vld [vmem:[%s183 + $0x7c] sm:$0xf]
      %v2474 = vld [vmem:[%s183 + $0x80] sm:$0xf]
      %v2475 = vld [vmem:[%s183 + $0x84] sm:$0xf]
      %v2476 = vld [vmem:[%s183 + $0x88] sm:$0xf]
      %v2477 = vld [vmem:[%s183 + $0x8c] sm:$0xf]
      %v2478 = vld [vmem:[%s183 + $0x90] sm:$0xf]
      %v2479 = vld [vmem:[%s183 + $0x94] sm:$0xf]
      %v2480 = vld [vmem:[%s183 + $0x98] sm:$0xf]
      %v2481 = vld [vmem:[%s183 + $0x9c] sm:$0xf]
      %v2482 = vld [vmem:[%s183 + $0xa0] sm:$0x3]
      %s2483 = scalar_lea.vmem %s1, 12
      %v2484 = vld [vmem:[%s2483] sm:$0x3]
      %v2522 = vunpack.c.l.b16 %v2446
      %v2523 = vunpack.c.l.b16 %v2447
      %v2524 = vunpack.c.l.b16 %v2448
      %v2525 = vunpack.c.l.b16 %v2449
      %v2526 = vunpack.c.l.b16 %v2450
      %v2527 = vunpack.c.l.b16 %v2451
      %v2528 = vunpack.c.l.b16 %v2452
      %v2529 = vunpack.c.l.b16 %v2453
      %v2530 = vunpack.c.l.b16 %v2454
      %v2531 = vunpack.c.l.b16 %v2455
      %v2532 = vunpack.c.l.b16 %v2456
      %v2533 = vunpack.c.l.b16 %v2457
      %v2534 = vunpack.c.l.b16 %v2458
      %v2535 = vunpack.c.l.b16 %v2459
      %v2536 = vunpack.c.l.b16 %v2460
      %v2537 = vunpack.c.l.b16 %v2461
      %v2538 = vunpack.c.l.b16 %v2462
      %v2539 = vunpack.c.l.b16 %v2463
      %v2540 = vunpack.c.l.b16 %v2464
      %v2541 = vunpack.c.l.b16 %v2465
      %v2542 = vunpack.c.l.b16 %v2466
      %v2543 = vunpack.c.l.b16 %v2467
      %v2544 = vunpack.c.l.b16 %v2468
      %v2545 = vunpack.c.l.b16 %v2469
      %v2546 = vunpack.c.l.b16 %v2470
      %v2547 = vunpack.c.l.b16 %v2471
      %v2548 = vunpack.c.l.b16 %v2472
      %v2549 = vunpack.c.l.b16 %v2473
      %v2550 = vunpack.c.l.b16 %v2474
      %v2551 = vunpack.c.l.b16 %v2475
      %v2552 = vunpack.c.l.b16 %v2476
      %v2553 = vunpack.c.l.b16 %v2477
      %v2554 = vunpack.c.l.b16 %v2478
      %v2555 = vunpack.c.l.b16 %v2479
      %v2556 = vunpack.c.l.b16 %v2480
      %v2557 = vunpack.c.l.b16 %v2481
      %v2558 = vunpack.c.l.b16 %v2482
      %v2559 = vpack.c.b16 %v2523, %v2522
      %v2560 = vpack.c.b16 %v2525, %v2524
      %v2561 = vpack.c.b16 %v2527, %v2526
      %v2562 = vpack.c.b16 %v2529, %v2528
      %v2563 = vpack.c.b16 %v2531, %v2530
      %v2564 = vpack.c.b16 %v2533, %v2532
      %v2565 = vpack.c.b16 %v2535, %v2534
      %v2566 = vpack.c.b16 %v2537, %v2536
      %v2567 = vpack.c.b16 %v2539, %v2538
      %v2568 = vpack.c.b16 %v2541, %v2540
      %v2569 = vpack.c.b16 %v2543, %v2542
      %v2570 = vpack.c.b16 %v2545, %v2544
      %v2571 = vpack.c.b16 %v2547, %v2546
      %v2572 = vpack.c.b16 %v2549, %v2548
      %v2573 = vpack.c.b16 %v2551, %v2550
      %v2574 = vpack.c.b16 %v2553, %v2552
      %v2575 = vpack.c.b16 %v2555, %v2554
      %v2576 = vpack.c.b16 %v2557, %v2556
      %v2577 = vpack.c.b16 %v2558, %v2558
      %v2578 = vrot.slane %v2559, 2
      %v2579 = vrot.slane %v2560, 2
      %v2580 = vsel %vm2138, %v2578, %v2579
      %v2581 = vrot.slane %v2561, 2
      %v2582 = vsel %vm2138, %v2579, %v2581
      %v2583 = vrot.slane %v2562, 2
      %v2584 = vsel %vm2138, %v2581, %v2583
      %v2585 = vrot.slane %v2563, 2
      %v2586 = vsel %vm2138, %v2583, %v2585
      %v2587 = vrot.slane %v2564, 2
      %v2588 = vsel %vm2138, %v2585, %v2587
      %v2589 = vrot.slane %v2565, 2
      %v2590 = vsel %vm2138, %v2587, %v2589
      %v2591 = vrot.slane %v2566, 2
      %v2592 = vsel %vm2138, %v2589, %v2591
      %v2593 = vrot.slane %v2567, 2
      %v2594 = vsel %vm2138, %v2591, %v2593
      %v2595 = vrot.slane %v2568, 2
      %v2596 = vsel %vm2138, %v2593, %v2595
      %v2597 = vrot.slane %v2569, 2
      %v2598 = vsel %vm2138, %v2595, %v2597
      %v2599 = vrot.slane %v2570, 2
      %v2600 = vsel %vm2138, %v2597, %v2599
      %v2601 = vrot.slane %v2571, 2
      %v2602 = vsel %vm2138, %v2599, %v2601
      %v2603 = vrot.slane %v2572, 2
      %v2604 = vsel %vm2138, %v2601, %v2603
      %v2605 = vrot.slane %v2573, 2
      %v2606 = vsel %vm2138, %v2603, %v2605
      %v2607 = vrot.slane %v2574, 2
      %v2608 = vsel %vm2138, %v2605, %v2607
      %v2609 = vrot.slane %v2575, 2
      %v2610 = vsel %vm2138, %v2607, %v2609
      %v2611 = vrot.slane %v2576, 2
      %v2612 = vsel %vm2138, %v2609, %v2611
      %v2613 = vrot.slane %v2577, 2
      %v2614 = vsel %vm2138, %v2611, %v2613
      %v2616 = vsel %vm477, %v2580, 0
      %v2619 = vsel %vm477, %v2582, 0
      %v2622 = vsel %vm477, %v2584, 0
      %v2625 = vsel %vm477, %v2586, 0
      %v2628 = vsel %vm477, %v2588, 0
      %v2631 = vsel %vm477, %v2590, 0
      %v2634 = vsel %vm477, %v2592, 0
      %v2637 = vsel %vm477, %v2594, 0
      %v2640 = vsel %vm477, %v2596, 0
      %v2643 = vsel %vm477, %v2598, 0
      %v2646 = vsel %vm477, %v2600, 0
      %v2649 = vsel %vm477, %v2602, 0
      %v2652 = vsel %vm477, %v2604, 0
      %v2655 = vsel %vm477, %v2606, 0
      %v2658 = vsel %vm477, %v2608, 0
      %v2661 = vsel %vm477, %v2610, 0
      %v2664 = vsel %vm477, %v2612, 0
      %v2667 = vsel %vm477, %v2614, 0
      %v2670 = vand.u32 %v2484, %v535
      %2672 = vmatprep.subr.bf16.mxu0 0
      %2673 = vmatpush1.bf16.msra.mxu0 %v2670
      %2674 = vmatprep.subr.bf16.mxu0 0
      %2675 = vmatpush1.bf16.msra.mxu0 0
      %2676 = vmatprep.subr.bf16.mxu0 0
      %2677 = vmatpush1.bf16.msra.mxu0 0
      %2678 = vmatprep.subr.bf16.mxu0 0
      %2679 = vmatpush1.bf16.msra.mxu0 0
      %2680 = vmatprep.subr.bf16.mxu0 0
      %2681 = vmatpush1.bf16.msra.mxu0 0
      %2682 = vmatprep.subr.bf16.mxu0 0
      %2683 = vmatpush1.bf16.msra.mxu0 0
      %2684 = vmatprep.subr.bf16.mxu0 0
      %2685 = vmatpush1.bf16.msra.mxu0 0
      %2686 = vmatprep.subr.bf16.mxu0 0
      %2687 = vmatpush1.bf16.msra.mxu0 0
      %2688 = vmatprep.subr.bf16.mxu0 0
      %2689 = vmatpush1.bf16.msra.mxu0 0
      %2690 = vmatprep.subr.bf16.mxu0 0
      %2691 = vmatpush1.bf16.msra.mxu0 0
      %2692 = vmatprep.subr.bf16.mxu0 0
      %2693 = vmatpush1.bf16.msra.mxu0 0
      %2694 = vmatprep.subr.bf16.mxu0 0
      %2695 = vmatpush1.bf16.msra.mxu0 0
      %2696 = vmatprep.subr.bf16.mxu0 0
      %2697 = vmatpush1.bf16.msra.mxu0 0
      %2698 = vmatprep.subr.bf16.mxu0 0
      %2699 = vmatpush1.bf16.msra.mxu0 0
      %2700 = vmatprep.subr.bf16.mxu0 0
      %2701 = vmatpush1.bf16.msra.mxu0 0
      %2702 = vmatprep.subr.bf16.mxu0 0
      %2703 = vmatpush1.bf16.msra.mxu0 0
      %2704 = vmatprep.mubr.bf16.mxu0 0
      %2705 = vmatmul.mubr.bf16.gmra.mrb[0].mxu0 %v2616
      %v2706 = vpop.f32.mrb[0].mxu0
      %v2707 = vadd.f32 0.0, %v2706
      %v2708 = vpop.f32.mrb[0].mxu0
      %v2709 = vpop.f32.mrb[0].mxu0
      %v2710 = vadd.f32 0.0, %v2709
      %v2711 = vpop.f32.mrb[0].mxu0
      %2712 = vmatprep.mubr.bf16.mxu0 0
      %2713 = vmatmul.mubr.bf16.gmra.mrb[0].mxu0 %v2619
      %v2714 = vpop.f32.mrb[0].mxu0
      %v2715 = vadd.f32 0.0, %v2714
      %v2716 = vpop.f32.mrb[0].mxu0
      %v2717 = vpop.f32.mrb[0].mxu0
      %v2718 = vadd.f32 0.0, %v2717
      %v2719 = vpop.f32.mrb[0].mxu0
      %2720 = vmatprep.mubr.bf16.mxu0 0
      %2721 = vmatmul.mubr.bf16.gmra.mrb[0].mxu0 %v2622
      %v2722 = vpop.f32.mrb[0].mxu0
      %v2723 = vadd.f32 0.0, %v2722
      %v2724 = vpop.f32.mrb[0].mxu0
      %v2725 = vpop.f32.mrb[0].mxu0
      %v2726 = vadd.f32 0.0, %v2725
      %v2727 = vpop.f32.mrb[0].mxu0
      %2728 = vmatprep.mubr.bf16.mxu0 0
      %2729 = vmatmul.mubr.bf16.gmra.mrb[0].mxu0 %v2625
      %v2730 = vpop.f32.mrb[0].mxu0
      %v2731 = vadd.f32 0.0, %v2730
      %v2732 = vpop.f32.mrb[0].mxu0
      %v2733 = vpop.f32.mrb[0].mxu0
      %v2734 = vadd.f32 0.0, %v2733
      %v2735 = vpop.f32.mrb[0].mxu0
      %2736 = vmatprep.mubr.bf16.mxu0 0
      %2737 = vmatmul.mubr.bf16.gmra.mrb[0].mxu0 %v2628
      %v2738 = vpop.f32.mrb[0].mxu0
      %v2739 = vadd.f32 0.0, %v2738
      %v2740 = vpop.f32.mrb[0].mxu0
      %v2741 = vpop.f32.mrb[0].mxu0
      %v2742 = vadd.f32 0.0, %v2741
      %v2743 = vpop.f32.mrb[0].mxu0
      %2744 = vmatprep.mubr.bf16.mxu0 0
      %2745 = vmatmul.mubr.bf16.gmra.mrb[0].mxu0 %v2631
      %v2746 = vpop.f32.mrb[0].mxu0
      %v2747 = vadd.f32 0.0, %v2746
      %v2748 = vpop.f32.mrb[0].mxu0
      %v2749 = vpop.f32.mrb[0].mxu0
      %v2750 = vadd.f32 0.0, %v2749
      %v2751 = vpop.f32.mrb[0].mxu0
      %2752 = vmatprep.mubr.bf16.mxu0 0
      %2753 = vmatmul.mubr.bf16.gmra.mrb[0].mxu0 %v2634
      %v2754 = vpop.f32.mrb[0].mxu0
      %v2755 = vadd.f32 0.0, %v2754
      %v2756 = vpop.f32.mrb[0].mxu0
      %v2757 = vpop.f32.mrb[0].mxu0
      %v2758 = vadd.f32 0.0, %v2757
      %v2759 = vpop.f32.mrb[0].mxu0
      %2760 = vmatprep.mubr.bf16.mxu0 0
      %2761 = vmatmul.mubr.bf16.gmra.mrb[0].mxu0 %v2637
      %v2762 = vpop.f32.mrb[0].mxu0
      %v2763 = vadd.f32 0.0, %v2762
      %v2764 = vpop.f32.mrb[0].mxu0
      %v2765 = vpop.f32.mrb[0].mxu0
      %v2766 = vadd.f32 0.0, %v2765
      %v2767 = vpop.f32.mrb[0].mxu0
      %2768 = vmatprep.mubr.bf16.mxu0 0
      %2769 = vmatmul.mubr.bf16.gmra.mrb[0].mxu0 %v2640
      %v2770 = vpop.f32.mrb[0].mxu0
      %v2771 = vadd.f32 0.0, %v2770
      %v2772 = vpop.f32.mrb[0].mxu0
      %v2773 = vpop.f32.mrb[0].mxu0
      %v2774 = vadd.f32 0.0, %v2773
      %v2775 = vpop.f32.mrb[0].mxu0
      %2776 = vmatprep.mubr.bf16.mxu0 0
      %2777 = vmatmul.mubr.bf16.gmra.mrb[0].mxu0 %v2643
      %v2778 = vpop.f32.mrb[0].mxu0
      %v2779 = vadd.f32 0.0, %v2778
      %v2780 = vpop.f32.mrb[0].mxu0
      %v2781 = vpop.f32.mrb[0].mxu0
      %v2782 = vadd.f32 0.0, %v2781
      %v2783 = vpop.f32.mrb[0].mxu0
      %2784 = vmatprep.mubr.bf16.mxu0 0
      %2785 = vmatmul.mubr.bf16.gmra.mrb[0].mxu0 %v2646
      %v2786 = vpop.f32.mrb[0].mxu0
      %v2787 = vadd.f32 0.0, %v2786
      %v2788 = vpop.f32.mrb[0].mxu0
      %v2789 = vpop.f32.mrb[0].mxu0
      %v2790 = vadd.f32 0.0, %v2789
      %v2791 = vpop.f32.mrb[0].mxu0
      %2792 = vmatprep.mubr.bf16.mxu0 0
      %2793 = vmatmul.mubr.bf16.gmra.mrb[0].mxu0 %v2649
      %v2794 = vpop.f32.mrb[0].mxu0
      %v2795 = vadd.f32 0.0, %v2794
      %v2796 = vpop.f32.mrb[0].mxu0
      %v2797 = vpop.f32.mrb[0].mxu0
      %v2798 = vadd.f32 0.0, %v2797
      %v2799 = vpop.f32.mrb[0].mxu0
      %2800 = vmatprep.mubr.bf16.mxu0 0
      %2801 = vmatmul.mubr.bf16.gmra.mrb[0].mxu0 %v2652
      %v2802 = vpop.f32.mrb[0].mxu0
      %v2803 = vadd.f32 0.0, %v2802
      %v2804 = vpop.f32.mrb[0].mxu0
      %v2805 = vpop.f32.mrb[0].mxu0
      %v2806 = vadd.f32 0.0, %v2805
      %v2807 = vpop.f32.mrb[0].mxu0
      %2808 = vmatprep.mubr.bf16.mxu0 0
      %2809 = vmatmul.mubr.bf16.gmra.mrb[0].mxu0 %v2655
      %v2810 = vpop.f32.mrb[0].mxu0
      %v2811 = vadd.f32 0.0, %v2810
      %v2812 = vpop.f32.mrb[0].mxu0
      %v2813 = vpop.f32.mrb[0].mxu0
      %v2814 = vadd.f32 0.0, %v2813
      %v2815 = vpop.f32.mrb[0].mxu0
      %2816 = vmatprep.mubr.bf16.mxu0 0
      %2817 = vmatmul.mubr.bf16.gmra.mrb[0].mxu0 %v2658
      %v2818 = vpop.f32.mrb[0].mxu0
      %v2819 = vadd.f32 0.0, %v2818
      %v2820 = vpop.f32.mrb[0].mxu0
      %v2821 = vpop.f32.mrb[0].mxu0
      %v2822 = vadd.f32 0.0, %v2821
      %v2823 = vpop.f32.mrb[0].mxu0
      %2824 = vmatprep.mubr.bf16.mxu0 0
      %2825 = vmatmul.mubr.bf16.gmra.mrb[0].mxu0 %v2661
      %v2826 = vpop.f32.mrb[0].mxu0
      %v2827 = vadd.f32 0.0, %v2826
      %v2828 = vpop.f32.mrb[0].mxu0
      %v2829 = vpop.f32.mrb[0].mxu0
      %v2830 = vadd.f32 0.0, %v2829
      %v2831 = vpop.f32.mrb[0].mxu0
      %2832 = vmatprep.mubr.bf16.mxu0 0
      %2833 = vmatmul.mubr.bf16.gmra.mrb[0].mxu0 %v2664
      %v2834 = vpop.f32.mrb[0].mxu0
      %v2835 = vadd.f32 0.0, %v2834
      %v2836 = vpop.f32.mrb[0].mxu0
      %v2837 = vpop.f32.mrb[0].mxu0
      %v2838 = vadd.f32 0.0, %v2837
      %v2839 = vpop.f32.mrb[0].mxu0
      %2840 = vmatprep.mubr.bf16.mxu0 0
      %2841 = vmatmul.mubr.bf16.gmra.mrb[0].mxu0 %v2667
      %v2842 = vpop.f32.mrb[0].mxu0
      %v2843 = vadd.f32 0.0, %v2842
      %v2844 = vpop.f32.mrb[0].mxu0
      %v2845 = vpop.f32.mrb[0].mxu0
      %v2846 = vadd.f32 0.0, %v2845
      %v2847 = vpop.f32.mrb[0].mxu0
      %2848 = vdwg.mxu0
      %v2849 = vadd.f32 %v2410, %v2707
      %v2850 = vadd.f32 %v2411, %v2710
      %v2851 = vadd.f32 %v2412, %v2715
      %v2852 = vadd.f32 %v2413, %v2718
      %v2853 = vadd.f32 %v2414, %v2723
      %v2854 = vadd.f32 %v2415, %v2726
      %v2855 = vadd.f32 %v2416, %v2731
      %v2856 = vadd.f32 %v2417, %v2734
      %v2857 = vadd.f32 %v2418, %v2739
      %v2858 = vadd.f32 %v2419, %v2742
      %v2859 = vadd.f32 %v2420, %v2747
      %v2860 = vadd.f32 %v2421, %v2750
      %v2861 = vadd.f32 %v2422, %v2755
      %v2862 = vadd.f32 %v2423, %v2758
      %v2863 = vadd.f32 %v2424, %v2763
      %v2864 = vadd.f32 %v2425, %v2766
      %v2865 = vadd.f32 %v2426, %v2771
      %v2866 = vadd.f32 %v2427, %v2774
      %v2867 = vadd.f32 %v2428, %v2779
      %v2868 = vadd.f32 %v2429, %v2782
      %v2869 = vadd.f32 %v2430, %v2787
      %v2870 = vadd.f32 %v2431, %v2790
      %v2871 = vadd.f32 %v2432, %v2795
      %v2872 = vadd.f32 %v2433, %v2798
      %v2873 = vadd.f32 %v2434, %v2803
      %v2874 = vadd.f32 %v2435, %v2806
      %v2875 = vadd.f32 %v2436, %v2811
      %v2876 = vadd.f32 %v2437, %v2814
      %v2877 = vadd.f32 %v2438, %v2819
      %v2878 = vadd.f32 %v2439, %v2822
      %v2879 = vadd.f32 %v2440, %v2827
      %v2880 = vadd.f32 %v2441, %v2830
      %v2881 = vadd.f32 %v2442, %v2835
      %v2882 = vadd.f32 %v2443, %v2838
      %v2883 = vadd.f32 %v2444, %v2843
      %v2884 = vadd.f32 %v2445, %v2846
      %v2885 = vld [vmem:[%s183 + $0xa0] sm:$0x7]
      %s2886 = scalar_lea.vmem %s1, 14
      %v2887 = vld [vmem:[%s2886] sm:$0x3]
      %v2889 = vunpack.c.l.b16 %v2885
      %v2890 = vpack.c.b16 %v2889, %v2889
      %vm2891 = vsmask.f32 5376
      %v2893 = vshrl.u32 %v2559, 16
      %v2895 = vrot.slane %v2893, 2
      %v2896 = vshll.u32 %v2559, 16
      %v2898 = vrot.slane %v2896, 3
      %v2899 = vor.u32 %v2895, %v2898
      %v2901 = vshrl.u32 %v2560, 16
      %v2903 = vrot.slane %v2901, 2
      %v2904 = vshll.u32 %v2560, 16
      %v2906 = vrot.slane %v2904, 3
      %v2907 = vor.u32 %v2903, %v2906
      %v2908 = vsel %vm2891, %v2899, %v2907
      %v2910 = vshrl.u32 %v2561, 16
      %v2912 = vrot.slane %v2910, 2
      %v2913 = vshll.u32 %v2561, 16
      %v2915 = vrot.slane %v2913, 3
      %v2916 = vor.u32 %v2912, %v2915
      %v2917 = vsel %vm2891, %v2907, %v2916
      %v2919 = vshrl.u32 %v2562, 16
      %v2921 = vrot.slane %v2919, 2
      %v2922 = vshll.u32 %v2562, 16
      %v2924 = vrot.slane %v2922, 3
      %v2925 = vor.u32 %v2921, %v2924
      %v2926 = vsel %vm2891, %v2916, %v2925
      %v2928 = vshrl.u32 %v2563, 16
      %v2930 = vrot.slane %v2928, 2
      %v2931 = vshll.u32 %v2563, 16
      %v2933 = vrot.slane %v2931, 3
      %v2934 = vor.u32 %v2930, %v2933
      %v2935 = vsel %vm2891, %v2925, %v2934
      %v2937 = vshrl.u32 %v2564, 16
      %v2939 = vrot.slane %v2937, 2
      %v2940 = vshll.u32 %v2564, 16
      %v2942 = vrot.slane %v2940, 3
      %v2943 = vor.u32 %v2939, %v2942
      %v2944 = vsel %vm2891, %v2934, %v2943
      %v2946 = vshrl.u32 %v2565, 16
      %v2948 = vrot.slane %v2946, 2
      %v2949 = vshll.u32 %v2565, 16
      %v2951 = vrot.slane %v2949, 3
      %v2952 = vor.u32 %v2948, %v2951
      %v2953 = vsel %vm2891, %v2943, %v2952
      %v2955 = vshrl.u32 %v2566, 16
      %v2957 = vrot.slane %v2955, 2
      %v2958 = vshll.u32 %v2566, 16
      %v2960 = vrot.slane %v2958, 3
      %v2961 = vor.u32 %v2957, %v2960
      %v2962 = vsel %vm2891, %v2952, %v2961
      %v2964 = vshrl.u32 %v2567, 16
      %v2966 = vrot.slane %v2964, 2
      %v2967 = vshll.u32 %v2567, 16
      %v2969 = vrot.slane %v2967, 3
      %v2970 = vor.u32 %v2966, %v2969
      %v2971 = vsel %vm2891, %v2961, %v2970
      %v2973 = vshrl.u32 %v2568, 16
      %v2975 = vrot.slane %v2973, 2
      %v2976 = vshll.u32 %v2568, 16
      %v2978 = vrot.slane %v2976, 3
      %v2979 = vor.u32 %v2975, %v2978
      %v2980 = vsel %vm2891, %v2970, %v2979
      %v2982 = vshrl.u32 %v2569, 16
      %v2984 = vrot.slane %v2982, 2
      %v2985 = vshll.u32 %v2569, 16
      %v2987 = vrot.slane %v2985, 3
      %v2988 = vor.u32 %v2984, %v2987
      %v2989 = vsel %vm2891, %v2979, %v2988
      %v2991 = vshrl.u32 %v2570, 16
      %v2993 = vrot.slane %v2991, 2
      %v2994 = vshll.u32 %v2570, 16
      %v2996 = vrot.slane %v2994, 3
      %v2997 = vor.u32 %v2993, %v2996
      %v2998 = vsel %vm2891, %v2988, %v2997
      %v3000 = vshrl.u32 %v2571, 16
      %v3002 = vrot.slane %v3000, 2
      %v3003 = vshll.u32 %v2571, 16
      %v3005 = vrot.slane %v3003, 3
      %v3006 = vor.u32 %v3002, %v3005
      %v3007 = vsel %vm2891, %v2997, %v3006
      %v3009 = vshrl.u32 %v2572, 16
      %v3011 = vrot.slane %v3009, 2
      %v3012 = vshll.u32 %v2572, 16
      %v3014 = vrot.slane %v3012, 3
      %v3015 = vor.u32 %v3011, %v3014
      %v3016 = vsel %vm2891, %v3006, %v3015
      %v3018 = vshrl.u32 %v2573, 16
      %v3020 = vrot.slane %v3018, 2
      %v3021 = vshll.u32 %v2573, 16
      %v3023 = vrot.slane %v3021, 3
      %v3024 = vor.u32 %v3020, %v3023
      %v3025 = vsel %vm2891, %v3015, %v3024
      %v3027 = vshrl.u32 %v2574, 16
      %v3029 = vrot.slane %v3027, 2
      %v3030 = vshll.u32 %v2574, 16
      %v3032 = vrot.slane %v3030, 3
      %v3033 = vor.u32 %v3029, %v3032
      %v3034 = vsel %vm2891, %v3024, %v3033
      %v3036 = vshrl.u32 %v2575, 16
      %v3038 = vrot.slane %v3036, 2
      %v3039 = vshll.u32 %v2575, 16
      %v3041 = vrot.slane %v3039, 3
      %v3042 = vor.u32 %v3038, %v3041
      %v3043 = vsel %vm2891, %v3033, %v3042
      %v3045 = vshrl.u32 %v2576, 16
      %v3047 = vrot.slane %v3045, 2
      %v3048 = vshll.u32 %v2576, 16
      %v3050 = vrot.slane %v3048, 3
      %v3051 = vor.u32 %v3047, %v3050
      %v3052 = vsel %vm2891, %v3042, %v3051
      %v3054 = vshrl.u32 %v2890, 16
      %v3056 = vrot.slane %v3054, 2
      %v3057 = vshll.u32 %v2890, 16
      %v3059 = vrot.slane %v3057, 3
      %v3060 = vor.u32 %v3056, %v3059
      %v3061 = vsel %vm2891, %v3051, %v3060
      %v3063 = vsel %vm477, %v2908, 0
      %v3066 = vsel %vm477, %v2917, 0
      %v3069 = vsel %vm477, %v2926, 0
      %v3072 = vsel %vm477, %v2935, 0
      %v3075 = vsel %vm477, %v2944, 0
      %v3078 = vsel %vm477, %v2953, 0
      %v3081 = vsel %vm477, %v2962, 0
      %v3084 = vsel %vm477, %v2971, 0
      %v3087 = vsel %vm477, %v2980, 0
      %v3090 = vsel %vm477, %v2989, 0
      %v3093 = vsel %vm477, %v2998, 0
      %v3096 = vsel %vm477, %v3007, 0
      %v3099 = vsel %vm477, %v3016, 0
      %v3102 = vsel %vm477, %v3025, 0
      %v3105 = vsel %vm477, %v3034, 0
      %v3108 = vsel %vm477, %v3043, 0
      %v3111 = vsel %vm477, %v3052, 0
      %v3114 = vsel %vm477, %v3061, 0
      %v3117 = vand.u32 %v2887, %v535
      %3119 = vmatprep.subr.bf16.mxu0 0
      %3120 = vmatpush1.bf16.msra.mxu0 %v3117
      %3121 = vmatprep.subr.bf16.mxu0 0
      %3122 = vmatpush1.bf16.msra.mxu0 0
      %3123 = vmatprep.subr.bf16.mxu0 0
      %3124 = vmatpush1.bf16.msra.mxu0 0
      %3125 = vmatprep.subr.bf16.mxu0 0
      %3126 = vmatpush1.bf16.msra.mxu0 0
      %3127 = vmatprep.subr.bf16.mxu0 0
      %3128 = vmatpush1.bf16.msra.mxu0 0
      %3129 = vmatprep.subr.bf16.mxu0 0
      %3130 = vmatpush1.bf16.msra.mxu0 0
      %3131 = vmatprep.subr.bf16.mxu0 0
      %3132 = vmatpush1.bf16.msra.mxu0 0
      %3133 = vmatprep.subr.bf16.mxu0 0
      %3134 = vmatpush1.bf16.msra.mxu0 0
      %3135 = vmatprep.subr.bf16.mxu0 0
      %3136 = vmatpush1.bf16.msra.mxu0 0
      %3137 = vmatprep.subr.bf16.mxu0 0
      %3138 = vmatpush1.bf16.msra.mxu0 0
      %3139 = vmatprep.subr.bf16.mxu0 0
      %3140 = vmatpush1.bf16.msra.mxu0 0
      %3141 = vmatprep.subr.bf16.mxu0 0
      %3142 = vmatpush1.bf16.msra.mxu0 0
      %3143 = vmatprep.subr.bf16.mxu0 0
      %3144 = vmatpush1.bf16.msra.mxu0 0
      %3145 = vmatprep.subr.bf16.mxu0 0
      %3146 = vmatpush1.bf16.msra.mxu0 0
      %3147 = vmatprep.subr.bf16.mxu0 0
      %3148 = vmatpush1.bf16.msra.mxu0 0
      %3149 = vmatprep.subr.bf16.mxu0 0
      %3150 = vmatpush1.bf16.msra.mxu0 0
      %3151 = vmatprep.mubr.bf16.mxu0 0
      %3152 = vmatmul.mubr.bf16.gmra.mrb[0].mxu0 %v3063
      %v3153 = vpop.f32.mrb[0].mxu0
      %v3154 = vadd.f32 0.0, %v3153
      %v3155 = vpop.f32.mrb[0].mxu0
      %v3156 = vpop.f32.mrb[0].mxu0
      %v3157 = vadd.f32 0.0, %v3156
      %v3158 = vpop.f32.mrb[0].mxu0
      %3159 = vmatprep.mubr.bf16.mxu0 0
      %3160 = vmatmul.mubr.bf16.gmra.mrb[0].mxu0 %v3066
      %v3161 = vpop.f32.mrb[0].mxu0
      %v3162 = vadd.f32 0.0, %v3161
      %v3163 = vpop.f32.mrb[0].mxu0
      %v3164 = vpop.f32.mrb[0].mxu0
      %v3165 = vadd.f32 0.0, %v3164
      %v3166 = vpop.f32.mrb[0].mxu0
      %3167 = vmatprep.mubr.bf16.mxu0 0
      %3168 = vmatmul.mubr.bf16.gmra.mrb[0].mxu0 %v3069
      %v3169 = vpop.f32.mrb[0].mxu0
      %v3170 = vadd.f32 0.0, %v3169
      %v3171 = vpop.f32.mrb[0].mxu0
      %v3172 = vpop.f32.mrb[0].mxu0
      %v3173 = vadd.f32 0.0, %v3172
      %v3174 = vpop.f32.mrb[0].mxu0
      %3175 = vmatprep.mubr.bf16.mxu0 0
      %3176 = vmatmul.mubr.bf16.gmra.mrb[0].mxu0 %v3072
      %v3177 = vpop.f32.mrb[0].mxu0
      %v3178 = vadd.f32 0.0, %v3177
      %v3179 = vpop.f32.mrb[0].mxu0
      %v3180 = vpop.f32.mrb[0].mxu0
      %v3181 = vadd.f32 0.0, %v3180
      %v3182 = vpop.f32.mrb[0].mxu0
      %3183 = vmatprep.mubr.bf16.mxu0 0
      %3184 = vmatmul.mubr.bf16.gmra.mrb[0].mxu0 %v3075
      %v3185 = vpop.f32.mrb[0].mxu0
      %v3186 = vadd.f32 0.0, %v3185
      %v3187 = vpop.f32.mrb[0].mxu0
      %v3188 = vpop.f32.mrb[0].mxu0
      %v3189 = vadd.f32 0.0, %v3188
      %v3190 = vpop.f32.mrb[0].mxu0
      %3191 = vmatprep.mubr.bf16.mxu0 0
      %3192 = vmatmul.mubr.bf16.gmra.mrb[0].mxu0 %v3078
      %v3193 = vpop.f32.mrb[0].mxu0
      %v3194 = vadd.f32 0.0, %v3193
      %v3195 = vpop.f32.mrb[0].mxu0
      %v3196 = vpop.f32.mrb[0].mxu0
      %v3197 = vadd.f32 0.0, %v3196
      %v3198 = vpop.f32.mrb[0].mxu0
      %3199 = vmatprep.mubr.bf16.mxu0 0
      %3200 = vmatmul.mubr.bf16.gmra.mrb[0].mxu0 %v3081
      %v3201 = vpop.f32.mrb[0].mxu0
      %v3202 = vadd.f32 0.0, %v3201
      %v3203 = vpop.f32.mrb[0].mxu0
      %v3204 = vpop.f32.mrb[0].mxu0
      %v3205 = vadd.f32 0.0, %v3204
      %v3206 = vpop.f32.mrb[0].mxu0
      %3207 = vmatprep.mubr.bf16.mxu0 0
      %3208 = vmatmul.mubr.bf16.gmra.mrb[0].mxu0 %v3084
      %v3209 = vpop.f32.mrb[0].mxu0
      %v3210 = vadd.f32 0.0, %v3209
      %v3211 = vpop.f32.mrb[0].mxu0
      %v3212 = vpop.f32.mrb[0].mxu0
      %v3213 = vadd.f32 0.0, %v3212
      %v3214 = vpop.f32.mrb[0].mxu0
      %3215 = vmatprep.mubr.bf16.mxu0 0
      %3216 = vmatmul.mubr.bf16.gmra.mrb[0].mxu0 %v3087
      %v3217 = vpop.f32.mrb[0].mxu0
      %v3218 = vadd.f32 0.0, %v3217
      %v3219 = vpop.f32.mrb[0].mxu0
      %v3220 = vpop.f32.mrb[0].mxu0
      %v3221 = vadd.f32 0.0, %v3220
      %v3222 = vpop.f32.mrb[0].mxu0
      %3223 = vmatprep.mubr.bf16.mxu0 0
      %3224 = vmatmul.mubr.bf16.gmra.mrb[0].mxu0 %v3090
      %v3225 = vpop.f32.mrb[0].mxu0
      %v3226 = vadd.f32 0.0, %v3225
      %v3227 = vpop.f32.mrb[0].mxu0
      %v3228 = vpop.f32.mrb[0].mxu0
      %v3229 = vadd.f32 0.0, %v3228
      %v3230 = vpop.f32.mrb[0].mxu0
      %3231 = vmatprep.mubr.bf16.mxu0 0
      %3232 = vmatmul.mubr.bf16.gmra.mrb[0].mxu0 %v3093
      %v3233 = vpop.f32.mrb[0].mxu0
      %v3234 = vadd.f32 0.0, %v3233
      %v3235 = vpop.f32.mrb[0].mxu0
      %v3236 = vpop.f32.mrb[0].mxu0
      %v3237 = vadd.f32 0.0, %v3236
      %v3238 = vpop.f32.mrb[0].mxu0
      %3239 = vmatprep.mubr.bf16.mxu0 0
      %3240 = vmatmul.mubr.bf16.gmra.mrb[0].mxu0 %v3096
      %v3241 = vpop.f32.mrb[0].mxu0
      %v3242 = vadd.f32 0.0, %v3241
      %v3243 = vpop.f32.mrb[0].mxu0
      %v3244 = vpop.f32.mrb[0].mxu0
      %v3245 = vadd.f32 0.0, %v3244
      %v3246 = vpop.f32.mrb[0].mxu0
      %3247 = vmatprep.mubr.bf16.mxu0 0
      %3248 = vmatmul.mubr.bf16.gmra.mrb[0].mxu0 %v3099
      %v3249 = vpop.f32.mrb[0].mxu0
      %v3250 = vadd.f32 0.0, %v3249
      %v3251 = vpop.f32.mrb[0].mxu0
      %v3252 = vpop.f32.mrb[0].mxu0
      %v3253 = vadd.f32 0.0, %v3252
      %v3254 = vpop.f32.mrb[0].mxu0
      %3255 = vmatprep.mubr.bf16.mxu0 0
      %3256 = vmatmul.mubr.bf16.gmra.mrb[0].mxu0 %v3102
      %v3257 = vpop.f32.mrb[0].mxu0
      %v3258 = vadd.f32 0.0, %v3257
      %v3259 = vpop.f32.mrb[0].mxu0
      %v3260 = vpop.f32.mrb[0].mxu0
      %v3261 = vadd.f32 0.0, %v3260
      %v3262 = vpop.f32.mrb[0].mxu0
      %3263 = vmatprep.mubr.bf16.mxu0 0
      %3264 = vmatmul.mubr.bf16.gmra.mrb[0].mxu0 %v3105
      %v3265 = vpop.f32.mrb[0].mxu0
      %v3266 = vadd.f32 0.0, %v3265
      %v3267 = vpop.f32.mrb[0].mxu0
      %v3268 = vpop.f32.mrb[0].mxu0
      %v3269 = vadd.f32 0.0, %v3268
      %v3270 = vpop.f32.mrb[0].mxu0
      %3271 = vmatprep.mubr.bf16.mxu0 0
      %3272 = vmatmul.mubr.bf16.gmra.mrb[0].mxu0 %v3108
      %v3273 = vpop.f32.mrb[0].mxu0
      %v3274 = vadd.f32 0.0, %v3273
      %v3275 = vpop.f32.mrb[0].mxu0
      %v3276 = vpop.f32.mrb[0].mxu0
      %v3277 = vadd.f32 0.0, %v3276
      %v3278 = vpop.f32.mrb[0].mxu0
      %3279 = vmatprep.mubr.bf16.mxu0 0
      %3280 = vmatmul.mubr.bf16.gmra.mrb[0].mxu0 %v3111
      %v3281 = vpop.f32.mrb[0].mxu0
      %v3282 = vadd.f32 0.0, %v3281
      %v3283 = vpop.f32.mrb[0].mxu0
      %v3284 = vpop.f32.mrb[0].mxu0
      %v3285 = vadd.f32 0.0, %v3284
      %v3286 = vpop.f32.mrb[0].mxu0
      %3287 = vmatprep.mubr.bf16.mxu0 0
      %3288 = vmatmul.mubr.bf16.gmra.mrb[0].mxu0 %v3114
      %v3289 = vpop.f32.mrb[0].mxu0
      %v3290 = vadd.f32 0.0, %v3289
      %v3291 = vpop.f32.mrb[0].mxu0
      %v3292 = vpop.f32.mrb[0].mxu0
      %v3293 = vadd.f32 0.0, %v3292
      %v3294 = vpop.f32.mrb[0].mxu0
      %3295 = vdwg.mxu0
      %v3296 = vadd.f32 %v2849, %v3154
      %v3297 = vadd.f32 %v2850, %v3157
      %v3298 = vadd.f32 %v2851, %v3162
      %v3299 = vadd.f32 %v2852, %v3165
      %v3300 = vadd.f32 %v2853, %v3170
      %v3301 = vadd.f32 %v2854, %v3173
      %v3302 = vadd.f32 %v2855, %v3178
      %v3303 = vadd.f32 %v2856, %v3181
      %v3304 = vadd.f32 %v2857, %v3186
      %v3305 = vadd.f32 %v2858, %v3189
      %v3306 = vadd.f32 %v2859, %v3194
      %v3307 = vadd.f32 %v2860, %v3197
      %v3308 = vadd.f32 %v2861, %v3202
      %v3309 = vadd.f32 %v2862, %v3205
      %v3310 = vadd.f32 %v2863, %v3210
      %v3311 = vadd.f32 %v2864, %v3213
      %v3312 = vadd.f32 %v2865, %v3218
      %v3313 = vadd.f32 %v2866, %v3221
      %v3314 = vadd.f32 %v2867, %v3226
      %v3315 = vadd.f32 %v2868, %v3229
      %v3316 = vadd.f32 %v2869, %v3234
      %v3317 = vadd.f32 %v2870, %v3237
      %v3318 = vadd.f32 %v2871, %v3242
      %v3319 = vadd.f32 %v2872, %v3245
      %v3320 = vadd.f32 %v2873, %v3250
      %v3321 = vadd.f32 %v2874, %v3253
      %v3322 = vadd.f32 %v2875, %v3258
      %v3323 = vadd.f32 %v2876, %v3261
      %v3324 = vadd.f32 %v2877, %v3266
      %v3325 = vadd.f32 %v2878, %v3269
      %v3326 = vadd.f32 %v2879, %v3274
      %v3327 = vadd.f32 %v2880, %v3277
      %v3328 = vadd.f32 %v2881, %v3282
      %v3329 = vadd.f32 %v2882, %v3285
      %v3330 = vadd.f32 %v2883, %v3290
      %v3331 = vadd.f32 %v2884, %v3293
      %v3332 = vld [vmem:[%s183 + $0x10] sm:$0x8]
      %s3333 = scalar_lea.vmem %s1, 16
      %v3334 = vld [vmem:[%s3333] sm:$0x3]
      %v3336 = vunpack.c.l.b16 %v3332
      %v3337 = vpack.c.b16 %v2523, %v3336
      %vm3338 = vcmask 1044480
      %v3339 = vrot.slane %v3337, 3
      %v3340 = vrot.slane %v2560, 3
      %v3341 = vsel %vm3338, %v3339, %v3340
      %v3342 = vrot.slane %v2561, 3
      %v3343 = vsel %vm3338, %v3340, %v3342
      %v3344 = vrot.slane %v2562, 3
      %v3345 = vsel %vm3338, %v3342, %v3344
      %v3346 = vrot.slane %v2563, 3
      %v3347 = vsel %vm3338, %v3344, %v3346
      %v3348 = vrot.slane %v2564, 3
      %v3349 = vsel %vm3338, %v3346, %v3348
      %v3350 = vrot.slane %v2565, 3
      %v3351 = vsel %vm3338, %v3348, %v3350
      %v3352 = vrot.slane %v2566, 3
      %v3353 = vsel %vm3338, %v3350, %v3352
      %v3354 = vrot.slane %v2567, 3
      %v3355 = vsel %vm3338, %v3352, %v3354
      %v3356 = vrot.slane %v2568, 3
      %v3357 = vsel %vm3338, %v3354, %v3356
      %v3358 = vrot.slane %v2569, 3
      %v3359 = vsel %vm3338, %v3356, %v3358
      %v3360 = vrot.slane %v2570, 3
      %v3361 = vsel %vm3338, %v3358, %v3360
      %v3362 = vrot.slane %v2571, 3
      %v3363 = vsel %vm3338, %v3360, %v3362
      %v3364 = vrot.slane %v2572, 3
      %v3365 = vsel %vm3338, %v3362, %v3364
      %v3366 = vrot.slane %v2573, 3
      %v3367 = vsel %vm3338, %v3364, %v3366
      %v3368 = vrot.slane %v2574, 3
      %v3369 = vsel %vm3338, %v3366, %v3368
      %v3370 = vrot.slane %v2575, 3
      %v3371 = vsel %vm3338, %v3368, %v3370
      %v3372 = vrot.slane %v2576, 3
      %v3373 = vsel %vm3338, %v3370, %v3372
      %v3374 = vrot.slane %v2890, 3
      %v3375 = vsel %vm3338, %v3372, %v3374
      %v3377 = vsel %vm477, %v3341, 0
      %v3380 = vsel %vm477, %v3343, 0
      %v3383 = vsel %vm477, %v3345, 0
      %v3386 = vsel %vm477, %v3347, 0
      %v3389 = vsel %vm477, %v3349, 0
      %v3392 = vsel %vm477, %v3351, 0
      %v3395 = vsel %vm477, %v3353, 0
      %v3398 = vsel %vm477, %v3355, 0
      %v3401 = vsel %vm477, %v3357, 0
      %v3404 = vsel %vm477, %v3359, 0
      %v3407 = vsel %vm477, %v3361, 0
      %v3410 = vsel %vm477, %v3363, 0
      %v3413 = vsel %vm477, %v3365, 0
      %v3416 = vsel %vm477, %v3367, 0
      %v3419 = vsel %vm477, %v3369, 0
      %v3422 = vsel %vm477, %v3371, 0
      %v3425 = vsel %vm477, %v3373, 0
      %v3428 = vsel %vm477, %v3375, 0
      %v3431 = vand.u32 %v3334, %v535
      %3433 = vmatprep.subr.bf16.mxu0 0
      %3434 = vmatpush1.bf16.msra.mxu0 %v3431
      %3435 = vmatprep.subr.bf16.mxu0 0
      %3436 = vmatpush1.bf16.msra.mxu0 0
      %3437 = vmatprep.subr.bf16.mxu0 0
      %3438 = vmatpush1.bf16.msra.mxu0 0
      %3439 = vmatprep.subr.bf16.mxu0 0
      %3440 = vmatpush1.bf16.msra.mxu0 0
      %3441 = vmatprep.subr.bf16.mxu0 0
      %3442 = vmatpush1.bf16.msra.mxu0 0
      %3443 = vmatprep.subr.bf16.mxu0 0
      %3444 = vmatpush1.bf16.msra.mxu0 0
      %3445 = vmatprep.subr.bf16.mxu0 0
      %3446 = vmatpush1.bf16.msra.mxu0 0
      %3447 = vmatprep.subr.bf16.mxu0 0
      %3448 = vmatpush1.bf16.msra.mxu0 0
      %3449 = vmatprep.subr.bf16.mxu0 0
      %3450 = vmatpush1.bf16.msra.mxu0 0
      %3451 = vmatprep.subr.bf16.mxu0 0
      %3452 = vmatpush1.bf16.msra.mxu0 0
      %3453 = vmatprep.subr.bf16.mxu0 0
      %3454 = vmatpush1.bf16.msra.mxu0 0
      %3455 = vmatprep.subr.bf16.mxu0 0
      %3456 = vmatpush1.bf16.msra.mxu0 0
      %3457 = vmatprep.subr.bf16.mxu0 0
      %3458 = vmatpush1.bf16.msra.mxu0 0
      %3459 = vmatprep.subr.bf16.mxu0 0
      %3460 = vmatpush1.bf16.msra.mxu0 0
      %3461 = vmatprep.subr.bf16.mxu0 0
      %3462 = vmatpush1.bf16.msra.mxu0 0
      %3463 = vmatprep.subr.bf16.mxu0 0
      %3464 = vmatpush1.bf16.msra.mxu0 0
      %3465 = vmatprep.mubr.bf16.mxu0 0
      %3466 = vmatmul.mubr.bf16.gmra.mrb[0].mxu0 %v3377
      %v3467 = vpop.f32.mrb[0].mxu0
      %v3468 = vadd.f32 0.0, %v3467
      %v3469 = vpop.f32.mrb[0].mxu0
      %v3470 = vpop.f32.mrb[0].mxu0
      %v3471 = vadd.f32 0.0, %v3470
      %v3472 = vpop.f32.mrb[0].mxu0
      %3473 = vmatprep.mubr.bf16.mxu0 0
      %3474 = vmatmul.mubr.bf16.gmra.mrb[0].mxu0 %v3380
      %v3475 = vpop.f32.mrb[0].mxu0
      %v3476 = vadd.f32 0.0, %v3475
      %v3477 = vpop.f32.mrb[0].mxu0
      %v3478 = vpop.f32.mrb[0].mxu0
      %v3479 = vadd.f32 0.0, %v3478
      %v3480 = vpop.f32.mrb[0].mxu0
      %3481 = vmatprep.mubr.bf16.mxu0 0
      %3482 = vmatmul.mubr.bf16.gmra.mrb[0].mxu0 %v3383
      %v3483 = vpop.f32.mrb[0].mxu0
      %v3484 = vadd.f32 0.0, %v3483
      %v3485 = vpop.f32.mrb[0].mxu0
      %v3486 = vpop.f32.mrb[0].mxu0
      %v3487 = vadd.f32 0.0, %v3486
      %v3488 = vpop.f32.mrb[0].mxu0
      %3489 = vmatprep.mubr.bf16.mxu0 0
      %3490 = vmatmul.mubr.bf16.gmra.mrb[0].mxu0 %v3386
      %v3491 = vpop.f32.mrb[0].mxu0
      %v3492 = vadd.f32 0.0, %v3491
      %v3493 = vpop.f32.mrb[0].mxu0
      %v3494 = vpop.f32.mrb[0].mxu0
      %v3495 = vadd.f32 0.0, %v3494
      %v3496 = vpop.f32.mrb[0].mxu0
      %3497 = vmatprep.mubr.bf16.mxu0 0
      %3498 = vmatmul.mubr.bf16.gmra.mrb[0].mxu0 %v3389
      %v3499 = vpop.f32.mrb[0].mxu0
      %v3500 = vadd.f32 0.0, %v3499
      %v3501 = vpop.f32.mrb[0].mxu0
      %v3502 = vpop.f32.mrb[0].mxu0
      %v3503 = vadd.f32 0.0, %v3502
      %v3504 = vpop.f32.mrb[0].mxu0
      %3505 = vmatprep.mubr.bf16.mxu0 0
      %3506 = vmatmul.mubr.bf16.gmra.mrb[0].mxu0 %v3392
      %v3507 = vpop.f32.mrb[0].mxu0
      %v3508 = vadd.f32 0.0, %v3507
      %v3509 = vpop.f32.mrb[0].mxu0
      %v3510 = vpop.f32.mrb[0].mxu0
      %v3511 = vadd.f32 0.0, %v3510
      %v3512 = vpop.f32.mrb[0].mxu0
      %3513 = vmatprep.mubr.bf16.mxu0 0
      %3514 = vmatmul.mubr.bf16.gmra.mrb[0].mxu0 %v3395
      %v3515 = vpop.f32.mrb[0].mxu0
      %v3516 = vadd.f32 0.0, %v3515
      %v3517 = vpop.f32.mrb[0].mxu0
      %v3518 = vpop.f32.mrb[0].mxu0
      %v3519 = vadd.f32 0.0, %v3518
      %v3520 = vpop.f32.mrb[0].mxu0
      %3521 = vmatprep.mubr.bf16.mxu0 0
      %3522 = vmatmul.mubr.bf16.gmra.mrb[0].mxu0 %v3398
      %v3523 = vpop.f32.mrb[0].mxu0
      %v3524 = vadd.f32 0.0, %v3523
      %v3525 = vpop.f32.mrb[0].mxu0
      %v3526 = vpop.f32.mrb[0].mxu0
      %v3527 = vadd.f32 0.0, %v3526
      %v3528 = vpop.f32.mrb[0].mxu0
      %3529 = vmatprep.mubr.bf16.mxu0 0
      %3530 = vmatmul.mubr.bf16.gmra.mrb[0].mxu0 %v3401
      %v3531 = vpop.f32.mrb[0].mxu0
      %v3532 = vadd.f32 0.0, %v3531
      %v3533 = vpop.f32.mrb[0].mxu0
      %v3534 = vpop.f32.mrb[0].mxu0
      %v3535 = vadd.f32 0.0, %v3534
      %v3536 = vpop.f32.mrb[0].mxu0
      %3537 = vmatprep.mubr.bf16.mxu0 0
      %3538 = vmatmul.mubr.bf16.gmra.mrb[0].mxu0 %v3404
      %v3539 = vpop.f32.mrb[0].mxu0
      %v3540 = vadd.f32 0.0, %v3539
      %v3541 = vpop.f32.mrb[0].mxu0
      %v3542 = vpop.f32.mrb[0].mxu0
      %v3543 = vadd.f32 0.0, %v3542
      %v3544 = vpop.f32.mrb[0].mxu0
      %3545 = vmatprep.mubr.bf16.mxu0 0
      %3546 = vmatmul.mubr.bf16.gmra.mrb[0].mxu0 %v3407
      %v3547 = vpop.f32.mrb[0].mxu0
      %v3548 = vadd.f32 0.0, %v3547
      %v3549 = vpop.f32.mrb[0].mxu0
      %v3550 = vpop.f32.mrb[0].mxu0
      %v3551 = vadd.f32 0.0, %v3550
      %v3552 = vpop.f32.mrb[0].mxu0
      %3553 = vmatprep.mubr.bf16.mxu0 0
      %3554 = vmatmul.mubr.bf16.gmra.mrb[0].mxu0 %v3410
      %v3555 = vpop.f32.mrb[0].mxu0
      %v3556 = vadd.f32 0.0, %v3555
      %v3557 = vpop.f32.mrb[0].mxu0
      %v3558 = vpop.f32.mrb[0].mxu0
      %v3559 = vadd.f32 0.0, %v3558
      %v3560 = vpop.f32.mrb[0].mxu0
      %3561 = vmatprep.mubr.bf16.mxu0 0
      %3562 = vmatmul.mubr.bf16.gmra.mrb[0].mxu0 %v3413
      %v3563 = vpop.f32.mrb[0].mxu0
      %v3564 = vadd.f32 0.0, %v3563
      %v3565 = vpop.f32.mrb[0].mxu0
      %v3566 = vpop.f32.mrb[0].mxu0
      %v3567 = vadd.f32 0.0, %v3566
      %v3568 = vpop.f32.mrb[0].mxu0
      %3569 = vmatprep.mubr.bf16.mxu0 0
      %3570 = vmatmul.mubr.bf16.gmra.mrb[0].mxu0 %v3416
      %v3571 = vpop.f32.mrb[0].mxu0
      %v3572 = vadd.f32 0.0, %v3571
      %v3573 = vpop.f32.mrb[0].mxu0
      %v3574 = vpop.f32.mrb[0].mxu0
      %v3575 = vadd.f32 0.0, %v3574
      %v3576 = vpop.f32.mrb[0].mxu0
      %3577 = vmatprep.mubr.bf16.mxu0 0
      %3578 = vmatmul.mubr.bf16.gmra.mrb[0].mxu0 %v3419
      %v3579 = vpop.f32.mrb[0].mxu0
      %v3580 = vadd.f32 0.0, %v3579
      %v3581 = vpop.f32.mrb[0].mxu0
      %v3582 = vpop.f32.mrb[0].mxu0
      %v3583 = vadd.f32 0.0, %v3582
      %v3584 = vpop.f32.mrb[0].mxu0
      %3585 = vmatprep.mubr.bf16.mxu0 0
      %3586 = vmatmul.mubr.bf16.gmra.mrb[0].mxu0 %v3422
      %v3587 = vpop.f32.mrb[0].mxu0
      %v3588 = vadd.f32 0.0, %v3587
      %v3589 = vpop.f32.mrb[0].mxu0
      %v3590 = vpop.f32.mrb[0].mxu0
      %v3591 = vadd.f32 0.0, %v3590
      %v3592 = vpop.f32.mrb[0].mxu0
      %3593 = vmatprep.mubr.bf16.mxu0 0
      %3594 = vmatmul.mubr.bf16.gmra.mrb[0].mxu0 %v3425
      %v3595 = vpop.f32.mrb[0].mxu0
      %v3596 = vadd.f32 0.0, %v3595
      %v3597 = vpop.f32.mrb[0].mxu0
      %v3598 = vpop.f32.mrb[0].mxu0
      %v3599 = vadd.f32 0.0, %v3598
      %v3600 = vpop.f32.mrb[0].mxu0
      %3601 = vmatprep.mubr.bf16.mxu0 0
      %3602 = vmatmul.mubr.bf16.gmra.mrb[0].mxu0 %v3428
      %v3603 = vpop.f32.mrb[0].mxu0
      %v3604 = vadd.f32 0.0, %v3603
      %v3605 = vpop.f32.mrb[0].mxu0
      %v3606 = vpop.f32.mrb[0].mxu0
      %v3607 = vadd.f32 0.0, %v3606
      %v3608 = vpop.f32.mrb[0].mxu0
      %3609 = vdwg.mxu0
      %v3610 = vadd.f32 %v3296, %v3468
      %v3611 = vadd.f32 %v3297, %v3471
      %v3612 = vadd.f32 %v3298, %v3476
      %v3613 = vadd.f32 %v3299, %v3479
      %v3614 = vadd.f32 %v3300, %v3484
      %v3615 = vadd.f32 %v3301, %v3487
      %v3616 = vadd.f32 %v3302, %v3492
      %v3617 = vadd.f32 %v3303, %v3495
      %v3618 = vadd.f32 %v3304, %v3500
      %v3619 = vadd.f32 %v3305, %v3503
      %v3620 = vadd.f32 %v3306, %v3508
      %v3621 = vadd.f32 %v3307, %v3511
      %v3622 = vadd.f32 %v3308, %v3516
      %v3623 = vadd.f32 %v3309, %v3519
      %v3624 = vadd.f32 %v3310, %v3524
      %v3625 = vadd.f32 %v3311, %v3527
      %v3626 = vadd.f32 %v3312, %v3532
      %v3627 = vadd.f32 %v3313, %v3535
      %v3628 = vadd.f32 %v3314, %v3540
      %v3629 = vadd.f32 %v3315, %v3543
      %v3630 = vadd.f32 %v3316, %v3548
      %v3631 = vadd.f32 %v3317, %v3551
      %v3632 = vadd.f32 %v3318, %v3556
      %v3633 = vadd.f32 %v3319, %v3559
      %v3634 = vadd.f32 %v3320, %v3564
      %v3635 = vadd.f32 %v3321, %v3567
      %v3636 = vadd.f32 %v3322, %v3572
      %v3637 = vadd.f32 %v3323, %v3575
      %v3638 = vadd.f32 %v3324, %v3580
      %v3639 = vadd.f32 %v3325, %v3583
      %v3640 = vadd.f32 %v3326, %v3588
      %v3641 = vadd.f32 %v3327, %v3591
      %v3642 = vadd.f32 %v3328, %v3596
      %v3643 = vadd.f32 %v3329, %v3599
      %v3644 = vadd.f32 %v3330, %v3604
      %v3645 = vadd.f32 %v3331, %v3607
      %v3646 = vld [vmem:[%s2] sm:$0x1]
      %v3648 = vlaneseq
      %v3649 = vshrl.u32 %v3648, 7
      %v3650 = vsub.s32 0, %v3649
      %v3651 = vrot.slane %v3646, %v3650
      %v3653 = vadd.f32 %v3610, %v3651
      %v3654 = vadd.f32 %v3611, %v3651
      %v3655 = vadd.f32 %v3612, %v3651
      %v3656 = vadd.f32 %v3613, %v3651
      %v3657 = vadd.f32 %v3614, %v3651
      %v3658 = vadd.f32 %v3615, %v3651
      %v3659 = vadd.f32 %v3616, %v3651
      %v3660 = vadd.f32 %v3617, %v3651
      %v3661 = vadd.f32 %v3618, %v3651
      %v3662 = vadd.f32 %v3619, %v3651
      %v3663 = vadd.f32 %v3620, %v3651
      %v3664 = vadd.f32 %v3621, %v3651
      %v3665 = vadd.f32 %v3622, %v3651
      %v3666 = vadd.f32 %v3623, %v3651
      %v3667 = vadd.f32 %v3624, %v3651
      %v3668 = vadd.f32 %v3625, %v3651
      %v3669 = vadd.f32 %v3626, %v3651
      %v3670 = vadd.f32 %v3627, %v3651
      %v3671 = vadd.f32 %v3628, %v3651
      %v3672 = vadd.f32 %v3629, %v3651
      %v3673 = vadd.f32 %v3630, %v3651
      %v3674 = vadd.f32 %v3631, %v3651
      %v3675 = vadd.f32 %v3632, %v3651
      %v3676 = vadd.f32 %v3633, %v3651
      %v3677 = vadd.f32 %v3634, %v3651
      %v3678 = vadd.f32 %v3635, %v3651
      %v3679 = vadd.f32 %v3636, %v3651
      %v3680 = vadd.f32 %v3637, %v3651
      %v3681 = vadd.f32 %v3638, %v3651
      %v3682 = vadd.f32 %v3639, %v3651
      %v3683 = vadd.f32 %v3640, %v3651
      %v3684 = vadd.f32 %v3641, %v3651
      %v3685 = vadd.f32 %v3642, %v3651
      %v3686 = vadd.f32 %v3643, %v3651
      %v3687 = vadd.f32 %v3644, %v3651
      %v3688 = vadd.f32 %v3645, %v3651
      %v3689 = vpack.c.bf16 %v3654, %v3653
      %v3690 = vpack.c.bf16 %v3656, %v3655
      %v3691 = vpack.c.bf16 %v3658, %v3657
      %v3692 = vpack.c.bf16 %v3660, %v3659
      %v3693 = vpack.c.bf16 %v3662, %v3661
      %v3694 = vpack.c.bf16 %v3664, %v3663
      %v3695 = vpack.c.bf16 %v3666, %v3665
      %v3696 = vpack.c.bf16 %v3668, %v3667
      %v3697 = vpack.c.bf16 %v3670, %v3669
      %v3698 = vpack.c.bf16 %v3672, %v3671
      %v3699 = vpack.c.bf16 %v3674, %v3673
      %v3700 = vpack.c.bf16 %v3676, %v3675
      %v3701 = vpack.c.bf16 %v3678, %v3677
      %v3702 = vpack.c.bf16 %v3680, %v3679
      %v3703 = vpack.c.bf16 %v3682, %v3681
      %v3704 = vpack.c.bf16 %v3684, %v3683
      %v3705 = vpack.c.bf16 %v3686, %v3685
      %v3706 = vpack.c.bf16 %v3688, %v3687
      %v3725 = vunpack.c.l.b16 %v3689
      %v3726 = vunpack.c.h.b16 %v3689
      %v3727 = vunpack.c.l.b16 %v3690
      %v3728 = vunpack.c.h.b16 %v3690
      %v3729 = vunpack.c.l.b16 %v3691
      %v3730 = vunpack.c.h.b16 %v3691
      %v3731 = vunpack.c.l.b16 %v3692
      %v3732 = vunpack.c.h.b16 %v3692
      %v3733 = vunpack.c.l.b16 %v3693
      %v3734 = vunpack.c.h.b16 %v3693
      %v3735 = vunpack.c.l.b16 %v3694
      %v3736 = vunpack.c.h.b16 %v3694
      %v3737 = vunpack.c.l.b16 %v3695
      %v3738 = vunpack.c.h.b16 %v3695
      %v3739 = vunpack.c.l.b16 %v3696
      %v3740 = vunpack.c.h.b16 %v3696
      %v3741 = vunpack.c.l.b16 %v3697
      %v3742 = vunpack.c.h.b16 %v3697
      %v3743 = vunpack.c.l.b16 %v3698
      %v3744 = vunpack.c.h.b16 %v3698
      %v3745 = vunpack.c.l.b16 %v3699
      %v3746 = vunpack.c.h.b16 %v3699
      %v3747 = vunpack.c.l.b16 %v3700
      %v3748 = vunpack.c.h.b16 %v3700
      %v3749 = vunpack.c.l.b16 %v3701
      %v3750 = vunpack.c.h.b16 %v3701
      %v3751 = vunpack.c.l.b16 %v3702
      %v3752 = vunpack.c.h.b16 %v3702
      %v3753 = vunpack.c.l.b16 %v3703
      %v3754 = vunpack.c.h.b16 %v3703
      %v3755 = vunpack.c.l.b16 %v3704
      %v3756 = vunpack.c.h.b16 %v3704
      %v3757 = vunpack.c.l.b16 %v3705
      %v3758 = vunpack.c.h.b16 %v3705
      %v3759 = vunpack.c.l.b16 %v3706
      %v3760 = vunpack.c.h.b16 %v3706
      %v3761 = vpack.c.b16 %v3725, %v3725
      %v3762 = vpack.c.b16 %v3726, %v3726
      %v3763 = vpack.c.b16 %v3727, %v3727
      %v3764 = vpack.c.b16 %v3728, %v3728
      %v3765 = vpack.c.b16 %v3729, %v3729
      %v3766 = vpack.c.b16 %v3730, %v3730
      %v3767 = vpack.c.b16 %v3731, %v3731
      %v3768 = vpack.c.b16 %v3732, %v3732
      %v3769 = vpack.c.b16 %v3733, %v3733
      %v3770 = vpack.c.b16 %v3734, %v3734
      %v3771 = vpack.c.b16 %v3735, %v3735
      %v3772 = vpack.c.b16 %v3736, %v3736
      %v3773 = vpack.c.b16 %v3737, %v3737
      %v3774 = vpack.c.b16 %v3738, %v3738
      %v3775 = vpack.c.b16 %v3739, %v3739
      %v3776 = vpack.c.b16 %v3740, %v3740
      %v3777 = vpack.c.b16 %v3741, %v3741
      %v3778 = vpack.c.b16 %v3742, %v3742
      %v3779 = vpack.c.b16 %v3743, %v3743
      %v3780 = vpack.c.b16 %v3744, %v3744
      %v3781 = vpack.c.b16 %v3745, %v3745
      %v3782 = vpack.c.b16 %v3746, %v3746
      %v3783 = vpack.c.b16 %v3747, %v3747
      %v3784 = vpack.c.b16 %v3748, %v3748
      %v3785 = vpack.c.b16 %v3749, %v3749
      %v3786 = vpack.c.b16 %v3750, %v3750
      %v3787 = vpack.c.b16 %v3751, %v3751
      %v3788 = vpack.c.b16 %v3752, %v3752
      %v3789 = vpack.c.b16 %v3753, %v3753
      %v3790 = vpack.c.b16 %v3754, %v3754
      %v3791 = vpack.c.b16 %v3755, %v3755
      %v3792 = vpack.c.b16 %v3756, %v3756
      %v3793 = vpack.c.b16 %v3757, %v3757
      %v3794 = vpack.c.b16 %v3758, %v3758
      %v3795 = vpack.c.b16 %v3759, %v3759
      %v3796 = vpack.c.b16 %v3760, %v3760
      %vm3833 = vcmask 60416
      %3834 = vst.msk [vmem:[%s192] sm:$0xf] %vm3833, %v3761
      %3835 = vst.msk [vmem:[%s192 + $0x4] sm:$0xf] %vm3833, %v3762
      %3836 = vst.msk [vmem:[%s192 + $0x8] sm:$0xf] %vm3833, %v3763
      %3837 = vst.msk [vmem:[%s192 + $0xc] sm:$0xf] %vm3833, %v3764
      %3838 = vst.msk [vmem:[%s192 + $0x10] sm:$0xf] %vm3833, %v3765
      %3839 = vst.msk [vmem:[%s192 + $0x14] sm:$0xf] %vm3833, %v3766
      %3840 = vst.msk [vmem:[%s192 + $0x18] sm:$0xf] %vm3833, %v3767
      %3841 = vst.msk [vmem:[%s192 + $0x1c] sm:$0xf] %vm3833, %v3768
      %3842 = vst.msk [vmem:[%s192 + $0x20] sm:$0xf] %vm3833, %v3769
      %3843 = vst.msk [vmem:[%s192 + $0x24] sm:$0xf] %vm3833, %v3770
      %3844 = vst.msk [vmem:[%s192 + $0x28] sm:$0xf] %vm3833, %v3771
      %3845 = vst.msk [vmem:[%s192 + $0x2c] sm:$0xf] %vm3833, %v3772
      %3846 = vst.msk [vmem:[%s192 + $0x30] sm:$0xf] %vm3833, %v3773
      %3847 = vst.msk [vmem:[%s192 + $0x34] sm:$0xf] %vm3833, %v3774
      %3848 = vst.msk [vmem:[%s192 + $0x38] sm:$0xf] %vm3833, %v3775
      %3849 = vst.msk [vmem:[%s192 + $0x3c] sm:$0xf] %vm3833, %v3776
      %3850 = vst.msk [vmem:[%s192 + $0x40] sm:$0xf] %vm3833, %v3777
      %3851 = vst.msk [vmem:[%s192 + $0x44] sm:$0xf] %vm3833, %v3778
      %3852 = vst.msk [vmem:[%s192 + $0x48] sm:$0xf] %vm3833, %v3779
      %3853 = vst.msk [vmem:[%s192 + $0x4c] sm:$0xf] %vm3833, %v3780
      %3854 = vst.msk [vmem:[%s192 + $0x50] sm:$0xf] %vm3833, %v3781
      %3855 = vst.msk [vmem:[%s192 + $0x54] sm:$0xf] %vm3833, %v3782
      %3856 = vst.msk [vmem:[%s192 + $0x58] sm:$0xf] %vm3833, %v3783
      %3857 = vst.msk [vmem:[%s192 + $0x5c] sm:$0xf] %vm3833, %v3784
      %3858 = vst.msk [vmem:[%s192 + $0x60] sm:$0xf] %vm3833, %v3785
      %3859 = vst.msk [vmem:[%s192 + $0x64] sm:$0xf] %vm3833, %v3786
      %3860 = vst.msk [vmem:[%s192 + $0x68] sm:$0xf] %vm3833, %v3787
      %3861 = vst.msk [vmem:[%s192 + $0x6c] sm:$0xf] %vm3833, %v3788
      %3862 = vst.msk [vmem:[%s192 + $0x70] sm:$0xf] %vm3833, %v3789
      %3863 = vst.msk [vmem:[%s192 + $0x74] sm:$0xf] %vm3833, %v3790
      %3864 = vst.msk [vmem:[%s192 + $0x78] sm:$0xf] %vm3833, %v3791
      %3865 = vst.msk [vmem:[%s192 + $0x7c] sm:$0xf] %vm3833, %v3792
      %3866 = vst.msk [vmem:[%s192 + $0x80] sm:$0xf] %vm3833, %v3793
      %3867 = vst.msk [vmem:[%s192 + $0x84] sm:$0xf] %vm3833, %v3794
      %3868 = vst.msk [vmem:[%s192 + $0x88] sm:$0xf] %vm3833, %v3795
      %3869 = vst.msk [vmem:[%s192 + $0x8c] sm:$0xf] %vm3833, %v3796
      %s3870 = smul.u32 36, %s19
      %p3871 = scmp.lt.s32.totalorder %s18, 1
      %s3872 = scalar_select %p3871, %s18, 1
      %p3873 = scmp.lt.s32.totalorder %s3870, 35
      %s3874 = scalar_select %p3873, %s3870, 35
      %s3875 = smul.addr %s3872, 36
      %s3876 = sadd.s32 %s3874, %s3875
      %s3877 = smul.addr %s3876, 4
      %s3878 = scalar_lea.vmem %s3, %s3877
      // Predicated region
      $region33: #{tpu_custom_call.1} parent=31 // pred_check
        %p3879 = pneg %p114
      $region34: #{tpu_custom_call.1} parent=31 // pred_check_branch
        %3881 = sbr.rel (%p3879) target = $region36
      $region35: #{tpu_custom_call.1} parent=31 // pred_region
        %s3882 = smul.u32 36, %s19
      $region36: #{tpu_custom_call.1} parent=31 // pred_fallthru
        _
    $region32: #{tpu_custom_call.1} parent=5 // pred_fallthru
      _
    %p3883 = scmp.le.s32.totalorder 2, %s9
    // Predicated region
    $region37: #{tpu_custom_call.1} parent=5 // pred_check
      %p3884 = pneg %p3883
    $region38: #{tpu_custom_call.1} parent=5 // pred_check_branch
      %3886 = sbr.rel (%p3884) target = $region40
    $region39: #{tpu_custom_call.1} parent=5 // pred_region
      %s3887 = ssub.s32 %s9, 2
      // Predicated region
      $region41: #{tpu_custom_call.1} parent=39 // pred_check
        %p3888 = pneg %p120
      $region42: #{tpu_custom_call.1} parent=39 // pred_check_branch
        %3890 = sbr.rel (%p3888) target = $region44
      $region43: #{tpu_custom_call.1} parent=39 // pred_region
        %s3891 = smul.u32 36, %s21
        %p3892 = scmp.lt.s32.totalorder %s20, 1
        %s3893 = scalar_select %p3892, %s20, 1
        %p3894 = scmp.lt.s32.totalorder %s3891, 35
        %s3895 = scalar_select %p3894, %s3891, 35
        %s3896 = smul.addr %s3893, 36
        %s3897 = sadd.s32 %s3895, %s3896
        %s3898 = smul.addr %s3897, 4
        %s3899 = scalar_lea.vmem %s3, %s3898
      $region44: #{tpu_custom_call.1} parent=39 // pred_fallthru
        _
    $region40: #{tpu_custom_call.1} parent=5 // pred_fallthru
      _
  $region6: #{tpu_custom_call.1} parent=0 // loop_footer
    %s13 = sadd.s32 1, %s9
  $region7: #{tpu_custom_call.1} parent=0 // loop_footer_branch
    %8 = sbr.rel target = $region3
  $region8: #{tpu_custom_call.1} parent=0 // loop_exit
    _

</llo_original>
